<compile_context>
chip_gen: v7x
topology: tpu7x:2x2x1
jax: 0.10.0
libtpu: 0.0.40
codegen_flags: <defaults>
</compile_context>

<pallas_src>
import functools

import numpy as np
import jax
import jax.numpy as jnp
from jax import lax
from jax.experimental import pallas as pl
from jax.experimental.pallas import tpu as pltpu


# ----------------------------------------------------------------------------
# Small, deterministic config consistent with the module's __init__
# ----------------------------------------------------------------------------
CONFIG = dict(
    seq_len=16,                 # height
    n_mels=16,                  # width
    n_filters=[4, 8],
    filter_sizes=[(3, 3), (3, 3)],
    strides=[(1, 1), (1, 1)],
    pools=[2, 2],
    pad_convs=True,
    batch_norm_interval=2,
    dense_size=32,
    dropout=0.5,
    num_classes=6,
)
BN_EPS = 1e-5
LANE = 128


# ----------------------------------------------------------------------------
# Fused kernel: the whole CNN forward for TB images per grid step
# ----------------------------------------------------------------------------
def _make_kernel(plan, head, tb):
    """Activation layout throughout: (TB*H, C*W) f32.

    Batch is interleaved on the sublane axis (row = h*TB + b); channels*width live on
    the lane axis.  All selection/weight operators are small constant matrices built in
    the wrapper, so the body is rolls, masks, elementwise max and a handful of MXU dots.
    """

    def kernel(*refs):
        x_ref, rows_ref = refs[0], refs[1]
        wd_ref, wc_ref, out_ref = refs[-3], refs[-2], refs[-1]
        idx = 2

        z = x_ref[0]                                        # (TB*H0, W0), Cin = 1

        for lp in plan:
            r_ref = refs[idx]                               # (kh, Cin*W, Cout*Wc)
            idx += 1
            kh, ph, H = lp['kh'], lp['ph'], lp['h_in']
            nrows = tb * H

            # --- Conv2d ('same', vertical stride 1) -------------------------------
            # Vertical taps = sublane rolls (XLU) + boundary zero mask (VPU);
            # horizontal taps & weights are folded into the banded matrix R[ky].
            y = None
            for ky in range(kh):
                d = ky - ph
                s = z
                if d != 0:
                    s = pltpu.roll(z, (-d * tb) % nrows, axis=0)
                    rid = lax.broadcasted_iota(jnp.int32, s.shape, 0)
                    mask = (rid >= (-d) * tb) if d < 0 else (rid < (H - d) * tb)
                    s = jnp.where(mask, s, 0.0)
                t = jnp.dot(s, r_ref[ky], preferred_element_type=jnp.float32)
                y = t if y is None else y + t               # (TB*H, Cout*Wc)

            # --- MaxPool2d --------------------------------------------------------
            pool = lp['pool']
            if pool:
                rowsel_ref = refs[idx]                      # (TB*Hp, TB*Hc)
                lanesel_ref = refs[idx + 1]                 # (pool, Cout*Wc, Cout*Wp)
                idx += 2
                # Row phases: elementwise max of rolled copies, then one selection dot.
                v = y
                for oy in range(1, pool):
                    v = jnp.maximum(v, pltpu.roll(y, (-oy * tb) % nrows, axis=0))
                u = jnp.dot(rowsel_ref[...], v, preferred_element_type=jnp.float32)
                # Lane phases: max of per-phase selection dots (0/1 matrices).
                p = jnp.dot(u, lanesel_ref[0], preferred_element_type=jnp.float32)
                for ox in range(1, pool):
                    p = jnp.maximum(
                        p, jnp.dot(u, lanesel_ref[ox], preferred_element_type=jnp.float32))
                y = p                                       # (TB*Hp, Cout*Wp)

            # --- conv bias (post-pool: per-channel const commutes with max) + ReLU -
            br, bw = lp['bias_row'], lp['bias_width']
            y = jnp.maximum(y + rows_ref[br:br + 1, :bw], 0.0)

            # --- eval-mode BN on a non-final layer (final-layer BN folded into head)
            if lp['bn_inkernel']:
                sr, tr = lp['bn_scale_row'], lp['bn_shift_row']
                y = y * rows_ref[sr:sr + 1, :bw] + rows_ref[tr:tr + 1, :bw]

            z = y

        # --- Head: flatten -> dense -> ReLU -> dropout(identity) -> classifier ------
        # Each height block z[h*TB:(h+1)*TB] is a contiguous (TB, C*W) slab: h_last
        # independent M=TB dots, combined with a pairwise tree-sum (no serial chain).
        h_last = head['h_last']
        partials = [
            jnp.dot(z[h * tb:(h + 1) * tb, :], wd_ref[h], preferred_element_type=jnp.float32)
            for h in range(h_last)
        ]
        while len(partials) > 1:
            nxt = []
            for i in range(0, len(partials), 2):
                nxt.append(partials[i] + partials[i + 1] if i + 1 < len(partials)
                           else partials[i])
            partials = nxt
        acc = partials[0]                                   # (TB, dense)

        b1r, b1w = head['b1_row'], head['b1_width']
        hid = jnp.maximum(acc + rows_ref[b1r:b1r + 1, :b1w], 0.0)
        # TODO(synk): Dropout is identity (inference mode).
        logits = jnp.dot(hid, wc_ref[...], preferred_element_type=jnp.float32)
        bcr, ncp = head['bc_row'], head['ncls_pad']
        out_ref[...] = logits + rows_ref[bcr:bcr + 1, :ncp]  # lane-dense (TB, 128) store

    return kernel


def _full_spec(arr):
    """Whole-array VMEM block with a constant index map (fetched once, reused per step)."""
    nd = arr.ndim
    shape = tuple(int(s) for s in arr.shape)
    return pl.BlockSpec(shape, lambda g, _nd=nd: (0,) * _nd)


# ----------------------------------------------------------------------------
# Wrapper: precompute the small constant operator matrices (once, outside the hot path)
# ----------------------------------------------------------------------------
def _build_operands(params, config, tb):
    n_filters = [1] + config['n_filters']
    n_layers = len(config['filter_sizes'])
    H, W = config['seq_len'], config['n_mels']

    rows = []                                   # consolidated (1, lane) constant rows

    def add_row(vec):
        rows.append(jnp.asarray(vec, jnp.float32).reshape(-1))
        return len(rows) - 1

    plan, layer_ops = [], []
    bn_fold = None

    for i, (kh, kw) in enumerate(config['filter_sizes']):
        cin, cout = n_filters[i], n_filters[i + 1]
        sh, sw = config['strides'][i]
        if config['pad_convs']:
            ph = int(np.ceil((kh - 1) / 2))
            pw = int(np.ceil((kw - 1) / 2))
        else:
            ph = pw = 0
        Hc = (H + 2 * ph - kh) // sh + 1
        Wc = (W + 2 * pw - kw) // sw + 1
        assert sh == 1 and Hc == H, \
            "TODO(synk): roll-based conv path requires stride-1 'same' vertical convs"

        # Column/channel operator (banded Toeplitz x conv weights):
        #   R[ky, ci*W + wi, co*Wc + wo] = weight[co, ci, ky, kx]  with  wi == wo*sw + kx - pw.
        band = np.zeros((kw, W, Wc), np.float32)
        for kx in range(kw):
            for wo in range(Wc):
                wi = wo * sw + kx - pw
                if 0 <= wi < W:
                    band[kx, wi, wo] = 1.0
        weight = params[f'conv{i}_w']                        # (cout, cin, kh, kw)
        R = jnp.einsum('oiyk,kab->yiaob', weight, jnp.asarray(band))
        layer_ops.append(R.reshape(kh, cin * W, cout * Wc))

        pool = config['pools'][i]
        if pool:
            Hp = (Hc - pool) // pool + 1
            Wp = (Wc - pool) // pool + 1
            # Row down-sample selection: rowsel[hp*TB + b, (hp*pool)*TB + b] = 1.
            rowsel = np.zeros((tb * Hp, tb * Hc), np.float32)
            for hp in range(Hp):
                for b in range(tb):
                    rowsel[hp * tb + b, hp * pool * tb + b] = 1.0
            # Lane phase selections: lanesel[ox, c*Wc + wp*pool + ox, c*Wp + wp] = 1.
            lanesel = np.zeros((pool, cout * Wc, cout * Wp), np.float32)
            for ox in range(pool):
                for c in range(cout):
                    for wp in range(Wp):
                        lanesel[ox, c * Wc + wp * pool + ox, c * Wp + wp] = 1.0
            layer_ops += [jnp.asarray(rowsel), jnp.asarray(lanesel)]
            Hf, Wf = Hp, Wp
        else:
            Hf, Wf = Hc, Wc

        lp = dict(kh=kh, ph=ph, h_in=Hc, pool=pool,
                  bias_row=add_row(jnp.repeat(params[f'conv{i}_b'], Wf)),
                  bias_width=cout * Wf, bn_inkernel=False)

        if i % config['batch_norm_interval'] == config['batch_norm_interval'] - 1:
            scale = params[f'bn{i}_gamma'] / jnp.sqrt(params[f'bn{i}_var'] + BN_EPS)
            shift = params[f'bn{i}_beta'] - params[f'bn{i}_mean'] * scale
            scale_row = jnp.repeat(scale, Wf)
            shift_row = jnp.repeat(shift, Wf)
            if i == n_layers - 1:
                bn_fold = (scale_row, shift_row)             # fold exactly into the head
            else:
                lp['bn_inkernel'] = True
                lp['bn_scale_row'] = add_row(scale_row)
                lp['bn_shift_row'] = add_row(shift_row)

        plan.append(lp)
        H, W = Hf, Wf

    # Dense head: permute dense_w rows from PyTorch (c,h,w) flatten order into the
    # kernel's (h, c*W + w) layout; fold the last-layer eval-mode BN in exactly.
    c_last, dense, ncls = n_filters[-1], config['dense_size'], config['num_classes']
    CW = c_last * W
    w1h = params['dense_w'].reshape(c_last, H, W, dense).transpose(1, 0, 2, 3)
    w1h = w1h.reshape(H, CW, dense)
    b1 = params['dense_b']
    if bn_fold is not None:
        scale_row, shift_row = bn_fold
        b1 = b1 + jnp.einsum('l,hld->d', shift_row, w1h)
        w1h = w1h * scale_row[None, :, None]

    ncls_pad = ((ncls + LANE - 1) // LANE) * LANE
    wc_pad = jnp.zeros((dense, ncls_pad), jnp.float32).at[:, :ncls].set(params['cls_w'])
    bc_pad = jnp.zeros((ncls_pad,), jnp.float32).at[:ncls].set(params['cls_b'])

    head = dict(h_last=H, b1_row=add_row(b1), b1_width=dense,
                bc_row=add_row(bc_pad), ncls_pad=ncls_pad)

    # Consolidate all the tiny per-channel rows into one lane-padded operand.
    pad_w = max(LANE, ncls_pad, max(int(r.shape[0]) for r in rows))
    rows_pack = jnp.zeros((max(8, len(rows)), pad_w), jnp.float32)
    for r_idx, r in enumerate(rows):
        rows_pack = rows_pack.at[r_idx, :r.shape[0]].set(r)

    operands = [rows_pack] + layer_ops + [w1h, wc_pad]
    return operands, plan, head


def cnn_forward(x, params, config, block_batch=16):
    """x: (B, seq_len, n_mels) -> logits (B, num_classes). Single fused Pallas kernel."""
    B, H0, W0 = x.shape
    tb = int(block_batch)
    assert tb % 8 == 0, "block_batch must be a multiple of 8 (sublane alignment)"
    ncls = config['num_classes']

    b_pad = ((B + tb - 1) // tb) * tb
    if b_pad != B:
        x = jnp.concatenate([x, jnp.zeros((b_pad - B, H0, W0), x.dtype)], axis=0)
    n_g = b_pad // tb

    # Interleaved sublane packing (wrapper-side layout plumbing): per grid block,
    # row h*TB + b holds image b, image-row h.
    x_packed = x.astype(jnp.float32).reshape(n_g, tb, H0, W0)
    x_packed = x_packed.transpose(0, 2, 1, 3).reshape(n_g, H0 * tb, W0)

    operands, plan, head = _build_operands(params, config, tb)
    kernel = _make_kernel(plan, head, tb)

    in_specs = [pl.BlockSpec((1, H0 * tb, W0), lambda g: (g, 0, 0))]
    in_specs += [_full_spec(a) for a in operands]

    out = pl.pallas_call(
        kernel,
        out_shape=jax.ShapeDtypeStruct((b_pad, head['ncls_pad']), jnp.float32),
        grid=(n_g,),
        in_specs=in_specs,
        out_specs=pl.BlockSpec((tb, head['ncls_pad']), lambda g: (g, 0)),
        compiler_params=pltpu.CompilerParams(
            dimension_semantics=("parallel",),   # shard batch blocks across both TCs on v7x
        ),
    )(x_packed, *operands)
    return out[:B, :ncls]


# ----------------------------------------------------------------------------
# Shape bookkeeping + parameter init (mirrors CNN.__init__)
# ----------------------------------------------------------------------------
def trace_output_hw(config):
    height, width = config['seq_len'], config['n_mels']
    for i, f_size in enumerate(config['filter_sizes']):
        if config['pad_convs']:
            padding = (int(np.ceil((f_size[0] - 1) / 2)), int(np.ceil((f_size[1] - 1) / 2)))
        else:
            padding = (0, 0)
        height = (height + 2 * padding[0] - f_size[0]) // config['strides'][i][0] + 1
        width = (width + 2 * padding[1] - f_size[1]) // config['strides'][i][1] + 1
        pool = config['pools'][i]
        if pool:
            height = (height - (pool - 1) - 1) // pool + 1
            width = (width - (pool - 1) - 1) // pool + 1
    return height, width


def init_params(config, key):
    params = {}
    n_filters = [1] + config['n_filters']
    for i, (kh, kw) in enumerate(config['filter_sizes']):
        cin, cout = n_filters[i], n_filters[i + 1]
        key, kw_, kb_, kg, kbeta, km, kv = jax.random.split(key, 7)
        params[f'conv{i}_w'] = 0.1 * jax.random.normal(kw_, (cout, cin, kh, kw), jnp.float32)
        params[f'conv{i}_b'] = 0.1 * jax.random.normal(kb_, (cout,), jnp.float32)
        if i % config['batch_norm_interval'] == config['batch_norm_interval'] - 1:
            params[f'bn{i}_gamma'] = 1.0 + 0.1 * jax.random.normal(kg, (cout,), jnp.float32)
            params[f'bn{i}_beta'] = 0.1 * jax.random.normal(kbeta, (cout,), jnp.float32)
            params[f'bn{i}_mean'] = 0.1 * jax.random.normal(km, (cout,), jnp.float32)
            params[f'bn{i}_var'] = 1.0 + 0.1 * jnp.abs(jax.random.normal(kv, (cout,), jnp.float32))
    h, w = trace_output_hw(config)
    conv_output_size = config['n_filters'][-1] * h * w
    key, k1, k2, k3, k4 = jax.random.split(key, 5)
    params['dense_w'] = 0.1 * jax.random.normal(k1, (conv_output_size, config['dense_size']), jnp.float32)
    params['dense_b'] = 0.1 * jax.random.normal(k2, (config['dense_size'],), jnp.float32)
    params['cls_w'] = 0.1 * jax.random.normal(k3, (config['dense_size'], config['num_classes']), jnp.float32)
    params['cls_b'] = 0.1 * jax.random.normal(k4, (config['num_classes'],), jnp.float32)
    return params


# ----------------------------------------------------------------------------
# Plain-JAX reference (same math, used only for a correctness cross-check)
# ----------------------------------------------------------------------------
def _reference_forward(x, params, config):
    B = x.shape[0]
    h = x[:, None, :, :]
    for i, (kh, kw) in enumerate(config['filter_sizes']):
        sh, sw = config['strides'][i]
        if config['pad_convs']:
            ph = int(np.ceil((kh - 1) / 2))
            pw = int(np.ceil((kw - 1) / 2))
        else:
            ph = pw = 0
        h = jax.lax.conv_general_dilated(
            h, params[f'conv{i}_w'], window_strides=(sh, sw),
            padding=((ph, ph), (pw, pw)),
            dimension_numbers=('NCHW', 'OIHW', 'NCHW'),
            precision=jax.lax.Precision.HIGHEST)
        h = h + params[f'conv{i}_b'][None, :, None, None]
        pool = config['pools'][i]
        if pool:
            h = jax.lax.reduce_window(h, -jnp.inf, jax.lax.max,
                                      (1, 1, pool, pool), (1, 1, pool, pool), 'VALID')
        h = jnp.maximum(h, 0.0)
        if i % config['batch_norm_interval'] == config['batch_norm_interval'] - 1:
            scale = params[f'bn{i}_gamma'] / jnp.sqrt(params[f'bn{i}_var'] + BN_EPS)
            shift = params[f'bn{i}_beta'] - params[f'bn{i}_mean'] * scale
            h = h * scale[None, :, None, None] + shift[None, :, None, None]
    flat = h.reshape(B, -1)
    hid = jnp.maximum(flat @ params['dense_w'] + params['dense_b'], 0.0)
    return hid @ params['cls_w'] + params['cls_b']


if __name__ == "__main__":
    key = jax.random.PRNGKey(0)
    key, kx, kp = jax.random.split(key, 3)
    batch = 32                                   # matches config['batch_size'] of the module
    x = jax.random.normal(kx, (batch, CONFIG['seq_len'], CONFIG['n_mels']), jnp.float32)
    params = init_params(CONFIG, kp)

    # TB=16 -> 2 grid steps: amortizes per-step overhead and keeps both v7x TCs busy.
    fwd = jax.jit(functools.partial(cnn_forward, config=CONFIG, block_batch=16))
    logits = fwd(x, params)
    jax.block_until_ready(logits)

    assert logits.shape == (batch, CONFIG['num_classes'])
    assert bool(jnp.all(jnp.isfinite(logits)))

    ref = jax.jit(functools.partial(_reference_forward, config=CONFIG))(x, params)
    err = float(jnp.max(jnp.abs(logits - ref)))
    assert err < 2e-2, f"mismatch vs reference forward: {err}"

    print("KERNEL_OK")
</pallas_src>

<mosaic_0001>
module attributes {stable_mosaic.version = 11 : i64} {
  func.func @kernel(%arg0: i32, %arg1: memref<1x256x16xf32, #tpu.memory_space<vmem>>, %arg2: memref<8x128xf32, #tpu.memory_space<vmem>>, %arg3: memref<3x16x64xf32, #tpu.memory_space<vmem>>, %arg4: memref<128x256xf32, #tpu.memory_space<vmem>>, %arg5: memref<2x64x32xf32, #tpu.memory_space<vmem>>, %arg6: memref<3x32x64xf32, #tpu.memory_space<vmem>>, %arg7: memref<64x128xf32, #tpu.memory_space<vmem>>, %arg8: memref<2x64x32xf32, #tpu.memory_space<vmem>>, %arg9: memref<4x32x32xf32, #tpu.memory_space<vmem>>, %arg10: memref<32x128xf32, #tpu.memory_space<vmem>>, %arg11: memref<16x128xf32, #tpu.memory_space<vmem>>) attributes {dimension_semantics = [#tpu.dimension_semantics<parallel>], iteration_bounds = array<i64: 2>, scalar_prefetch = 0 : i64, scratch_operands = 0 : i64, tpu.core_type = #tpu.core_type<tc>, window_params = [{transform_indices = @transform_0, window_bounds = array<i64: 1, 256, 16>}, {pipeline_mode = #tpu.pipeline_mode<synchronous>, transform_indices = @transform_1, window_bounds = array<i64: 8, 128>}, {pipeline_mode = #tpu.pipeline_mode<synchronous>, transform_indices = @transform_2, window_bounds = array<i64: 3, 16, 64>}, {pipeline_mode = #tpu.pipeline_mode<synchronous>, transform_indices = @transform_3, window_bounds = array<i64: 128, 256>}, {pipeline_mode = #tpu.pipeline_mode<synchronous>, transform_indices = @transform_4, window_bounds = array<i64: 2, 64, 32>}, {pipeline_mode = #tpu.pipeline_mode<synchronous>, transform_indices = @transform_5, window_bounds = array<i64: 3, 32, 64>}, {pipeline_mode = #tpu.pipeline_mode<synchronous>, transform_indices = @transform_6, window_bounds = array<i64: 64, 128>}, {pipeline_mode = #tpu.pipeline_mode<synchronous>, transform_indices = @transform_7, window_bounds = array<i64: 2, 64, 32>}, {pipeline_mode = #tpu.pipeline_mode<synchronous>, transform_indices = @transform_8, window_bounds = array<i64: 4, 32, 32>}, {pipeline_mode = #tpu.pipeline_mode<synchronous>, transform_indices = @transform_9, window_bounds = array<i64: 32, 128>}, {transform_indices = @transform_10, window_bounds = array<i64: 16, 128>}]} {
    %c0 = arith.constant 0 : index
    %c0_0 = arith.constant 0 : index
    %c0_1 = arith.constant 0 : index
    %0 = vector.load %arg1[%c0, %c0_0, %c0_1] : memref<1x256x16xf32, #tpu.memory_space<vmem>>, vector<1x256x16xf32>
    %1 = vector.shape_cast %0 : vector<1x256x16xf32> to vector<256x16xf32>
    %c16_i32 = arith.constant 16 : i32
    %2 = tpu.dynamic_rotate %1 by %c16_i32 dim 0 : vector<256x16xf32>, i32 -> vector<256x16xf32>
    %3 = tpu.iota {dimensions = array<i32: 0>} : vector<256x16xi32>
    %c16_i32_2 = arith.constant 16 : i32
    %4 = vector.broadcast %c16_i32_2 : i32 to vector<256x16xi32>
    %5 = arith.cmpi sge, %3, %4 : vector<256x16xi32>
    %cst = arith.constant 0.000000e+00 : f32
    %6 = vector.broadcast %cst : f32 to vector<256x16xf32>
    %7 = arith.select %5, %2, %6 : vector<256x16xi1>, vector<256x16xf32>
    %c0_3 = arith.constant 0 : index
    %c0_4 = arith.constant 0 : index
    %c0_5 = arith.constant 0 : index
    %8 = vector.load %arg3[%c0_3, %c0_4, %c0_5] : memref<3x16x64xf32, #tpu.memory_space<vmem>>, vector<1x16x64xf32>
    %9 = vector.shape_cast %8 : vector<1x16x64xf32> to vector<16x64xf32>
    %cst_6 = arith.constant dense<0.000000e+00> : vector<256x64xf32>
    %10 = tpu.matmul %7, %9, %cst_6 {dimension_numbers = #tpu.dot_dimension_numbers<[1], [0], [0], [1], [0, 0, 1, 1], [], []>} : vector<256x16xf32>, vector<16x64xf32>, vector<256x64xf32> -> vector<256x64xf32>
    %c1 = arith.constant 1 : index
    %c0_7 = arith.constant 0 : index
    %c0_8 = arith.constant 0 : index
    %11 = vector.load %arg3[%c1, %c0_7, %c0_8] : memref<3x16x64xf32, #tpu.memory_space<vmem>>, vector<1x16x64xf32>
    %12 = vector.shape_cast %11 : vector<1x16x64xf32> to vector<16x64xf32>
    %cst_9 = arith.constant dense<0.000000e+00> : vector<256x64xf32>
    %13 = tpu.matmul %1, %12, %cst_9 {dimension_numbers = #tpu.dot_dimension_numbers<[1], [0], [0], [1], [0, 0, 1, 1], [], []>} : vector<256x16xf32>, vector<16x64xf32>, vector<256x64xf32> -> vector<256x64xf32>
    %14 = arith.addf %10, %13 : vector<256x64xf32>
    %c240_i32 = arith.constant 240 : i32
    %15 = tpu.dynamic_rotate %1 by %c240_i32 dim 0 : vector<256x16xf32>, i32 -> vector<256x16xf32>
    %16 = tpu.iota {dimensions = array<i32: 0>} : vector<256x16xi32>
    %c240_i32_10 = arith.constant 240 : i32
    %17 = vector.broadcast %c240_i32_10 : i32 to vector<256x16xi32>
    %18 = arith.cmpi slt, %16, %17 : vector<256x16xi32>
    %cst_11 = arith.constant 0.000000e+00 : f32
    %19 = vector.broadcast %cst_11 : f32 to vector<256x16xf32>
    %20 = arith.select %18, %15, %19 : vector<256x16xi1>, vector<256x16xf32>
    %c2 = arith.constant 2 : index
    %c0_12 = arith.constant 0 : index
    %c0_13 = arith.constant 0 : index
    %21 = vector.load %arg3[%c2, %c0_12, %c0_13] : memref<3x16x64xf32, #tpu.memory_space<vmem>>, vector<1x16x64xf32>
    %22 = vector.shape_cast %21 : vector<1x16x64xf32> to vector<16x64xf32>
    %cst_14 = arith.constant dense<0.000000e+00> : vector<256x64xf32>
    %23 = tpu.matmul %20, %22, %cst_14 {dimension_numbers = #tpu.dot_dimension_numbers<[1], [0], [0], [1], [0, 0, 1, 1], [], []>} : vector<256x16xf32>, vector<16x64xf32>, vector<256x64xf32> -> vector<256x64xf32>
    %24 = arith.addf %14, %23 : vector<256x64xf32>
    %c240_i32_15 = arith.constant 240 : i32
    %25 = tpu.dynamic_rotate %24 by %c240_i32_15 dim 0 : vector<256x64xf32>, i32 -> vector<256x64xf32>
    %26 = arith.maximumf %24, %25 : vector<256x64xf32>
    %c0_16 = arith.constant 0 : index
    %c0_17 = arith.constant 0 : index
    %27 = vector.load %arg4[%c0_16, %c0_17] : memref<128x256xf32, #tpu.memory_space<vmem>>, vector<128x256xf32>
    %cst_18 = arith.constant dense<0.000000e+00> : vector<128x64xf32>
    %28 = tpu.matmul %27, %26, %cst_18 {dimension_numbers = #tpu.dot_dimension_numbers<[1], [0], [0], [1], [0, 0, 1, 1], [], []>} : vector<128x256xf32>, vector<256x64xf32>, vector<128x64xf32> -> vector<128x64xf32>
    %c0_19 = arith.constant 0 : index
    %c0_20 = arith.constant 0 : index
    %c0_21 = arith.constant 0 : index
    %29 = vector.load %arg5[%c0_19, %c0_20, %c0_21] : memref<2x64x32xf32, #tpu.memory_space<vmem>>, vector<1x64x32xf32>
    %30 = vector.shape_cast %29 : vector<1x64x32xf32> to vector<64x32xf32>
    %cst_22 = arith.constant dense<0.000000e+00> : vector<128x32xf32>
    %31 = tpu.matmul %28, %30, %cst_22 {dimension_numbers = #tpu.dot_dimension_numbers<[1], [0], [0], [1], [0, 0, 1, 1], [], []>} : vector<128x64xf32>, vector<64x32xf32>, vector<128x32xf32> -> vector<128x32xf32>
    %c1_23 = arith.constant 1 : index
    %c0_24 = arith.constant 0 : index
    %c0_25 = arith.constant 0 : index
    %32 = vector.load %arg5[%c1_23, %c0_24, %c0_25] : memref<2x64x32xf32, #tpu.memory_space<vmem>>, vector<1x64x32xf32>
    %33 = vector.shape_cast %32 : vector<1x64x32xf32> to vector<64x32xf32>
    %cst_26 = arith.constant dense<0.000000e+00> : vector<128x32xf32>
    %34 = tpu.matmul %28, %33, %cst_26 {dimension_numbers = #tpu.dot_dimension_numbers<[1], [0], [0], [1], [0, 0, 1, 1], [], []>} : vector<128x64xf32>, vector<64x32xf32>, vector<128x32xf32> -> vector<128x32xf32>
    %35 = arith.maximumf %31, %34 : vector<128x32xf32>
    %c0_27 = arith.constant 0 : index
    %c0_28 = arith.constant 0 : index
    %36 = vector.load %arg2[%c0_27, %c0_28] : memref<8x128xf32, #tpu.memory_space<vmem>>, vector<1x32xf32>
    %37 = vector.broadcast %36 : vector<1x32xf32> to vector<128x32xf32>
    %38 = arith.addf %35, %37 : vector<128x32xf32>
    %cst_29 = arith.constant 0.000000e+00 : f32
    %39 = vector.broadcast %cst_29 : f32 to vector<128x32xf32>
    %40 = arith.maximumf %38, %39 : vector<128x32xf32>
    %c16_i32_30 = arith.constant 16 : i32
    %41 = tpu.dynamic_rotate %40 by %c16_i32_30 dim 0 : vector<128x32xf32>, i32 -> vector<128x32xf32>
    %42 = tpu.iota {dimensions = array<i32: 0>} : vector<128x32xi32>
    %c16_i32_31 = arith.constant 16 : i32
    %43 = vector.broadcast %c16_i32_31 : i32 to vector<128x32xi32>
    %44 = arith.cmpi sge, %42, %43 : vector<128x32xi32>
    %cst_32 = arith.constant 0.000000e+00 : f32
    %45 = vector.broadcast %cst_32 : f32 to vector<128x32xf32>
    %46 = arith.select %44, %41, %45 : vector<128x32xi1>, vector<128x32xf32>
    %c0_33 = arith.constant 0 : index
    %c0_34 = arith.constant 0 : index
    %c0_35 = arith.constant 0 : index
    %47 = vector.load %arg6[%c0_33, %c0_34, %c0_35] : memref<3x32x64xf32, #tpu.memory_space<vmem>>, vector<1x32x64xf32>
    %48 = vector.shape_cast %47 : vector<1x32x64xf32> to vector<32x64xf32>
    %cst_36 = arith.constant dense<0.000000e+00> : vector<128x64xf32>
    %49 = tpu.matmul %46, %48, %cst_36 {dimension_numbers = #tpu.dot_dimension_numbers<[1], [0], [0], [1], [0, 0, 1, 1], [], []>} : vector<128x32xf32>, vector<32x64xf32>, vector<128x64xf32> -> vector<128x64xf32>
    %c1_37 = arith.constant 1 : index
    %c0_38 = arith.constant 0 : index
    %c0_39 = arith.constant 0 : index
    %50 = vector.load %arg6[%c1_37, %c0_38, %c0_39] : memref<3x32x64xf32, #tpu.memory_space<vmem>>, vector<1x32x64xf32>
    %51 = vector.shape_cast %50 : vector<1x32x64xf32> to vector<32x64xf32>
    %cst_40 = arith.constant dense<0.000000e+00> : vector<128x64xf32>
    %52 = tpu.matmul %40, %51, %cst_40 {dimension_numbers = #tpu.dot_dimension_numbers<[1], [0], [0], [1], [0, 0, 1, 1], [], []>} : vector<128x32xf32>, vector<32x64xf32>, vector<128x64xf32> -> vector<128x64xf32>
    %53 = arith.addf %49, %52 : vector<128x64xf32>
    %c112_i32 = arith.constant 112 : i32
    %54 = tpu.dynamic_rotate %40 by %c112_i32 dim 0 : vector<128x32xf32>, i32 -> vector<128x32xf32>
    %55 = tpu.iota {dimensions = array<i32: 0>} : vector<128x32xi32>
    %c112_i32_41 = arith.constant 112 : i32
    %56 = vector.broadcast %c112_i32_41 : i32 to vector<128x32xi32>
    %57 = arith.cmpi slt, %55, %56 : vector<128x32xi32>
    %cst_42 = arith.constant 0.000000e+00 : f32
    %58 = vector.broadcast %cst_42 : f32 to vector<128x32xf32>
    %59 = arith.select %57, %54, %58 : vector<128x32xi1>, vector<128x32xf32>
    %c2_43 = arith.constant 2 : index
    %c0_44 = arith.constant 0 : index
    %c0_45 = arith.constant 0 : index
    %60 = vector.load %arg6[%c2_43, %c0_44, %c0_45] : memref<3x32x64xf32, #tpu.memory_space<vmem>>, vector<1x32x64xf32>
    %61 = vector.shape_cast %60 : vector<1x32x64xf32> to vector<32x64xf32>
    %cst_46 = arith.constant dense<0.000000e+00> : vector<128x64xf32>
    %62 = tpu.matmul %59, %61, %cst_46 {dimension_numbers = #tpu.dot_dimension_numbers<[1], [0], [0], [1], [0, 0, 1, 1], [], []>} : vector<128x32xf32>, vector<32x64xf32>, vector<128x64xf32> -> vector<128x64xf32>
    %63 = arith.addf %53, %62 : vector<128x64xf32>
    %c112_i32_47 = arith.constant 112 : i32
    %64 = tpu.dynamic_rotate %63 by %c112_i32_47 dim 0 : vector<128x64xf32>, i32 -> vector<128x64xf32>
    %65 = arith.maximumf %63, %64 : vector<128x64xf32>
    %c0_48 = arith.constant 0 : index
    %c0_49 = arith.constant 0 : index
    %66 = vector.load %arg7[%c0_48, %c0_49] : memref<64x128xf32, #tpu.memory_space<vmem>>, vector<64x128xf32>
    %cst_50 = arith.constant dense<0.000000e+00> : vector<64x64xf32>
    %67 = tpu.matmul %66, %65, %cst_50 {dimension_numbers = #tpu.dot_dimension_numbers<[1], [0], [0], [1], [0, 0, 1, 1], [], []>} : vector<64x128xf32>, vector<128x64xf32>, vector<64x64xf32> -> vector<64x64xf32>
    %c0_51 = arith.constant 0 : index
    %c0_52 = arith.constant 0 : index
    %c0_53 = arith.constant 0 : index
    %68 = vector.load %arg8[%c0_51, %c0_52, %c0_53] : memref<2x64x32xf32, #tpu.memory_space<vmem>>, vector<1x64x32xf32>
    %69 = vector.shape_cast %68 : vector<1x64x32xf32> to vector<64x32xf32>
    %cst_54 = arith.constant dense<0.000000e+00> : vector<64x32xf32>
    %70 = tpu.matmul %67, %69, %cst_54 {dimension_numbers = #tpu.dot_dimension_numbers<[1], [0], [0], [1], [0, 0, 1, 1], [], []>} : vector<64x64xf32>, vector<64x32xf32>, vector<64x32xf32> -> vector<64x32xf32>
    %c1_55 = arith.constant 1 : index
    %c0_56 = arith.constant 0 : index
    %c0_57 = arith.constant 0 : index
    %71 = vector.load %arg8[%c1_55, %c0_56, %c0_57] : memref<2x64x32xf32, #tpu.memory_space<vmem>>, vector<1x64x32xf32>
    %72 = vector.shape_cast %71 : vector<1x64x32xf32> to vector<64x32xf32>
    %cst_58 = arith.constant dense<0.000000e+00> : vector<64x32xf32>
    %73 = tpu.matmul %67, %72, %cst_58 {dimension_numbers = #tpu.dot_dimension_numbers<[1], [0], [0], [1], [0, 0, 1, 1], [], []>} : vector<64x64xf32>, vector<64x32xf32>, vector<64x32xf32> -> vector<64x32xf32>
    %74 = arith.maximumf %70, %73 : vector<64x32xf32>
    %c1_59 = arith.constant 1 : index
    %c0_60 = arith.constant 0 : index
    %75 = vector.load %arg2[%c1_59, %c0_60] : memref<8x128xf32, #tpu.memory_space<vmem>>, vector<1x32xf32>
    %76 = vector.broadcast %75 : vector<1x32xf32> to vector<64x32xf32>
    %77 = arith.addf %74, %76 : vector<64x32xf32>
    %cst_61 = arith.constant 0.000000e+00 : f32
    %78 = vector.broadcast %cst_61 : f32 to vector<64x32xf32>
    %79 = arith.maximumf %77, %78 : vector<64x32xf32>
    %80 = vector.extract_strided_slice %79 {offsets = [0, 0], sizes = [16, 32], strides = [1, 1]} : vector<64x32xf32> to vector<16x32xf32>
    %c0_62 = arith.constant 0 : index
    %c0_63 = arith.constant 0 : index
    %c0_64 = arith.constant 0 : index
    %81 = vector.load %arg9[%c0_62, %c0_63, %c0_64] : memref<4x32x32xf32, #tpu.memory_space<vmem>>, vector<1x32x32xf32>
    %82 = vector.shape_cast %81 : vector<1x32x32xf32> to vector<32x32xf32>
    %cst_65 = arith.constant dense<0.000000e+00> : vector<16x32xf32>
    %83 = tpu.matmul %80, %82, %cst_65 {dimension_numbers = #tpu.dot_dimension_numbers<[1], [0], [0], [1], [0, 0, 1, 1], [], []>} : vector<16x32xf32>, vector<32x32xf32>, vector<16x32xf32> -> vector<16x32xf32>
    %84 = vector.extract_strided_slice %79 {offsets = [16, 0], sizes = [16, 32], strides = [1, 1]} : vector<64x32xf32> to vector<16x32xf32>
    %c1_66 = arith.constant 1 : index
    %c0_67 = arith.constant 0 : index
    %c0_68 = arith.constant 0 : index
    %85 = vector.load %arg9[%c1_66, %c0_67, %c0_68] : memref<4x32x32xf32, #tpu.memory_space<vmem>>, vector<1x32x32xf32>
    %86 = vector.shape_cast %85 : vector<1x32x32xf32> to vector<32x32xf32>
    %cst_69 = arith.constant dense<0.000000e+00> : vector<16x32xf32>
    %87 = tpu.matmul %84, %86, %cst_69 {dimension_numbers = #tpu.dot_dimension_numbers<[1], [0], [0], [1], [0, 0, 1, 1], [], []>} : vector<16x32xf32>, vector<32x32xf32>, vector<16x32xf32> -> vector<16x32xf32>
    %88 = vector.extract_strided_slice %79 {offsets = [32, 0], sizes = [16, 32], strides = [1, 1]} : vector<64x32xf32> to vector<16x32xf32>
    %c2_70 = arith.constant 2 : index
    %c0_71 = arith.constant 0 : index
    %c0_72 = arith.constant 0 : index
    %89 = vector.load %arg9[%c2_70, %c0_71, %c0_72] : memref<4x32x32xf32, #tpu.memory_space<vmem>>, vector<1x32x32xf32>
    %90 = vector.shape_cast %89 : vector<1x32x32xf32> to vector<32x32xf32>
    %cst_73 = arith.constant dense<0.000000e+00> : vector<16x32xf32>
    %91 = tpu.matmul %88, %90, %cst_73 {dimension_numbers = #tpu.dot_dimension_numbers<[1], [0], [0], [1], [0, 0, 1, 1], [], []>} : vector<16x32xf32>, vector<32x32xf32>, vector<16x32xf32> -> vector<16x32xf32>
    %92 = vector.extract_strided_slice %79 {offsets = [48, 0], sizes = [16, 32], strides = [1, 1]} : vector<64x32xf32> to vector<16x32xf32>
    %c3 = arith.constant 3 : index
    %c0_74 = arith.constant 0 : index
    %c0_75 = arith.constant 0 : index
    %93 = vector.load %arg9[%c3, %c0_74, %c0_75] : memref<4x32x32xf32, #tpu.memory_space<vmem>>, vector<1x32x32xf32>
    %94 = vector.shape_cast %93 : vector<1x32x32xf32> to vector<32x32xf32>
    %cst_76 = arith.constant dense<0.000000e+00> : vector<16x32xf32>
    %95 = tpu.matmul %92, %94, %cst_76 {dimension_numbers = #tpu.dot_dimension_numbers<[1], [0], [0], [1], [0, 0, 1, 1], [], []>} : vector<16x32xf32>, vector<32x32xf32>, vector<16x32xf32> -> vector<16x32xf32>
    %96 = arith.addf %83, %87 : vector<16x32xf32>
    %97 = arith.addf %91, %95 : vector<16x32xf32>
    %98 = arith.addf %96, %97 : vector<16x32xf32>
    %c2_77 = arith.constant 2 : index
    %c0_78 = arith.constant 0 : index
    %99 = vector.load %arg2[%c2_77, %c0_78] : memref<8x128xf32, #tpu.memory_space<vmem>>, vector<1x32xf32>
    %100 = vector.broadcast %99 : vector<1x32xf32> to vector<16x32xf32>
    %101 = arith.addf %98, %100 : vector<16x32xf32>
    %cst_79 = arith.constant 0.000000e+00 : f32
    %102 = vector.broadcast %cst_79 : f32 to vector<16x32xf32>
    %103 = arith.maximumf %101, %102 : vector<16x32xf32>
    %c0_80 = arith.constant 0 : index
    %c0_81 = arith.constant 0 : index
    %104 = vector.load %arg10[%c0_80, %c0_81] : memref<32x128xf32, #tpu.memory_space<vmem>>, vector<32x128xf32>
    %cst_82 = arith.constant dense<0.000000e+00> : vector<16x128xf32>
    %105 = tpu.matmul %103, %104, %cst_82 {dimension_numbers = #tpu.dot_dimension_numbers<[1], [0], [0], [1], [0, 0, 1, 1], [], []>} : vector<16x32xf32>, vector<32x128xf32>, vector<16x128xf32> -> vector<16x128xf32>
    %c3_83 = arith.constant 3 : index
    %c0_84 = arith.constant 0 : index
    %106 = vector.load %arg2[%c3_83, %c0_84] : memref<8x128xf32, #tpu.memory_space<vmem>>, vector<1x128xf32>
    %107 = vector.broadcast %106 : vector<1x128xf32> to vector<16x128xf32>
    %108 = arith.addf %105, %107 : vector<16x128xf32>
    %c0_85 = arith.constant 0 : index
    %c0_86 = arith.constant 0 : index
    %109 = vector.load %arg11[%c0_85, %c0_86] : memref<16x128xf32, #tpu.memory_space<vmem>>, vector<16x128xf32>
    tpu.vector_store %arg11[%c0_85, %c0_86], %108 {strides = array<i32>} : memref<16x128xf32, #tpu.memory_space<vmem>>, vector<16x128xf32>,
    return
  }
  func.func @transform_0(%arg0: i32) -> (i32, i32, i32) {
    %c0_i32 = arith.constant 0 : i32
    %c0_i32_0 = arith.constant 0 : i32
    %c0_i32_1 = arith.constant 0 : i32
    return %arg0, %c0_i32, %c0_i32_0 : i32, i32, i32
  }
  func.func @transform_1(%arg0: i32) -> (i32, i32) {
    %c0_i32 = arith.constant 0 : i32
    %c0_i32_0 = arith.constant 0 : i32
    %c0_i32_1 = arith.constant 0 : i32
    return %c0_i32, %c0_i32_0 : i32, i32
  }
  func.func @transform_2(%arg0: i32) -> (i32, i32, i32) {
    %c0_i32 = arith.constant 0 : i32
    %c0_i32_0 = arith.constant 0 : i32
    %c0_i32_1 = arith.constant 0 : i32
    %c0_i32_2 = arith.constant 0 : i32
    return %c0_i32, %c0_i32_0, %c0_i32_1 : i32, i32, i32
  }
  func.func @transform_3(%arg0: i32) -> (i32, i32) {
    %c0_i32 = arith.constant 0 : i32
    %c0_i32_0 = arith.constant 0 : i32
    %c0_i32_1 = arith.constant 0 : i32
    return %c0_i32, %c0_i32_0 : i32, i32
  }
  func.func @transform_4(%arg0: i32) -> (i32, i32, i32) {
    %c0_i32 = arith.constant 0 : i32
    %c0_i32_0 = arith.constant 0 : i32
    %c0_i32_1 = arith.constant 0 : i32
    %c0_i32_2 = arith.constant 0 : i32
    return %c0_i32, %c0_i32_0, %c0_i32_1 : i32, i32, i32
  }
  func.func @transform_5(%arg0: i32) -> (i32, i32, i32) {
    %c0_i32 = arith.constant 0 : i32
    %c0_i32_0 = arith.constant 0 : i32
    %c0_i32_1 = arith.constant 0 : i32
    %c0_i32_2 = arith.constant 0 : i32
    return %c0_i32, %c0_i32_0, %c0_i32_1 : i32, i32, i32
  }
  func.func @transform_6(%arg0: i32) -> (i32, i32) {
    %c0_i32 = arith.constant 0 : i32
    %c0_i32_0 = arith.constant 0 : i32
    %c0_i32_1 = arith.constant 0 : i32
    return %c0_i32, %c0_i32_0 : i32, i32
  }
  func.func @transform_7(%arg0: i32) -> (i32, i32, i32) {
    %c0_i32 = arith.constant 0 : i32
    %c0_i32_0 = arith.constant 0 : i32
    %c0_i32_1 = arith.constant 0 : i32
    %c0_i32_2 = arith.constant 0 : i32
    return %c0_i32, %c0_i32_0, %c0_i32_1 : i32, i32, i32
  }
  func.func @transform_8(%arg0: i32) -> (i32, i32, i32) {
    %c0_i32 = arith.constant 0 : i32
    %c0_i32_0 = arith.constant 0 : i32
    %c0_i32_1 = arith.constant 0 : i32
    %c0_i32_2 = arith.constant 0 : i32
    return %c0_i32, %c0_i32_0, %c0_i32_1 : i32, i32, i32
  }
  func.func @transform_9(%arg0: i32) -> (i32, i32) {
    %c0_i32 = arith.constant 0 : i32
    %c0_i32_0 = arith.constant 0 : i32
    %c0_i32_1 = arith.constant 0 : i32
    return %c0_i32, %c0_i32_0 : i32, i32
  }
  func.func @transform_10(%arg0: i32) -> (i32, i32) {
    %c0_i32 = arith.constant 0 : i32
    %c0_i32_0 = arith.constant 0 : i32
    return %arg0, %c0_i32 : i32, i32
  }
}

</mosaic_0001>

<llo_original>
// kernel: mul.7
$region0: #{mul.7}
  %s0 = inlined_call_operand.vmem [shape: f32[8,4], index: 0, kind: input, shape index: {}]
  %s1 = inlined_call_operand.vmem [shape: f32[32], index: 1, kind: output, shape index: {}]
  $region1: #{mul.7} parent=0
    #allocation0 [shape = 'u8[4096]{0}', space=vmem, size = 0x1000, scoped, tag = 'scoped mem for output reshape']
    %v2 = vld [vmem:[%s0] sm:$0x1]
    %vm3 = vcmask 31744
    %4 = vst.msk [vmem:[#allocation0] sm:$0x1] %vm3, %v2
    %s5 = scalar_lea.vmem %s0, 7
    %v6 = vld [vmem:[%s5] sm:$0x1]
    %7 = vrot.lane.b32.xlu0 %v6, 28
    %v8 = vpop.permute.xlu0 %7
    %vm9 = vcmask 261344
    %10 = vst.msk [vmem:[#allocation0] sm:$0x1] %vm9, %v8
    %s11 = scalar_lea.vmem %s0, 6
    %v12 = vld [vmem:[%s11] sm:$0x1]
    %13 = vrot.lane.b32.xlu0 %v12, 24
    %v14 = vpop.permute.xlu0 %13
    %vm15 = vcmask 228544
    %16 = vst.msk [vmem:[#allocation0] sm:$0x1] %vm15, %v14
    %s17 = scalar_lea.vmem %s0, 5
    %v18 = vld [vmem:[%s17] sm:$0x1]
    %19 = vrot.lane.b32.xlu0 %v18, 20
    %v20 = vpop.permute.xlu0 %19
    %vm21 = vcmask 195744
    %22 = vst.msk [vmem:[#allocation0] sm:$0x1] %vm21, %v20
    %s23 = scalar_lea.vmem %s0, 4
    %v24 = vld [vmem:[%s23] sm:$0x1]
    %25 = vrot.lane.b32.xlu0 %v24, 16
    %v26 = vpop.permute.xlu0 %25
    %vm27 = vcmask 162944
    %28 = vst.msk [vmem:[#allocation0] sm:$0x1] %vm27, %v26
    %s29 = scalar_lea.vmem %s0, 3
    %v30 = vld [vmem:[%s29] sm:$0x1]
    %31 = vrot.lane.b32.xlu0 %v30, 12
    %v32 = vpop.permute.xlu0 %31
    %vm33 = vcmask 130144
    %34 = vst.msk [vmem:[#allocation0] sm:$0x1] %vm33, %v32
    %s35 = scalar_lea.vmem %s0, 2
    %v36 = vld [vmem:[%s35] sm:$0x1]
    %37 = vrot.lane.b32.xlu0 %v36, 8
    %v38 = vpop.permute.xlu0 %37
    %vm39 = vcmask 97344
    %40 = vst.msk [vmem:[#allocation0] sm:$0x1] %vm39, %v38
    %s41 = scalar_lea.vmem %s0, 1
    %v42 = vld [vmem:[%s41] sm:$0x1]
    %43 = vrot.lane.b32.xlu0 %v42, 4
    %v44 = vpop.permute.xlu0 %43
    %vm45 = vcmask 64544
    %46 = vst.msk [vmem:[#allocation0] sm:$0x1] %vm45, %v44
    %s48 = sshllo.u32 0, 1
    %v50 = vld [vmem:[#allocation0] sm:%s48]
    %s51 = sshllo.u32 0, 1
    %52 = vst [vmem:[%s1] sm:%s51] %v50

// kernel: cnn_forward.1
$region0: #{cnn_forward.1}
  #allocation0 [shape = 'u32[]', space=smem, size = 0x4, offset = 0x4, fixed_abs, tag = 'smem constant byte address 0x4 - core index']
  #allocation1 [shape = 'u32[144,128]{1,0:T(1,128)}', space=vmem, size = 0x12000, scoped, tag = 'internal scratch']
  %s0 = inlined_call_operand.vmem [shape: f32[2,256,16], index: 0, kind: input, shape index: {}]
  %s1 = inlined_call_operand.vmem [shape: f32[8,128], index: 1, kind: input, shape index: {}]
  %s2 = inlined_call_operand.vmem [shape: f32[3,16,64], index: 2, kind: input, shape index: {}]
  %s3 = inlined_call_operand.vmem [shape: f32[128,256], index: 3, kind: input, shape index: {}]
  %s4 = inlined_call_operand.vmem [shape: f32[2,64,32], index: 4, kind: input, shape index: {}, may-alias: {4,7}]
  %s5 = inlined_call_operand.vmem [shape: f32[3,32,64], index: 5, kind: input, shape index: {}]
  %s6 = inlined_call_operand.vmem [shape: f32[64,128], index: 6, kind: input, shape index: {}]
  %s7 = inlined_call_operand.vmem [shape: f32[2,64,32], index: 7, kind: input, shape index: {}, may-alias: {4,7}]
  %s8 = inlined_call_operand.vmem [shape: f32[4,32,32], index: 8, kind: input, shape index: {}]
  %s9 = inlined_call_operand.vmem [shape: f32[32,128], index: 9, kind: input, shape index: {}]
  %s10 = inlined_call_operand.vmem [shape: f32[32,128], index: 10, kind: output, shape index: {}]
  %s11 = sld [smem:[#allocation0]]
  $region73: #{cnn_forward.1} parent=0
    _
  %s13 = ssub.s32 1, %s11
  %s14 = scalar_select 0, %s13, %s11
  loop: start=0, step=1, limit=4
  $region2: #{cnn_forward.1} parent=0 // loop_pre_header
    _
  $region3: #{cnn_forward.1} parent=0 // loop_header
    %s16 = sphi 0, %s20
    %p17 = scmp.ge.s32.totalorder %s16, 4
    %s26 = sphi 0, %s28
    %s29 = sphi 0, %s26
    %s30 = sphi 0, %s29
    %s46 = sphi 0, %s30
    %s50 = sphi 0, %s50
    %s52 = sphi 0, %s50
    %s53 = sphi 0, %s52
    %s67 = sphi 0, %s53
    %s71 = sphi 0, %s71
    %s73 = sphi 0, %s71
    %s74 = sphi 0, %s73
    %s88 = sphi 0, %s74
    %s92 = sphi 0, %s92
    %s94 = sphi 0, %s92
    %s95 = sphi 0, %s94
    %s109 = sphi 0, %s95
    %s113 = sphi 0, %s113
    %s115 = sphi 0, %s113
    %s116 = sphi 0, %s115
    %s130 = sphi 0, %s116
    %s134 = sphi 0, %s134
    %s136 = sphi 0, %s134
    %s137 = sphi 0, %s136
    %s151 = sphi 0, %s137
    %s155 = sphi 0, %s155
    %s157 = sphi 0, %s155
    %s158 = sphi 0, %s157
    %s172 = sphi 0, %s158
    %s176 = sphi 0, %s176
    %s178 = sphi 0, %s176
    %s179 = sphi 0, %s178
    %s193 = sphi 0, %s179
    %s197 = sphi 0, %s197
    %s199 = sphi 0, %s197
    %s200 = sphi 0, %s199
    %s214 = sphi 0, %s200
    %s218 = sphi 0, %s218
    %s220 = sphi 0, %s218
    %s221 = sphi 0, %s220
    %s235 = sphi 0, %s221
    %s241 = sphi 0, %s243
    %s244 = sphi 0, %s241
    %s245 = sphi 0, %s244
    %s261 = sphi 0, %s245
  $region4: #{cnn_forward.1} parent=0 // loop_header_branch
    %19 = sbr.rel (%p17) target = $region8
  $region5: #{cnn_forward.1} parent=0 // loop_body
    %s21 = ssub.s32 %s16, 1
    %s22 = ssub.s32 %s16, 2
    %s23 = sadd.s32 %s16, 1
    %s24 = ssub.s32 %s16, %s23
    %p25 = scmp.eq.s32.totalorder %s24, 0
    %s27 = sadd.s32 %s26, 1
    %s28 = scalar_select %p25, %s26, %s27
    %p31 = pneg %p25
    %p32 = scmp.eq.s32.totalorder %s16, 1
    %p33 = por %p31, %p32
    %p34 = scmp.ne.s32.totalorder %s26, %s29
    %p35 = scmp.eq.s32.totalorder %s16, 0
    %p36 = por %p34, %p35
    %p37 = scmp.ne.s32.totalorder %s26, %s29
    %p38 = scmp.eq.s32.totalorder %s21, 1
    %p39 = por %p37, %p38
    %p40 = scmp.ne.s32.totalorder %s29, %s30
    %p41 = scmp.eq.s32.totalorder %s21, 0
    %p42 = por %p40, %p41
    %p43 = scmp.ne.s32.totalorder %s29, %s30
    %p44 = scmp.eq.s32.totalorder %s22, 1
    %p45 = por %p43, %p44
    %p47 = scmp.ne.s32.totalorder %s30, %s46
    %p48 = scmp.eq.s32.totalorder %s22, 0
    %p49 = por %p47, %p48
    %s51 = sadd.s32 %s50, 1
    %p54 = scmp.eq.s32.totalorder %s16, 1
    %p55 = scmp.ne.s32.totalorder %s50, %s52
    %p56 = scmp.eq.s32.totalorder %s16, 0
    %p57 = por %p55, %p56
    %p58 = scmp.ne.s32.totalorder %s50, %s52
    %p59 = scmp.eq.s32.totalorder %s21, 1
    %p60 = por %p58, %p59
    %p61 = scmp.ne.s32.totalorder %s52, %s53
    %p62 = scmp.eq.s32.totalorder %s21, 0
    %p63 = por %p61, %p62
    %p64 = scmp.ne.s32.totalorder %s52, %s53
    %p65 = scmp.eq.s32.totalorder %s22, 1
    %p66 = por %p64, %p65
    %p68 = scmp.ne.s32.totalorder %s53, %s67
    %p69 = scmp.eq.s32.totalorder %s22, 0
    %p70 = por %p68, %p69
    %s72 = sadd.s32 %s71, 1
    %p75 = scmp.eq.s32.totalorder %s16, 1
    %p76 = scmp.ne.s32.totalorder %s71, %s73
    %p77 = scmp.eq.s32.totalorder %s16, 0
    %p78 = por %p76, %p77
    %p79 = scmp.ne.s32.totalorder %s71, %s73
    %p80 = scmp.eq.s32.totalorder %s21, 1
    %p81 = por %p79, %p80
    %p82 = scmp.ne.s32.totalorder %s73, %s74
    %p83 = scmp.eq.s32.totalorder %s21, 0
    %p84 = por %p82, %p83
    %p85 = scmp.ne.s32.totalorder %s73, %s74
    %p86 = scmp.eq.s32.totalorder %s22, 1
    %p87 = por %p85, %p86
    %p89 = scmp.ne.s32.totalorder %s74, %s88
    %p90 = scmp.eq.s32.totalorder %s22, 0
    %p91 = por %p89, %p90
    %s93 = sadd.s32 %s92, 1
    %p96 = scmp.eq.s32.totalorder %s16, 1
    %p97 = scmp.ne.s32.totalorder %s92, %s94
    %p98 = scmp.eq.s32.totalorder %s16, 0
    %p99 = por %p97, %p98
    %p100 = scmp.ne.s32.totalorder %s92, %s94
    %p101 = scmp.eq.s32.totalorder %s21, 1
    %p102 = por %p100, %p101
    %p103 = scmp.ne.s32.totalorder %s94, %s95
    %p104 = scmp.eq.s32.totalorder %s21, 0
    %p105 = por %p103, %p104
    %p106 = scmp.ne.s32.totalorder %s94, %s95
    %p107 = scmp.eq.s32.totalorder %s22, 1
    %p108 = por %p106, %p107
    %p110 = scmp.ne.s32.totalorder %s95, %s109
    %p111 = scmp.eq.s32.totalorder %s22, 0
    %p112 = por %p110, %p111
    %s114 = sadd.s32 %s113, 1
    %p117 = scmp.eq.s32.totalorder %s16, 1
    %p118 = scmp.ne.s32.totalorder %s113, %s115
    %p119 = scmp.eq.s32.totalorder %s16, 0
    %p120 = por %p118, %p119
    %p121 = scmp.ne.s32.totalorder %s113, %s115
    %p122 = scmp.eq.s32.totalorder %s21, 1
    %p123 = por %p121, %p122
    %p124 = scmp.ne.s32.totalorder %s115, %s116
    %p125 = scmp.eq.s32.totalorder %s21, 0
    %p126 = por %p124, %p125
    %p127 = scmp.ne.s32.totalorder %s115, %s116
    %p128 = scmp.eq.s32.totalorder %s22, 1
    %p129 = por %p127, %p128
    %p131 = scmp.ne.s32.totalorder %s116, %s130
    %p132 = scmp.eq.s32.totalorder %s22, 0
    %p133 = por %p131, %p132
    %s135 = sadd.s32 %s134, 1
    %p138 = scmp.eq.s32.totalorder %s16, 1
    %p139 = scmp.ne.s32.totalorder %s134, %s136
    %p140 = scmp.eq.s32.totalorder %s16, 0
    %p141 = por %p139, %p140
    %p142 = scmp.ne.s32.totalorder %s134, %s136
    %p143 = scmp.eq.s32.totalorder %s21, 1
    %p144 = por %p142, %p143
    %p145 = scmp.ne.s32.totalorder %s136, %s137
    %p146 = scmp.eq.s32.totalorder %s21, 0
    %p147 = por %p145, %p146
    %p148 = scmp.ne.s32.totalorder %s136, %s137
    %p149 = scmp.eq.s32.totalorder %s22, 1
    %p150 = por %p148, %p149
    %p152 = scmp.ne.s32.totalorder %s137, %s151
    %p153 = scmp.eq.s32.totalorder %s22, 0
    %p154 = por %p152, %p153
    %s156 = sadd.s32 %s155, 1
    %p159 = scmp.eq.s32.totalorder %s16, 1
    %p160 = scmp.ne.s32.totalorder %s155, %s157
    %p161 = scmp.eq.s32.totalorder %s16, 0
    %p162 = por %p160, %p161
    %p163 = scmp.ne.s32.totalorder %s155, %s157
    %p164 = scmp.eq.s32.totalorder %s21, 1
    %p165 = por %p163, %p164
    %p166 = scmp.ne.s32.totalorder %s157, %s158
    %p167 = scmp.eq.s32.totalorder %s21, 0
    %p168 = por %p166, %p167
    %p169 = scmp.ne.s32.totalorder %s157, %s158
    %p170 = scmp.eq.s32.totalorder %s22, 1
    %p171 = por %p169, %p170
    %p173 = scmp.ne.s32.totalorder %s158, %s172
    %p174 = scmp.eq.s32.totalorder %s22, 0
    %p175 = por %p173, %p174
    %s177 = sadd.s32 %s176, 1
    %p180 = scmp.eq.s32.totalorder %s16, 1
    %p181 = scmp.ne.s32.totalorder %s176, %s178
    %p182 = scmp.eq.s32.totalorder %s16, 0
    %p183 = por %p181, %p182
    %p184 = scmp.ne.s32.totalorder %s176, %s178
    %p185 = scmp.eq.s32.totalorder %s21, 1
    %p186 = por %p184, %p185
    %p187 = scmp.ne.s32.totalorder %s178, %s179
    %p188 = scmp.eq.s32.totalorder %s21, 0
    %p189 = por %p187, %p188
    %p190 = scmp.ne.s32.totalorder %s178, %s179
    %p191 = scmp.eq.s32.totalorder %s22, 1
    %p192 = por %p190, %p191
    %p194 = scmp.ne.s32.totalorder %s179, %s193
    %p195 = scmp.eq.s32.totalorder %s22, 0
    %p196 = por %p194, %p195
    %s198 = sadd.s32 %s197, 1
    %p201 = scmp.eq.s32.totalorder %s16, 1
    %p202 = scmp.ne.s32.totalorder %s197, %s199
    %p203 = scmp.eq.s32.totalorder %s16, 0
    %p204 = por %p202, %p203
    %p205 = scmp.ne.s32.totalorder %s197, %s199
    %p206 = scmp.eq.s32.totalorder %s21, 1
    %p207 = por %p205, %p206
    %p208 = scmp.ne.s32.totalorder %s199, %s200
    %p209 = scmp.eq.s32.totalorder %s21, 0
    %p210 = por %p208, %p209
    %p211 = scmp.ne.s32.totalorder %s199, %s200
    %p212 = scmp.eq.s32.totalorder %s22, 1
    %p213 = por %p211, %p212
    %p215 = scmp.ne.s32.totalorder %s200, %s214
    %p216 = scmp.eq.s32.totalorder %s22, 0
    %p217 = por %p215, %p216
    %s219 = sadd.s32 %s218, 1
    %p222 = scmp.eq.s32.totalorder %s16, 1
    %p223 = scmp.ne.s32.totalorder %s218, %s220
    %p224 = scmp.eq.s32.totalorder %s16, 0
    %p225 = por %p223, %p224
    %p226 = scmp.ne.s32.totalorder %s218, %s220
    %p227 = scmp.eq.s32.totalorder %s21, 1
    %p228 = por %p226, %p227
    %p229 = scmp.ne.s32.totalorder %s220, %s221
    %p230 = scmp.eq.s32.totalorder %s21, 0
    %p231 = por %p229, %p230
    %p232 = scmp.ne.s32.totalorder %s220, %s221
    %p233 = scmp.eq.s32.totalorder %s22, 1
    %p234 = por %p232, %p233
    %p236 = scmp.ne.s32.totalorder %s221, %s235
    %p237 = scmp.eq.s32.totalorder %s22, 0
    %p238 = por %p236, %p237
    %s239 = ssub.s32 %s16, %s23
    %p240 = scmp.eq.s32.totalorder %s239, 0
    %s242 = sadd.s32 %s241, 1
    %s243 = scalar_select %p240, %s241, %s242
    %p246 = pneg %p240
    %p247 = scmp.eq.s32.totalorder %s16, 1
    %p248 = por %p246, %p247
    %p249 = scmp.ne.s32.totalorder %s241, %s244
    %p250 = scmp.eq.s32.totalorder %s16, 0
    %p251 = por %p249, %p250
    %p252 = scmp.ne.s32.totalorder %s241, %s244
    %p253 = scmp.eq.s32.totalorder %s21, 1
    %p254 = por %p252, %p253
    %p255 = scmp.ne.s32.totalorder %s244, %s245
    %p256 = scmp.eq.s32.totalorder %s21, 0
    %p257 = por %p255, %p256
    %p258 = scmp.ne.s32.totalorder %s244, %s245
    %p259 = scmp.eq.s32.totalorder %s22, 1
    %p260 = por %p258, %p259
    %p262 = scmp.ne.s32.totalorder %s245, %s261
    %p263 = scmp.eq.s32.totalorder %s22, 0
    %p264 = por %p262, %p263
    %p265 = scmp.le.s32.totalorder 1, %s16
    %p266 = scmp.lt.s32.totalorder %s16, 3
    %p267 = pnand %p265, %p266
    %p268 = pneg %p267
    // Predicated region
    $region9: #{cnn_forward.1} parent=5 // pred_check
      _
    $region10: #{cnn_forward.1} parent=5 // pred_check_branch
      %270 = sbr.rel (%p267) target = $region12
    $region11: #{cnn_forward.1} parent=5 // pred_region
      %s271 = ssub.s32 %s16, 1
      // Predicated region
      $region13: #{cnn_forward.1} parent=11 // pred_check
        %p272 = pneg %p63
      $region14: #{cnn_forward.1} parent=11 // pred_check_branch
        %274 = sbr.rel (%p272) target = $region16
      $region15: #{cnn_forward.1} parent=11 // pred_region
        _
      $region16: #{cnn_forward.1} parent=11 // pred_fallthru
        _
      // Predicated region
      $region17: #{cnn_forward.1} parent=11 // pred_check
        %p275 = pneg %p84
      $region18: #{cnn_forward.1} parent=11 // pred_check_branch
        %277 = sbr.rel (%p275) target = $region20
      $region19: #{cnn_forward.1} parent=11 // pred_region
        _
      $region20: #{cnn_forward.1} parent=11 // pred_fallthru
        _
      // Predicated region
      $region21: #{cnn_forward.1} parent=11 // pred_check
        %p278 = pneg %p105
      $region22: #{cnn_forward.1} parent=11 // pred_check_branch
        %280 = sbr.rel (%p278) target = $region24
      $region23: #{cnn_forward.1} parent=11 // pred_region
        _
      $region24: #{cnn_forward.1} parent=11 // pred_fallthru
        _
      // Predicated region
      $region25: #{cnn_forward.1} parent=11 // pred_check
        %p281 = pneg %p126
      $region26: #{cnn_forward.1} parent=11 // pred_check_branch
        %283 = sbr.rel (%p281) target = $region28
      $region27: #{cnn_forward.1} parent=11 // pred_region
        _
      $region28: #{cnn_forward.1} parent=11 // pred_fallthru
        _
      // Predicated region
      $region29: #{cnn_forward.1} parent=11 // pred_check
        %p284 = pneg %p147
      $region30: #{cnn_forward.1} parent=11 // pred_check_branch
        %286 = sbr.rel (%p284) target = $region32
      $region31: #{cnn_forward.1} parent=11 // pred_region
        _
      $region32: #{cnn_forward.1} parent=11 // pred_fallthru
        _
      // Predicated region
      $region33: #{cnn_forward.1} parent=11 // pred_check
        %p287 = pneg %p168
      $region34: #{cnn_forward.1} parent=11 // pred_check_branch
        %289 = sbr.rel (%p287) target = $region36
      $region35: #{cnn_forward.1} parent=11 // pred_region
        _
      $region36: #{cnn_forward.1} parent=11 // pred_fallthru
        _
      // Predicated region
      $region37: #{cnn_forward.1} parent=11 // pred_check
        %p290 = pneg %p189
      $region38: #{cnn_forward.1} parent=11 // pred_check_branch
        %292 = sbr.rel (%p290) target = $region40
      $region39: #{cnn_forward.1} parent=11 // pred_region
        _
      $region40: #{cnn_forward.1} parent=11 // pred_fallthru
        _
      // Predicated region
      $region41: #{cnn_forward.1} parent=11 // pred_check
        %p293 = pneg %p210
      $region42: #{cnn_forward.1} parent=11 // pred_check_branch
        %295 = sbr.rel (%p293) target = $region44
      $region43: #{cnn_forward.1} parent=11 // pred_region
        _
      $region44: #{cnn_forward.1} parent=11 // pred_fallthru
        _
      // Predicated region
      $region45: #{cnn_forward.1} parent=11 // pred_check
        %p296 = pneg %p231
      $region46: #{cnn_forward.1} parent=11 // pred_check_branch
        %298 = sbr.rel (%p296) target = $region48
      $region47: #{cnn_forward.1} parent=11 // pred_region
        _
      $region48: #{cnn_forward.1} parent=11 // pred_fallthru
        _
    $region12: #{cnn_forward.1} parent=5 // pred_fallthru
      _
    %p299 = scmp.lt.s32.totalorder %s16, 2
    // Predicated region
    $region49: #{cnn_forward.1} parent=5 // pred_check
      %p300 = pneg %p299
    $region50: #{cnn_forward.1} parent=5 // pred_check_branch
      %302 = sbr.rel (%p300) target = $region52
    $region51: #{cnn_forward.1} parent=5 // pred_region
      // Predicated region
      $region53: #{cnn_forward.1} parent=51 // pred_check
        %p303 = pneg %p36
      $region54: #{cnn_forward.1} parent=51 // pred_check_branch
        %305 = sbr.rel (%p303) target = $region56
      $region55: #{cnn_forward.1} parent=51 // pred_region
        %p306 = scmp.lt.s32.totalorder %s16, 1
        %s307 = scalar_select %p306, %s16, 1
        %s308 = smul.addr %s307, 32
        %s309 = smul.addr %s308, 8
        %s310 = scalar_lea.vmem %s0, %s309
      $region56: #{cnn_forward.1} parent=51 // pred_fallthru
        _
    $region52: #{cnn_forward.1} parent=5 // pred_fallthru
      _
    %p311 = scmp.le.s32.totalorder 1, %s16
    %p312 = scmp.lt.s32.totalorder %s16, 3
    %p313 = pnand %p311, %p312
    %p314 = pneg %p313
    // Predicated region
    $region57: #{cnn_forward.1} parent=5 // pred_check
      _
    $region58: #{cnn_forward.1} parent=5 // pred_check_branch
      %316 = sbr.rel (%p313) target = $region60
    $region59: #{cnn_forward.1} parent=5 // pred_region
      %s317 = ssub.s32 %s16, 1
      %p318 = scmp.lt.s32.totalorder %s21, 1
      %s319 = scalar_select %p318, %s21, 1
      %s320 = smul.addr %s319, 32
      %s321 = smul.addr %s320, 8
      %s322 = scalar_lea.vmem %s0, %s321
      %p323 = pneg %p42
      %p324 = pneg %p39
      %p325 = pneg %p63
      %p326 = pneg %p60
      %p327 = pneg %p84
      %p328 = pneg %p81
      %p329 = pneg %p105
      %p330 = pneg %p102
      %p331 = pneg %p126
      %p332 = pneg %p123
      %p333 = pneg %p147
      %p334 = pneg %p144
      %p335 = pneg %p168
      %p336 = pneg %p165
      %p337 = pneg %p189
      %p338 = pneg %p186
      %p339 = pneg %p210
      %p340 = pneg %p207
      %p341 = pneg %p231
      %p342 = pneg %p228
      %p343 = pneg %p257
      %p344 = pneg %p254
      %s345 = smul.u32 2, %s21
      %p346 = scmp.lt.s32.totalorder %s345, 3
      %s347 = scalar_select %p346, %s345, 3
      %s348 = smul.addr %s347, 8
      %s349 = scalar_lea.vmem %s10, %s348
      %p350 = scmp.lt.s32.totalorder %s21, 1
      %s351 = scalar_select %p350, %s21, 1
      %s352 = smul.addr %s351, 32
      %s353 = smul.addr %s352, 8
      %s354 = scalar_lea.vmem %s0, %s353
      %s355 = smul.u32 2, %s21
      %p356 = scmp.lt.s32.totalorder %s355, 3
      %s357 = scalar_select %p356, %s355, 3
      %s358 = smul.addr %s357, 8
      %s359 = scalar_lea.vmem %s10, %s358
      %s360 = smul.u32 2, %s21
      %v361 = vld [vmem:[%s354] sm:$0xff]
      %v362 = vld [vmem:[%s354 + $0x8] sm:$0xff]
      %v363 = vld [vmem:[%s354 + $0x10] sm:$0xff]
      %v364 = vld [vmem:[%s354 + $0x18] sm:$0xff]
      %v365 = vld [vmem:[%s354 + $0x20] sm:$0xff]
      %v366 = vld [vmem:[%s354 + $0x28] sm:$0xff]
      %v367 = vld [vmem:[%s354 + $0x30] sm:$0xff]
      %v368 = vld [vmem:[%s354 + $0x38] sm:$0xff]
      %v369 = vld [vmem:[%s354 + $0x40] sm:$0xff]
      %v370 = vld [vmem:[%s354 + $0x48] sm:$0xff]
      %v371 = vld [vmem:[%s354 + $0x50] sm:$0xff]
      %v372 = vld [vmem:[%s354 + $0x58] sm:$0xff]
      %v373 = vld [vmem:[%s354 + $0x60] sm:$0xff]
      %v374 = vld [vmem:[%s354 + $0x68] sm:$0xff]
      %v375 = vld [vmem:[%s354 + $0x70] sm:$0xff]
      %v376 = vld [vmem:[%s354 + $0x78] sm:$0xff]
      %v377 = vld [vmem:[%s354 + $0x80] sm:$0xff]
      %v378 = vld [vmem:[%s354 + $0x88] sm:$0xff]
      %v379 = vld [vmem:[%s354 + $0x90] sm:$0xff]
      %v380 = vld [vmem:[%s354 + $0x98] sm:$0xff]
      %v381 = vld [vmem:[%s354 + $0xa0] sm:$0xff]
      %v382 = vld [vmem:[%s354 + $0xa8] sm:$0xff]
      %v383 = vld [vmem:[%s354 + $0xb0] sm:$0xff]
      %v384 = vld [vmem:[%s354 + $0xb8] sm:$0xff]
      %v385 = vld [vmem:[%s354 + $0xc0] sm:$0xff]
      %v386 = vld [vmem:[%s354 + $0xc8] sm:$0xff]
      %v387 = vld [vmem:[%s354 + $0xd0] sm:$0xff]
      %v388 = vld [vmem:[%s354 + $0xd8] sm:$0xff]
      %v389 = vld [vmem:[%s354 + $0xe0] sm:$0xff]
      %v390 = vld [vmem:[%s354 + $0xe8] sm:$0xff]
      %v391 = vld [vmem:[%s354 + $0xf0] sm:$0xff]
      %v392 = vld [vmem:[%s354 + $0xf8] sm:$0xff]
      %v393 = vlaneseq
      %v394 = vshrl.u32 %v393, 7
      %v395 = vadd.s32 %v394, 8
      %v396 = vadd.s32 %v394, 16
      %v397 = vadd.s32 %v394, 24
      %v398 = vadd.s32 %v394, 32
      %v399 = vadd.s32 %v394, 40
      %v400 = vadd.s32 %v394, 48
      %v401 = vadd.s32 %v394, 56
      %v402 = vadd.s32 %v394, 64
      %v403 = vadd.s32 %v394, 72
      %v404 = vadd.s32 %v394, 80
      %v405 = vadd.s32 %v394, 88
      %v406 = vadd.s32 %v394, 96
      %v407 = vadd.s32 %v394, 104
      %v408 = vadd.s32 %v394, 112
      %v409 = vadd.s32 %v394, 120
      %v410 = vadd.s32 %v394, 128
      %v411 = vadd.s32 %v394, 136
      %v412 = vadd.s32 %v394, 144
      %v413 = vadd.s32 %v394, 152
      %v414 = vadd.s32 %v394, 160
      %v415 = vadd.s32 %v394, 168
      %v416 = vadd.s32 %v394, 176
      %v417 = vadd.s32 %v394, 184
      %v418 = vadd.s32 %v394, 192
      %v419 = vadd.s32 %v394, 200
      %v420 = vadd.s32 %v394, 208
      %v421 = vadd.s32 %v394, 216
      %v422 = vadd.s32 %v394, 224
      %v423 = vadd.s32 %v394, 232
      %v424 = vadd.s32 %v394, 240
      %v425 = vadd.s32 %v394, 248
      %vm426 = vcmp.ge.s32.totalorder %v394, 16
      %vm427 = vcmp.ge.s32.totalorder %v395, 16
      %vm428 = vcmp.ge.s32.totalorder %v396, 16
      %vm429 = vcmp.ge.s32.totalorder %v397, 16
      %vm430 = vcmp.ge.s32.totalorder %v398, 16
      %vm431 = vcmp.ge.s32.totalorder %v399, 16
      %vm432 = vcmp.ge.s32.totalorder %v400, 16
      %vm433 = vcmp.ge.s32.totalorder %v401, 16
      %vm434 = vcmp.ge.s32.totalorder %v402, 16
      %vm435 = vcmp.ge.s32.totalorder %v403, 16
      %vm436 = vcmp.ge.s32.totalorder %v404, 16
      %vm437 = vcmp.ge.s32.totalorder %v405, 16
      %vm438 = vcmp.ge.s32.totalorder %v406, 16
      %vm439 = vcmp.ge.s32.totalorder %v407, 16
      %vm440 = vcmp.ge.s32.totalorder %v408, 16
      %vm441 = vcmp.ge.s32.totalorder %v409, 16
      %vm442 = vcmp.ge.s32.totalorder %v410, 16
      %vm443 = vcmp.ge.s32.totalorder %v411, 16
      %vm444 = vcmp.ge.s32.totalorder %v412, 16
      %vm445 = vcmp.ge.s32.totalorder %v413, 16
      %vm446 = vcmp.ge.s32.totalorder %v414, 16
      %vm447 = vcmp.ge.s32.totalorder %v415, 16
      %vm448 = vcmp.ge.s32.totalorder %v416, 16
      %vm449 = vcmp.ge.s32.totalorder %v417, 16
      %vm450 = vcmp.ge.s32.totalorder %v418, 16
      %vm451 = vcmp.ge.s32.totalorder %v419, 16
      %vm452 = vcmp.ge.s32.totalorder %v420, 16
      %vm453 = vcmp.ge.s32.totalorder %v421, 16
      %vm454 = vcmp.ge.s32.totalorder %v422, 16
      %vm455 = vcmp.ge.s32.totalorder %v423, 16
      %vm456 = vcmp.ge.s32.totalorder %v424, 16
      %vm457 = vcmp.ge.s32.totalorder %v425, 16
      %v458 = vsel %vm426, %v391, 0.0
      %v459 = vsel %vm427, %v392, 0.0
      %v460 = vsel %vm428, %v361, 0.0
      %v461 = vsel %vm429, %v362, 0.0
      %v462 = vsel %vm430, %v363, 0.0
      %v463 = vsel %vm431, %v364, 0.0
      %v464 = vsel %vm432, %v365, 0.0
      %v465 = vsel %vm433, %v366, 0.0
      %v466 = vsel %vm434, %v367, 0.0
      %v467 = vsel %vm435, %v368, 0.0
      %v468 = vsel %vm436, %v369, 0.0
      %v469 = vsel %vm437, %v370, 0.0
      %v470 = vsel %vm438, %v371, 0.0
      %v471 = vsel %vm439, %v372, 0.0
      %v472 = vsel %vm440, %v373, 0.0
      %v473 = vsel %vm441, %v374, 0.0
      %v474 = vsel %vm442, %v375, 0.0
      %v475 = vsel %vm443, %v376, 0.0
      %v476 = vsel %vm444, %v377, 0.0
      %v477 = vsel %vm445, %v378, 0.0
      %v478 = vsel %vm446, %v379, 0.0
      %v479 = vsel %vm447, %v380, 0.0
      %v480 = vsel %vm448, %v381, 0.0
      %v481 = vsel %vm449, %v382, 0.0
      %v482 = vsel %vm450, %v383, 0.0
      %v483 = vsel %vm451, %v384, 0.0
      %v484 = vsel %vm452, %v385, 0.0
      %v485 = vsel %vm453, %v386, 0.0
      %v486 = vsel %vm454, %v387, 0.0
      %v487 = vsel %vm455, %v388, 0.0
      %v488 = vsel %vm456, %v389, 0.0
      %v489 = vsel %vm457, %v390, 0.0
      %v490 = vld [vmem:[%s2] sm:$0xff]
      %v491 = vld [vmem:[%s2 + $0x8] sm:$0xff]
      %s492 = scalar_lea.vmem %s2, 16
      %v493 = vld [vmem:[%s492] sm:$0xff]
      %v494 = vld [vmem:[%s492 + $0x8] sm:$0xff]
      %vm495 = vcmask 130048
      %v497 = vsel %vm495, %v361, 0
      %v500 = vsel %vm495, %v362, 0
      %v503 = vsel %vm495, %v363, 0
      %v506 = vsel %vm495, %v364, 0
      %v509 = vsel %vm495, %v365, 0
      %v512 = vsel %vm495, %v366, 0
      %v515 = vsel %vm495, %v367, 0
      %v518 = vsel %vm495, %v368, 0
      %v521 = vsel %vm495, %v369, 0
      %v524 = vsel %vm495, %v370, 0
      %v527 = vsel %vm495, %v371, 0
      %v530 = vsel %vm495, %v372, 0
      %v533 = vsel %vm495, %v373, 0
      %v536 = vsel %vm495, %v374, 0
      %v539 = vsel %vm495, %v375, 0
      %v542 = vsel %vm495, %v376, 0
      %v545 = vsel %vm495, %v377, 0
      %v548 = vsel %vm495, %v378, 0
      %v551 = vsel %vm495, %v379, 0
      %v554 = vsel %vm495, %v380, 0
      %v557 = vsel %vm495, %v381, 0
      %v560 = vsel %vm495, %v382, 0
      %v563 = vsel %vm495, %v383, 0
      %v566 = vsel %vm495, %v384, 0
      %v569 = vsel %vm495, %v385, 0
      %v572 = vsel %vm495, %v386, 0
      %v575 = vsel %vm495, %v387, 0
      %v578 = vsel %vm495, %v388, 0
      %v581 = vsel %vm495, %v389, 0
      %v584 = vsel %vm495, %v390, 0
      %v587 = vsel %vm495, %v391, 0
      %v590 = vsel %vm495, %v392, 0
      %592 = vmatprep.subr.mxu0 0.0
      %593 = vmatpush1.msra.mxu0 %v493
      %594 = vmatprep.subr.mxu0 0.0
      %595 = vmatpush1.msra.mxu0 %v494
      %596 = vmatprep.subr.mxu0 0.0
      %597 = vmatpush1.msra.mxu0 0.0
      %598 = vmatprep.subr.mxu0 0.0
      %599 = vmatpush1.msra.mxu0 0.0
      %600 = vmatprep.subr.mxu0 0.0
      %601 = vmatpush1.msra.mxu0 0.0
      %602 = vmatprep.subr.mxu0 0.0
      %603 = vmatpush1.msra.mxu0 0.0
      %604 = vmatprep.subr.mxu0 0.0
      %605 = vmatpush1.msra.mxu0 0.0
      %606 = vmatprep.subr.mxu0 0.0
      %607 = vmatpush1.msra.mxu0 0.0
      %608 = vmatprep.subr.mxu0 0.0
      %609 = vmatpush1.msra.mxu0 0.0
      %610 = vmatprep.subr.mxu0 0.0
      %611 = vmatpush1.msra.mxu0 0.0
      %612 = vmatprep.subr.mxu0 0.0
      %613 = vmatpush1.msra.mxu0 0.0
      %614 = vmatprep.subr.mxu0 0.0
      %615 = vmatpush1.msra.mxu0 0.0
      %616 = vmatprep.subr.mxu0 0.0
      %617 = vmatpush1.msra.mxu0 0.0
      %618 = vmatprep.subr.mxu0 0.0
      %619 = vmatpush1.msra.mxu0 0.0
      %620 = vmatprep.subr.mxu0 0.0
      %621 = vmatpush1.msra.mxu0 0.0
      %622 = vmatprep.subr.mxu0 0.0
      %623 = vmatpush1.msra.mxu0 0.0
      %624 = vmatprep.subr.mxu0 0.0
      %625 = vmatpush1.msra.mxu0 0.0
      %626 = vmatprep.subr.mxu0 0.0
      %627 = vmatpush1.msra.mxu0 0.0
      %628 = vmatprep.subr.mxu0 0.0
      %629 = vmatpush1.msra.mxu0 0.0
      %630 = vmatprep.subr.mxu0 0.0
      %631 = vmatpush1.msra.mxu0 0.0
      %632 = vmatprep.subr.mxu0 0.0
      %633 = vmatpush1.msra.mxu0 0.0
      %634 = vmatprep.subr.mxu0 0.0
      %635 = vmatpush1.msra.mxu0 0.0
      %636 = vmatprep.subr.mxu0 0.0
      %637 = vmatpush1.msra.mxu0 0.0
      %638 = vmatprep.subr.mxu0 0.0
      %639 = vmatpush1.msra.mxu0 0.0
      %640 = vmatprep.subr.mxu0 0.0
      %641 = vmatpush1.msra.mxu0 0.0
      %642 = vmatprep.subr.mxu0 0.0
      %643 = vmatpush1.msra.mxu0 0.0
      %644 = vmatprep.subr.mxu0 0.0
      %645 = vmatpush1.msra.mxu0 0.0
      %646 = vmatprep.subr.mxu0 0.0
      %647 = vmatpush1.msra.mxu0 0.0
      %648 = vmatprep.subr.mxu0 0.0
      %649 = vmatpush1.msra.mxu0 0.0
      %650 = vmatprep.subr.mxu0 0.0
      %651 = vmatpush1.msra.mxu0 0.0
      %652 = vmatprep.subr.mxu0 0.0
      %653 = vmatpush1.msra.mxu0 0.0
      %654 = vmatprep.subr.mxu0 0.0
      %655 = vmatpush1.msra.mxu0 0.0
      %656 = vmatprep.mubr.f32.mxu0 0.0
      %657 = vmatmul.mubr.f32.gmra.mrb[0].mxu0 %v497
      %v658 = vpop.f32.mrb[0].mxu0
      %v659 = vadd.f32 0.0, %v658
      %v660 = vpop.f32.mrb[0].mxu0
      %661 = vmatprep.mubr.f32.mxu0 0.0
      %662 = vmatmul.mubr.f32.gmra.mrb[0].mxu0 %v500
      %v663 = vpop.f32.mrb[0].mxu0
      %v664 = vadd.f32 0.0, %v663
      %v665 = vpop.f32.mrb[0].mxu0
      %666 = vmatprep.mubr.f32.mxu0 0.0
      %667 = vmatmul.mubr.f32.gmra.mrb[0].mxu0 %v503
      %v668 = vpop.f32.mrb[0].mxu0
      %v669 = vadd.f32 0.0, %v668
      %v670 = vpop.f32.mrb[0].mxu0
      %671 = vmatprep.mubr.f32.mxu0 0.0
      %672 = vmatmul.mubr.f32.gmra.mrb[0].mxu0 %v506
      %v673 = vpop.f32.mrb[0].mxu0
      %v674 = vadd.f32 0.0, %v673
      %v675 = vpop.f32.mrb[0].mxu0
      %676 = vmatprep.mubr.f32.mxu0 0.0
      %677 = vmatmul.mubr.f32.gmra.mrb[0].mxu0 %v509
      %v678 = vpop.f32.mrb[0].mxu0
      %v679 = vadd.f32 0.0, %v678
      %v680 = vpop.f32.mrb[0].mxu0
      %681 = vmatprep.mubr.f32.mxu0 0.0
      %682 = vmatmul.mubr.f32.gmra.mrb[0].mxu0 %v512
      %v683 = vpop.f32.mrb[0].mxu0
      %v684 = vadd.f32 0.0, %v683
      %v685 = vpop.f32.mrb[0].mxu0
      %686 = vmatprep.mubr.f32.mxu0 0.0
      %687 = vmatmul.mubr.f32.gmra.mrb[0].mxu0 %v515
      %v688 = vpop.f32.mrb[0].mxu0
      %v689 = vadd.f32 0.0, %v688
      %v690 = vpop.f32.mrb[0].mxu0
      %691 = vmatprep.mubr.f32.mxu0 0.0
      %692 = vmatmul.mubr.f32.gmra.mrb[0].mxu0 %v518
      %v693 = vpop.f32.mrb[0].mxu0
      %v694 = vadd.f32 0.0, %v693
      %v695 = vpop.f32.mrb[0].mxu0
      %696 = vmatprep.mubr.f32.mxu0 0.0
      %697 = vmatmul.mubr.f32.gmra.mrb[0].mxu0 %v521
      %v698 = vpop.f32.mrb[0].mxu0
      %v699 = vadd.f32 0.0, %v698
      %v700 = vpop.f32.mrb[0].mxu0
      %701 = vmatprep.mubr.f32.mxu0 0.0
      %702 = vmatmul.mubr.f32.gmra.mrb[0].mxu0 %v524
      %v703 = vpop.f32.mrb[0].mxu0
      %v704 = vadd.f32 0.0, %v703
      %v705 = vpop.f32.mrb[0].mxu0
      %706 = vmatprep.mubr.f32.mxu0 0.0
      %707 = vmatmul.mubr.f32.gmra.mrb[0].mxu0 %v527
      %v708 = vpop.f32.mrb[0].mxu0
      %v709 = vadd.f32 0.0, %v708
      %v710 = vpop.f32.mrb[0].mxu0
      %711 = vmatprep.mubr.f32.mxu0 0.0
      %712 = vmatmul.mubr.f32.gmra.mrb[0].mxu0 %v530
      %v713 = vpop.f32.mrb[0].mxu0
      %v714 = vadd.f32 0.0, %v713
      %v715 = vpop.f32.mrb[0].mxu0
      %716 = vmatprep.mubr.f32.mxu0 0.0
      %717 = vmatmul.mubr.f32.gmra.mrb[0].mxu0 %v533
      %v718 = vpop.f32.mrb[0].mxu0
      %v719 = vadd.f32 0.0, %v718
      %v720 = vpop.f32.mrb[0].mxu0
      %721 = vmatprep.mubr.f32.mxu0 0.0
      %722 = vmatmul.mubr.f32.gmra.mrb[0].mxu0 %v536
      %v723 = vpop.f32.mrb[0].mxu0
      %v724 = vadd.f32 0.0, %v723
      %v725 = vpop.f32.mrb[0].mxu0
      %726 = vmatprep.mubr.f32.mxu0 0.0
      %727 = vmatmul.mubr.f32.gmra.mrb[0].mxu0 %v539
      %v728 = vpop.f32.mrb[0].mxu0
      %v729 = vadd.f32 0.0, %v728
      %v730 = vpop.f32.mrb[0].mxu0
      %731 = vmatprep.mubr.f32.mxu0 0.0
      %732 = vmatmul.mubr.f32.gmra.mrb[0].mxu0 %v542
      %v733 = vpop.f32.mrb[0].mxu0
      %v734 = vadd.f32 0.0, %v733
      %v735 = vpop.f32.mrb[0].mxu0
      %736 = vmatprep.mubr.f32.mxu0 0.0
      %737 = vmatmul.mubr.f32.gmra.mrb[0].mxu0 %v545
      %v738 = vpop.f32.mrb[0].mxu0
      %v739 = vadd.f32 0.0, %v738
      %v740 = vpop.f32.mrb[0].mxu0
      %741 = vmatprep.mubr.f32.mxu0 0.0
      %742 = vmatmul.mubr.f32.gmra.mrb[0].mxu0 %v548
      %v743 = vpop.f32.mrb[0].mxu0
      %v744 = vadd.f32 0.0, %v743
      %v745 = vpop.f32.mrb[0].mxu0
      %746 = vmatprep.mubr.f32.mxu0 0.0
      %747 = vmatmul.mubr.f32.gmra.mrb[0].mxu0 %v551
      %v748 = vpop.f32.mrb[0].mxu0
      %v749 = vadd.f32 0.0, %v748
      %v750 = vpop.f32.mrb[0].mxu0
      %751 = vmatprep.mubr.f32.mxu0 0.0
      %752 = vmatmul.mubr.f32.gmra.mrb[0].mxu0 %v554
      %v753 = vpop.f32.mrb[0].mxu0
      %v754 = vadd.f32 0.0, %v753
      %v755 = vpop.f32.mrb[0].mxu0
      %756 = vmatprep.mubr.f32.mxu0 0.0
      %757 = vmatmul.mubr.f32.gmra.mrb[0].mxu0 %v557
      %v758 = vpop.f32.mrb[0].mxu0
      %v759 = vadd.f32 0.0, %v758
      %v760 = vpop.f32.mrb[0].mxu0
      %761 = vmatprep.mubr.f32.mxu0 0.0
      %762 = vmatmul.mubr.f32.gmra.mrb[0].mxu0 %v560
      %v763 = vpop.f32.mrb[0].mxu0
      %v764 = vadd.f32 0.0, %v763
      %v765 = vpop.f32.mrb[0].mxu0
      %766 = vmatprep.mubr.f32.mxu0 0.0
      %767 = vmatmul.mubr.f32.gmra.mrb[0].mxu0 %v563
      %v768 = vpop.f32.mrb[0].mxu0
      %v769 = vadd.f32 0.0, %v768
      %v770 = vpop.f32.mrb[0].mxu0
      %771 = vmatprep.mubr.f32.mxu0 0.0
      %772 = vmatmul.mubr.f32.gmra.mrb[0].mxu0 %v566
      %v773 = vpop.f32.mrb[0].mxu0
      %v774 = vadd.f32 0.0, %v773
      %v775 = vpop.f32.mrb[0].mxu0
      %776 = vmatprep.mubr.f32.mxu0 0.0
      %777 = vmatmul.mubr.f32.gmra.mrb[0].mxu0 %v569
      %v778 = vpop.f32.mrb[0].mxu0
      %v779 = vadd.f32 0.0, %v778
      %v780 = vpop.f32.mrb[0].mxu0
      %781 = vmatprep.mubr.f32.mxu0 0.0
      %782 = vmatmul.mubr.f32.gmra.mrb[0].mxu0 %v572
      %v783 = vpop.f32.mrb[0].mxu0
      %v784 = vadd.f32 0.0, %v783
      %v785 = vpop.f32.mrb[0].mxu0
      %786 = vmatprep.mubr.f32.mxu0 0.0
      %787 = vmatmul.mubr.f32.gmra.mrb[0].mxu0 %v575
      %v788 = vpop.f32.mrb[0].mxu0
      %v789 = vadd.f32 0.0, %v788
      %v790 = vpop.f32.mrb[0].mxu0
      %791 = vmatprep.mubr.f32.mxu0 0.0
      %792 = vmatmul.mubr.f32.gmra.mrb[0].mxu0 %v578
      %v793 = vpop.f32.mrb[0].mxu0
      %v794 = vadd.f32 0.0, %v793
      %v795 = vpop.f32.mrb[0].mxu0
      %796 = vmatprep.mubr.f32.mxu0 0.0
      %797 = vmatmul.mubr.f32.gmra.mrb[0].mxu0 %v581
      %v798 = vpop.f32.mrb[0].mxu0
      %v799 = vadd.f32 0.0, %v798
      %v800 = vpop.f32.mrb[0].mxu0
      %801 = vmatprep.mubr.f32.mxu0 0.0
      %802 = vmatmul.mubr.f32.gmra.mrb[0].mxu0 %v584
      %v803 = vpop.f32.mrb[0].mxu0
      %v804 = vadd.f32 0.0, %v803
      %v805 = vpop.f32.mrb[0].mxu0
      %806 = vmatprep.mubr.f32.mxu0 0.0
      %807 = vmatmul.mubr.f32.gmra.mrb[0].mxu0 %v587
      %v808 = vpop.f32.mrb[0].mxu0
      %v809 = vadd.f32 0.0, %v808
      %v810 = vpop.f32.mrb[0].mxu0
      %811 = vmatprep.mubr.f32.mxu0 0.0
      %812 = vmatmul.mubr.f32.gmra.mrb[0].mxu0 %v590
      %v813 = vpop.f32.mrb[0].mxu0
      %v814 = vadd.f32 0.0, %v813
      %v815 = vpop.f32.mrb[0].mxu0
      %816 = vdwg.mxu0
      %v818 = vsel %vm495, %v458, 0
      %v821 = vsel %vm495, %v459, 0
      %v824 = vsel %vm495, %v460, 0
      %v827 = vsel %vm495, %v461, 0
      %v830 = vsel %vm495, %v462, 0
      %v833 = vsel %vm495, %v463, 0
      %v836 = vsel %vm495, %v464, 0
      %v839 = vsel %vm495, %v465, 0
      %v842 = vsel %vm495, %v466, 0
      %v845 = vsel %vm495, %v467, 0
      %v848 = vsel %vm495, %v468, 0
      %v851 = vsel %vm495, %v469, 0
      %v854 = vsel %vm495, %v470, 0
      %v857 = vsel %vm495, %v471, 0
      %v860 = vsel %vm495, %v472, 0
      %v863 = vsel %vm495, %v473, 0
      %v866 = vsel %vm495, %v474, 0
      %v869 = vsel %vm495, %v475, 0
      %v872 = vsel %vm495, %v476, 0
      %v875 = vsel %vm495, %v477, 0
      %v878 = vsel %vm495, %v478, 0
      %v881 = vsel %vm495, %v479, 0
      %v884 = vsel %vm495, %v480, 0
      %v887 = vsel %vm495, %v481, 0
      %v890 = vsel %vm495, %v482, 0
      %v893 = vsel %vm495, %v483, 0
      %v896 = vsel %vm495, %v484, 0
      %v899 = vsel %vm495, %v485, 0
      %v902 = vsel %vm495, %v486, 0
      %v905 = vsel %vm495, %v487, 0
      %v908 = vsel %vm495, %v488, 0
      %v911 = vsel %vm495, %v489, 0
      %913 = vmatprep.subr.mxu0 0.0
      %914 = vmatpush1.msra.mxu0 %v490
      %915 = vmatprep.subr.mxu0 0.0
      %916 = vmatpush1.msra.mxu0 %v491
      %917 = vmatprep.subr.mxu0 0.0
      %918 = vmatpush1.msra.mxu0 0.0
      %919 = vmatprep.subr.mxu0 0.0
      %920 = vmatpush1.msra.mxu0 0.0
      %921 = vmatprep.subr.mxu0 0.0
      %922 = vmatpush1.msra.mxu0 0.0
      %923 = vmatprep.subr.mxu0 0.0
      %924 = vmatpush1.msra.mxu0 0.0
      %925 = vmatprep.subr.mxu0 0.0
      %926 = vmatpush1.msra.mxu0 0.0
      %927 = vmatprep.subr.mxu0 0.0
      %928 = vmatpush1.msra.mxu0 0.0
      %929 = vmatprep.subr.mxu0 0.0
      %930 = vmatpush1.msra.mxu0 0.0
      %931 = vmatprep.subr.mxu0 0.0
      %932 = vmatpush1.msra.mxu0 0.0
      %933 = vmatprep.subr.mxu0 0.0
      %934 = vmatpush1.msra.mxu0 0.0
      %935 = vmatprep.subr.mxu0 0.0
      %936 = vmatpush1.msra.mxu0 0.0
      %937 = vmatprep.subr.mxu0 0.0
      %938 = vmatpush1.msra.mxu0 0.0
      %939 = vmatprep.subr.mxu0 0.0
      %940 = vmatpush1.msra.mxu0 0.0
      %941 = vmatprep.subr.mxu0 0.0
      %942 = vmatpush1.msra.mxu0 0.0
      %943 = vmatprep.subr.mxu0 0.0
      %944 = vmatpush1.msra.mxu0 0.0
      %945 = vmatprep.subr.mxu0 0.0
      %946 = vmatpush1.msra.mxu0 0.0
      %947 = vmatprep.subr.mxu0 0.0
      %948 = vmatpush1.msra.mxu0 0.0
      %949 = vmatprep.subr.mxu0 0.0
      %950 = vmatpush1.msra.mxu0 0.0
      %951 = vmatprep.subr.mxu0 0.0
      %952 = vmatpush1.msra.mxu0 0.0
      %953 = vmatprep.subr.mxu0 0.0
      %954 = vmatpush1.msra.mxu0 0.0
      %955 = vmatprep.subr.mxu0 0.0
      %956 = vmatpush1.msra.mxu0 0.0
      %957 = vmatprep.subr.mxu0 0.0
      %958 = vmatpush1.msra.mxu0 0.0
      %959 = vmatprep.subr.mxu0 0.0
      %960 = vmatpush1.msra.mxu0 0.0
      %961 = vmatprep.subr.mxu0 0.0
      %962 = vmatpush1.msra.mxu0 0.0
      %963 = vmatprep.subr.mxu0 0.0
      %964 = vmatpush1.msra.mxu0 0.0
      %965 = vmatprep.subr.mxu0 0.0
      %966 = vmatpush1.msra.mxu0 0.0
      %967 = vmatprep.subr.mxu0 0.0
      %968 = vmatpush1.msra.mxu0 0.0
      %969 = vmatprep.subr.mxu0 0.0
      %970 = vmatpush1.msra.mxu0 0.0
      %971 = vmatprep.subr.mxu0 0.0
      %972 = vmatpush1.msra.mxu0 0.0
      %973 = vmatprep.subr.mxu0 0.0
      %974 = vmatpush1.msra.mxu0 0.0
      %975 = vmatprep.subr.mxu0 0.0
      %976 = vmatpush1.msra.mxu0 0.0
      %977 = vmatprep.mubr.f32.mxu0 0.0
      %978 = vmatmul.mubr.f32.gmra.mrb[0].mxu0 %v818
      %v979 = vpop.f32.mrb[0].mxu0
      %v980 = vadd.f32 %v659, %v979
      %v981 = vpop.f32.mrb[0].mxu0
      %982 = vmatprep.mubr.f32.mxu0 0.0
      %983 = vmatmul.mubr.f32.gmra.mrb[0].mxu0 %v821
      %v984 = vpop.f32.mrb[0].mxu0
      %v985 = vadd.f32 %v664, %v984
      %v986 = vpop.f32.mrb[0].mxu0
      %987 = vmatprep.mubr.f32.mxu0 0.0
      %988 = vmatmul.mubr.f32.gmra.mrb[0].mxu0 %v824
      %v989 = vpop.f32.mrb[0].mxu0
      %v990 = vadd.f32 %v669, %v989
      %v991 = vpop.f32.mrb[0].mxu0
      %992 = vmatprep.mubr.f32.mxu0 0.0
      %993 = vmatmul.mubr.f32.gmra.mrb[0].mxu0 %v827
      %v994 = vpop.f32.mrb[0].mxu0
      %v995 = vadd.f32 %v674, %v994
      %v996 = vpop.f32.mrb[0].mxu0
      %997 = vmatprep.mubr.f32.mxu0 0.0
      %998 = vmatmul.mubr.f32.gmra.mrb[0].mxu0 %v830
      %v999 = vpop.f32.mrb[0].mxu0
      %v1000 = vadd.f32 %v679, %v999
      %v1001 = vpop.f32.mrb[0].mxu0
      %1002 = vmatprep.mubr.f32.mxu0 0.0
      %1003 = vmatmul.mubr.f32.gmra.mrb[0].mxu0 %v833
      %v1004 = vpop.f32.mrb[0].mxu0
      %v1005 = vadd.f32 %v684, %v1004
      %v1006 = vpop.f32.mrb[0].mxu0
      %1007 = vmatprep.mubr.f32.mxu0 0.0
      %1008 = vmatmul.mubr.f32.gmra.mrb[0].mxu0 %v836
      %v1009 = vpop.f32.mrb[0].mxu0
      %v1010 = vadd.f32 %v689, %v1009
      %v1011 = vpop.f32.mrb[0].mxu0
      %1012 = vmatprep.mubr.f32.mxu0 0.0
      %1013 = vmatmul.mubr.f32.gmra.mrb[0].mxu0 %v839
      %v1014 = vpop.f32.mrb[0].mxu0
      %v1015 = vadd.f32 %v694, %v1014
      %v1016 = vpop.f32.mrb[0].mxu0
      %1017 = vmatprep.mubr.f32.mxu0 0.0
      %1018 = vmatmul.mubr.f32.gmra.mrb[0].mxu0 %v842
      %v1019 = vpop.f32.mrb[0].mxu0
      %v1020 = vadd.f32 %v699, %v1019
      %v1021 = vpop.f32.mrb[0].mxu0
      %1022 = vmatprep.mubr.f32.mxu0 0.0
      %1023 = vmatmul.mubr.f32.gmra.mrb[0].mxu0 %v845
      %v1024 = vpop.f32.mrb[0].mxu0
      %v1025 = vadd.f32 %v704, %v1024
      %v1026 = vpop.f32.mrb[0].mxu0
      %1027 = vmatprep.mubr.f32.mxu0 0.0
      %1028 = vmatmul.mubr.f32.gmra.mrb[0].mxu0 %v848
      %v1029 = vpop.f32.mrb[0].mxu0
      %v1030 = vadd.f32 %v709, %v1029
      %v1031 = vpop.f32.mrb[0].mxu0
      %1032 = vmatprep.mubr.f32.mxu0 0.0
      %1033 = vmatmul.mubr.f32.gmra.mrb[0].mxu0 %v851
      %v1034 = vpop.f32.mrb[0].mxu0
      %v1035 = vadd.f32 %v714, %v1034
      %v1036 = vpop.f32.mrb[0].mxu0
      %1037 = vmatprep.mubr.f32.mxu0 0.0
      %1038 = vmatmul.mubr.f32.gmra.mrb[0].mxu0 %v854
      %v1039 = vpop.f32.mrb[0].mxu0
      %v1040 = vadd.f32 %v719, %v1039
      %v1041 = vpop.f32.mrb[0].mxu0
      %1042 = vmatprep.mubr.f32.mxu0 0.0
      %1043 = vmatmul.mubr.f32.gmra.mrb[0].mxu0 %v857
      %v1044 = vpop.f32.mrb[0].mxu0
      %v1045 = vadd.f32 %v724, %v1044
      %v1046 = vpop.f32.mrb[0].mxu0
      %1047 = vmatprep.mubr.f32.mxu0 0.0
      %1048 = vmatmul.mubr.f32.gmra.mrb[0].mxu0 %v860
      %v1049 = vpop.f32.mrb[0].mxu0
      %v1050 = vadd.f32 %v729, %v1049
      %v1051 = vpop.f32.mrb[0].mxu0
      %1052 = vmatprep.mubr.f32.mxu0 0.0
      %1053 = vmatmul.mubr.f32.gmra.mrb[0].mxu0 %v863
      %v1054 = vpop.f32.mrb[0].mxu0
      %v1055 = vadd.f32 %v734, %v1054
      %v1056 = vpop.f32.mrb[0].mxu0
      %1057 = vmatprep.mubr.f32.mxu0 0.0
      %1058 = vmatmul.mubr.f32.gmra.mrb[0].mxu0 %v866
      %v1059 = vpop.f32.mrb[0].mxu0
      %v1060 = vadd.f32 %v739, %v1059
      %v1061 = vpop.f32.mrb[0].mxu0
      %1062 = vmatprep.mubr.f32.mxu0 0.0
      %1063 = vmatmul.mubr.f32.gmra.mrb[0].mxu0 %v869
      %v1064 = vpop.f32.mrb[0].mxu0
      %v1065 = vadd.f32 %v744, %v1064
      %v1066 = vpop.f32.mrb[0].mxu0
      %1067 = vmatprep.mubr.f32.mxu0 0.0
      %1068 = vmatmul.mubr.f32.gmra.mrb[0].mxu0 %v872
      %v1069 = vpop.f32.mrb[0].mxu0
      %v1070 = vadd.f32 %v749, %v1069
      %v1071 = vpop.f32.mrb[0].mxu0
      %1072 = vmatprep.mubr.f32.mxu0 0.0
      %1073 = vmatmul.mubr.f32.gmra.mrb[0].mxu0 %v875
      %v1074 = vpop.f32.mrb[0].mxu0
      %v1075 = vadd.f32 %v754, %v1074
      %v1076 = vpop.f32.mrb[0].mxu0
      %1077 = vmatprep.mubr.f32.mxu0 0.0
      %1078 = vmatmul.mubr.f32.gmra.mrb[0].mxu0 %v878
      %v1079 = vpop.f32.mrb[0].mxu0
      %v1080 = vadd.f32 %v759, %v1079
      %v1081 = vpop.f32.mrb[0].mxu0
      %1082 = vmatprep.mubr.f32.mxu0 0.0
      %1083 = vmatmul.mubr.f32.gmra.mrb[0].mxu0 %v881
      %v1084 = vpop.f32.mrb[0].mxu0
      %v1085 = vadd.f32 %v764, %v1084
      %v1086 = vpop.f32.mrb[0].mxu0
      %1087 = vmatprep.mubr.f32.mxu0 0.0
      %1088 = vmatmul.mubr.f32.gmra.mrb[0].mxu0 %v884
      %v1089 = vpop.f32.mrb[0].mxu0
      %v1090 = vadd.f32 %v769, %v1089
      %v1091 = vpop.f32.mrb[0].mxu0
      %1092 = vmatprep.mubr.f32.mxu0 0.0
      %1093 = vmatmul.mubr.f32.gmra.mrb[0].mxu0 %v887
      %v1094 = vpop.f32.mrb[0].mxu0
      %v1095 = vadd.f32 %v774, %v1094
      %v1096 = vpop.f32.mrb[0].mxu0
      %1097 = vmatprep.mubr.f32.mxu0 0.0
      %1098 = vmatmul.mubr.f32.gmra.mrb[0].mxu0 %v890
      %v1099 = vpop.f32.mrb[0].mxu0
      %v1100 = vadd.f32 %v779, %v1099
      %v1101 = vpop.f32.mrb[0].mxu0
      %1102 = vmatprep.mubr.f32.mxu0 0.0
      %1103 = vmatmul.mubr.f32.gmra.mrb[0].mxu0 %v893
      %v1104 = vpop.f32.mrb[0].mxu0
      %v1105 = vadd.f32 %v784, %v1104
      %v1106 = vpop.f32.mrb[0].mxu0
      %1107 = vmatprep.mubr.f32.mxu0 0.0
      %1108 = vmatmul.mubr.f32.gmra.mrb[0].mxu0 %v896
      %v1109 = vpop.f32.mrb[0].mxu0
      %v1110 = vadd.f32 %v789, %v1109
      %v1111 = vpop.f32.mrb[0].mxu0
      %1112 = vmatprep.mubr.f32.mxu0 0.0
      %1113 = vmatmul.mubr.f32.gmra.mrb[0].mxu0 %v899
      %v1114 = vpop.f32.mrb[0].mxu0
      %v1115 = vadd.f32 %v794, %v1114
      %v1116 = vpop.f32.mrb[0].mxu0
      %1117 = vmatprep.mubr.f32.mxu0 0.0
      %1118 = vmatmul.mubr.f32.gmra.mrb[0].mxu0 %v902
      %v1119 = vpop.f32.mrb[0].mxu0
      %v1120 = vadd.f32 %v799, %v1119
      %v1121 = vpop.f32.mrb[0].mxu0
      %1122 = vmatprep.mubr.f32.mxu0 0.0
      %1123 = vmatmul.mubr.f32.gmra.mrb[0].mxu0 %v905
      %v1124 = vpop.f32.mrb[0].mxu0
      %v1125 = vadd.f32 %v804, %v1124
      %v1126 = vpop.f32.mrb[0].mxu0
      %1127 = vmatprep.mubr.f32.mxu0 0.0
      %1128 = vmatmul.mubr.f32.gmra.mrb[0].mxu0 %v908
      %v1129 = vpop.f32.mrb[0].mxu0
      %v1130 = vadd.f32 %v809, %v1129
      %v1131 = vpop.f32.mrb[0].mxu0
      %1132 = vmatprep.mubr.f32.mxu0 0.0
      %1133 = vmatmul.mubr.f32.gmra.mrb[0].mxu0 %v911
      %v1134 = vpop.f32.mrb[0].mxu0
      %v1135 = vadd.f32 %v814, %v1134
      %v1136 = vpop.f32.mrb[0].mxu0
      %1137 = vdwg.mxu0
      %vm1138 = vcmp.lt.s32.totalorder %v394, 240
      %vm1139 = vcmp.lt.s32.totalorder %v395, 240
      %vm1140 = vcmp.lt.s32.totalorder %v396, 240
      %vm1141 = vcmp.lt.s32.totalorder %v397, 240
      %vm1142 = vcmp.lt.s32.totalorder %v398, 240
      %vm1143 = vcmp.lt.s32.totalorder %v399, 240
      %vm1144 = vcmp.lt.s32.totalorder %v400, 240
      %vm1145 = vcmp.lt.s32.totalorder %v401, 240
      %vm1146 = vcmp.lt.s32.totalorder %v402, 240
      %vm1147 = vcmp.lt.s32.totalorder %v403, 240
      %vm1148 = vcmp.lt.s32.totalorder %v404, 240
      %vm1149 = vcmp.lt.s32.totalorder %v405, 240
      %vm1150 = vcmp.lt.s32.totalorder %v406, 240
      %vm1151 = vcmp.lt.s32.totalorder %v407, 240
      %vm1152 = vcmp.lt.s32.totalorder %v408, 240
      %vm1153 = vcmp.lt.s32.totalorder %v409, 240
      %vm1154 = vcmp.lt.s32.totalorder %v410, 240
      %vm1155 = vcmp.lt.s32.totalorder %v411, 240
      %vm1156 = vcmp.lt.s32.totalorder %v412, 240
      %vm1157 = vcmp.lt.s32.totalorder %v413, 240
      %vm1158 = vcmp.lt.s32.totalorder %v414, 240
      %vm1159 = vcmp.lt.s32.totalorder %v415, 240
      %vm1160 = vcmp.lt.s32.totalorder %v416, 240
      %vm1161 = vcmp.lt.s32.totalorder %v417, 240
      %vm1162 = vcmp.lt.s32.totalorder %v418, 240
      %vm1163 = vcmp.lt.s32.totalorder %v419, 240
      %vm1164 = vcmp.lt.s32.totalorder %v420, 240
      %vm1165 = vcmp.lt.s32.totalorder %v421, 240
      %vm1166 = vcmp.lt.s32.totalorder %v422, 240
      %vm1167 = vcmp.lt.s32.totalorder %v423, 240
      %vm1168 = vcmp.lt.s32.totalorder %v424, 240
      %vm1169 = vcmp.lt.s32.totalorder %v425, 240
      %v1170 = vsel %vm1138, %v363, 0.0
      %v1171 = vsel %vm1139, %v364, 0.0
      %v1172 = vsel %vm1140, %v365, 0.0
      %v1173 = vsel %vm1141, %v366, 0.0
      %v1174 = vsel %vm1142, %v367, 0.0
      %v1175 = vsel %vm1143, %v368, 0.0
      %v1176 = vsel %vm1144, %v369, 0.0
      %v1177 = vsel %vm1145, %v370, 0.0
      %v1178 = vsel %vm1146, %v371, 0.0
      %v1179 = vsel %vm1147, %v372, 0.0
      %v1180 = vsel %vm1148, %v373, 0.0
      %v1181 = vsel %vm1149, %v374, 0.0
      %v1182 = vsel %vm1150, %v375, 0.0
      %v1183 = vsel %vm1151, %v376, 0.0
      %v1184 = vsel %vm1152, %v377, 0.0
      %v1185 = vsel %vm1153, %v378, 0.0
      %v1186 = vsel %vm1154, %v379, 0.0
      %v1187 = vsel %vm1155, %v380, 0.0
      %v1188 = vsel %vm1156, %v381, 0.0
      %v1189 = vsel %vm1157, %v382, 0.0
      %v1190 = vsel %vm1158, %v383, 0.0
      %v1191 = vsel %vm1159, %v384, 0.0
      %v1192 = vsel %vm1160, %v385, 0.0
      %v1193 = vsel %vm1161, %v386, 0.0
      %v1194 = vsel %vm1162, %v387, 0.0
      %v1195 = vsel %vm1163, %v388, 0.0
      %v1196 = vsel %vm1164, %v389, 0.0
      %v1197 = vsel %vm1165, %v390, 0.0
      %v1198 = vsel %vm1166, %v391, 0.0
      %v1199 = vsel %vm1167, %v392, 0.0
      %v1200 = vsel %vm1168, %v361, 0.0
      %v1201 = vsel %vm1169, %v362, 0.0
      %s1202 = scalar_lea.vmem %s2, 32
      %v1203 = vld [vmem:[%s1202] sm:$0xff]
      %v1204 = vld [vmem:[%s1202 + $0x8] sm:$0xff]
      %v1206 = vsel %vm495, %v1170, 0
      %v1209 = vsel %vm495, %v1171, 0
      %v1212 = vsel %vm495, %v1172, 0
      %v1215 = vsel %vm495, %v1173, 0
      %v1218 = vsel %vm495, %v1174, 0
      %v1221 = vsel %vm495, %v1175, 0
      %v1224 = vsel %vm495, %v1176, 0
      %v1227 = vsel %vm495, %v1177, 0
      %v1230 = vsel %vm495, %v1178, 0
      %v1233 = vsel %vm495, %v1179, 0
      %v1236 = vsel %vm495, %v1180, 0
      %v1239 = vsel %vm495, %v1181, 0
      %v1242 = vsel %vm495, %v1182, 0
      %v1245 = vsel %vm495, %v1183, 0
      %v1248 = vsel %vm495, %v1184, 0
      %v1251 = vsel %vm495, %v1185, 0
      %v1254 = vsel %vm495, %v1186, 0
      %v1257 = vsel %vm495, %v1187, 0
      %v1260 = vsel %vm495, %v1188, 0
      %v1263 = vsel %vm495, %v1189, 0
      %v1266 = vsel %vm495, %v1190, 0
      %v1269 = vsel %vm495, %v1191, 0
      %v1272 = vsel %vm495, %v1192, 0
      %v1275 = vsel %vm495, %v1193, 0
      %v1278 = vsel %vm495, %v1194, 0
      %v1281 = vsel %vm495, %v1195, 0
      %v1284 = vsel %vm495, %v1196, 0
      %v1287 = vsel %vm495, %v1197, 0
      %v1290 = vsel %vm495, %v1198, 0
      %v1293 = vsel %vm495, %v1199, 0
      %v1296 = vsel %vm495, %v1200, 0
      %v1299 = vsel %vm495, %v1201, 0
      %1301 = vmatprep.subr.mxu0 0.0
      %1302 = vmatpush1.msra.mxu0 %v1203
      %1303 = vmatprep.subr.mxu0 0.0
      %1304 = vmatpush1.msra.mxu0 %v1204
      %1305 = vmatprep.subr.mxu0 0.0
      %1306 = vmatpush1.msra.mxu0 0.0
      %1307 = vmatprep.subr.mxu0 0.0
      %1308 = vmatpush1.msra.mxu0 0.0
      %1309 = vmatprep.subr.mxu0 0.0
      %1310 = vmatpush1.msra.mxu0 0.0
      %1311 = vmatprep.subr.mxu0 0.0
      %1312 = vmatpush1.msra.mxu0 0.0
      %1313 = vmatprep.subr.mxu0 0.0
      %1314 = vmatpush1.msra.mxu0 0.0
      %1315 = vmatprep.subr.mxu0 0.0
      %1316 = vmatpush1.msra.mxu0 0.0
      %1317 = vmatprep.subr.mxu0 0.0
      %1318 = vmatpush1.msra.mxu0 0.0
      %1319 = vmatprep.subr.mxu0 0.0
      %1320 = vmatpush1.msra.mxu0 0.0
      %1321 = vmatprep.subr.mxu0 0.0
      %1322 = vmatpush1.msra.mxu0 0.0
      %1323 = vmatprep.subr.mxu0 0.0
      %1324 = vmatpush1.msra.mxu0 0.0
      %1325 = vmatprep.subr.mxu0 0.0
      %1326 = vmatpush1.msra.mxu0 0.0
      %1327 = vmatprep.subr.mxu0 0.0
      %1328 = vmatpush1.msra.mxu0 0.0
      %1329 = vmatprep.subr.mxu0 0.0
      %1330 = vmatpush1.msra.mxu0 0.0
      %1331 = vmatprep.subr.mxu0 0.0
      %1332 = vmatpush1.msra.mxu0 0.0
      %1333 = vmatprep.subr.mxu0 0.0
      %1334 = vmatpush1.msra.mxu0 0.0
      %1335 = vmatprep.subr.mxu0 0.0
      %1336 = vmatpush1.msra.mxu0 0.0
      %1337 = vmatprep.subr.mxu0 0.0
      %1338 = vmatpush1.msra.mxu0 0.0
      %1339 = vmatprep.subr.mxu0 0.0
      %1340 = vmatpush1.msra.mxu0 0.0
      %1341 = vmatprep.subr.mxu0 0.0
      %1342 = vmatpush1.msra.mxu0 0.0
      %1343 = vmatprep.subr.mxu0 0.0
      %1344 = vmatpush1.msra.mxu0 0.0
      %1345 = vmatprep.subr.mxu0 0.0
      %1346 = vmatpush1.msra.mxu0 0.0
      %1347 = vmatprep.subr.mxu0 0.0
      %1348 = vmatpush1.msra.mxu0 0.0
      %1349 = vmatprep.subr.mxu0 0.0
      %1350 = vmatpush1.msra.mxu0 0.0
      %1351 = vmatprep.subr.mxu0 0.0
      %1352 = vmatpush1.msra.mxu0 0.0
      %1353 = vmatprep.subr.mxu0 0.0
      %1354 = vmatpush1.msra.mxu0 0.0
      %1355 = vmatprep.subr.mxu0 0.0
      %1356 = vmatpush1.msra.mxu0 0.0
      %1357 = vmatprep.subr.mxu0 0.0
      %1358 = vmatpush1.msra.mxu0 0.0
      %1359 = vmatprep.subr.mxu0 0.0
      %1360 = vmatpush1.msra.mxu0 0.0
      %1361 = vmatprep.subr.mxu0 0.0
      %1362 = vmatpush1.msra.mxu0 0.0
      %1363 = vmatprep.subr.mxu0 0.0
      %1364 = vmatpush1.msra.mxu0 0.0
      %1365 = vmatprep.mubr.f32.mxu0 0.0
      %1366 = vmatmul.mubr.f32.gmra.mrb[0].mxu0 %v1206
      %v1367 = vpop.f32.mrb[0].mxu0
      %v1368 = vadd.f32 0.0, %v1367
      %v1369 = vpop.f32.mrb[0].mxu0
      %1370 = vmatprep.mubr.f32.mxu0 0.0
      %1371 = vmatmul.mubr.f32.gmra.mrb[0].mxu0 %v1209
      %v1372 = vpop.f32.mrb[0].mxu0
      %v1373 = vadd.f32 0.0, %v1372
      %v1374 = vpop.f32.mrb[0].mxu0
      %1375 = vmatprep.mubr.f32.mxu0 0.0
      %1376 = vmatmul.mubr.f32.gmra.mrb[0].mxu0 %v1212
      %v1377 = vpop.f32.mrb[0].mxu0
      %v1378 = vadd.f32 0.0, %v1377
      %v1379 = vpop.f32.mrb[0].mxu0
      %1380 = vmatprep.mubr.f32.mxu0 0.0
      %1381 = vmatmul.mubr.f32.gmra.mrb[0].mxu0 %v1215
      %v1382 = vpop.f32.mrb[0].mxu0
      %v1383 = vadd.f32 0.0, %v1382
      %v1384 = vpop.f32.mrb[0].mxu0
      %1385 = vmatprep.mubr.f32.mxu0 0.0
      %1386 = vmatmul.mubr.f32.gmra.mrb[0].mxu0 %v1218
      %v1387 = vpop.f32.mrb[0].mxu0
      %v1388 = vadd.f32 0.0, %v1387
      %v1389 = vpop.f32.mrb[0].mxu0
      %1390 = vmatprep.mubr.f32.mxu0 0.0
      %1391 = vmatmul.mubr.f32.gmra.mrb[0].mxu0 %v1221
      %v1392 = vpop.f32.mrb[0].mxu0
      %v1393 = vadd.f32 0.0, %v1392
      %v1394 = vpop.f32.mrb[0].mxu0
      %1395 = vmatprep.mubr.f32.mxu0 0.0
      %1396 = vmatmul.mubr.f32.gmra.mrb[0].mxu0 %v1224
      %v1397 = vpop.f32.mrb[0].mxu0
      %v1398 = vadd.f32 0.0, %v1397
      %v1399 = vpop.f32.mrb[0].mxu0
      %1400 = vmatprep.mubr.f32.mxu0 0.0
      %1401 = vmatmul.mubr.f32.gmra.mrb[0].mxu0 %v1227
      %v1402 = vpop.f32.mrb[0].mxu0
      %v1403 = vadd.f32 0.0, %v1402
      %v1404 = vpop.f32.mrb[0].mxu0
      %1405 = vmatprep.mubr.f32.mxu0 0.0
      %1406 = vmatmul.mubr.f32.gmra.mrb[0].mxu0 %v1230
      %v1407 = vpop.f32.mrb[0].mxu0
      %v1408 = vadd.f32 0.0, %v1407
      %v1409 = vpop.f32.mrb[0].mxu0
      %1410 = vmatprep.mubr.f32.mxu0 0.0
      %1411 = vmatmul.mubr.f32.gmra.mrb[0].mxu0 %v1233
      %v1412 = vpop.f32.mrb[0].mxu0
      %v1413 = vadd.f32 0.0, %v1412
      %v1414 = vpop.f32.mrb[0].mxu0
      %1415 = vmatprep.mubr.f32.mxu0 0.0
      %1416 = vmatmul.mubr.f32.gmra.mrb[0].mxu0 %v1236
      %v1417 = vpop.f32.mrb[0].mxu0
      %v1418 = vadd.f32 0.0, %v1417
      %v1419 = vpop.f32.mrb[0].mxu0
      %1420 = vmatprep.mubr.f32.mxu0 0.0
      %1421 = vmatmul.mubr.f32.gmra.mrb[0].mxu0 %v1239
      %v1422 = vpop.f32.mrb[0].mxu0
      %v1423 = vadd.f32 0.0, %v1422
      %v1424 = vpop.f32.mrb[0].mxu0
      %1425 = vmatprep.mubr.f32.mxu0 0.0
      %1426 = vmatmul.mubr.f32.gmra.mrb[0].mxu0 %v1242
      %v1427 = vpop.f32.mrb[0].mxu0
      %v1428 = vadd.f32 0.0, %v1427
      %v1429 = vpop.f32.mrb[0].mxu0
      %1430 = vmatprep.mubr.f32.mxu0 0.0
      %1431 = vmatmul.mubr.f32.gmra.mrb[0].mxu0 %v1245
      %v1432 = vpop.f32.mrb[0].mxu0
      %v1433 = vadd.f32 0.0, %v1432
      %v1434 = vpop.f32.mrb[0].mxu0
      %1435 = vmatprep.mubr.f32.mxu0 0.0
      %1436 = vmatmul.mubr.f32.gmra.mrb[0].mxu0 %v1248
      %v1437 = vpop.f32.mrb[0].mxu0
      %v1438 = vadd.f32 0.0, %v1437
      %v1439 = vpop.f32.mrb[0].mxu0
      %1440 = vmatprep.mubr.f32.mxu0 0.0
      %1441 = vmatmul.mubr.f32.gmra.mrb[0].mxu0 %v1251
      %v1442 = vpop.f32.mrb[0].mxu0
      %v1443 = vadd.f32 0.0, %v1442
      %v1444 = vpop.f32.mrb[0].mxu0
      %1445 = vmatprep.mubr.f32.mxu0 0.0
      %1446 = vmatmul.mubr.f32.gmra.mrb[0].mxu0 %v1254
      %v1447 = vpop.f32.mrb[0].mxu0
      %v1448 = vadd.f32 0.0, %v1447
      %v1449 = vpop.f32.mrb[0].mxu0
      %1450 = vmatprep.mubr.f32.mxu0 0.0
      %1451 = vmatmul.mubr.f32.gmra.mrb[0].mxu0 %v1257
      %v1452 = vpop.f32.mrb[0].mxu0
      %v1453 = vadd.f32 0.0, %v1452
      %v1454 = vpop.f32.mrb[0].mxu0
      %1455 = vmatprep.mubr.f32.mxu0 0.0
      %1456 = vmatmul.mubr.f32.gmra.mrb[0].mxu0 %v1260
      %v1457 = vpop.f32.mrb[0].mxu0
      %v1458 = vadd.f32 0.0, %v1457
      %v1459 = vpop.f32.mrb[0].mxu0
      %1460 = vmatprep.mubr.f32.mxu0 0.0
      %1461 = vmatmul.mubr.f32.gmra.mrb[0].mxu0 %v1263
      %v1462 = vpop.f32.mrb[0].mxu0
      %v1463 = vadd.f32 0.0, %v1462
      %v1464 = vpop.f32.mrb[0].mxu0
      %1465 = vmatprep.mubr.f32.mxu0 0.0
      %1466 = vmatmul.mubr.f32.gmra.mrb[0].mxu0 %v1266
      %v1467 = vpop.f32.mrb[0].mxu0
      %v1468 = vadd.f32 0.0, %v1467
      %v1469 = vpop.f32.mrb[0].mxu0
      %1470 = vmatprep.mubr.f32.mxu0 0.0
      %1471 = vmatmul.mubr.f32.gmra.mrb[0].mxu0 %v1269
      %v1472 = vpop.f32.mrb[0].mxu0
      %v1473 = vadd.f32 0.0, %v1472
      %v1474 = vpop.f32.mrb[0].mxu0
      %1475 = vmatprep.mubr.f32.mxu0 0.0
      %1476 = vmatmul.mubr.f32.gmra.mrb[0].mxu0 %v1272
      %v1477 = vpop.f32.mrb[0].mxu0
      %v1478 = vadd.f32 0.0, %v1477
      %v1479 = vpop.f32.mrb[0].mxu0
      %1480 = vmatprep.mubr.f32.mxu0 0.0
      %1481 = vmatmul.mubr.f32.gmra.mrb[0].mxu0 %v1275
      %v1482 = vpop.f32.mrb[0].mxu0
      %v1483 = vadd.f32 0.0, %v1482
      %v1484 = vpop.f32.mrb[0].mxu0
      %1485 = vmatprep.mubr.f32.mxu0 0.0
      %1486 = vmatmul.mubr.f32.gmra.mrb[0].mxu0 %v1278
      %v1487 = vpop.f32.mrb[0].mxu0
      %v1488 = vadd.f32 0.0, %v1487
      %v1489 = vpop.f32.mrb[0].mxu0
      %1490 = vmatprep.mubr.f32.mxu0 0.0
      %1491 = vmatmul.mubr.f32.gmra.mrb[0].mxu0 %v1281
      %v1492 = vpop.f32.mrb[0].mxu0
      %v1493 = vadd.f32 0.0, %v1492
      %v1494 = vpop.f32.mrb[0].mxu0
      %1495 = vmatprep.mubr.f32.mxu0 0.0
      %1496 = vmatmul.mubr.f32.gmra.mrb[0].mxu0 %v1284
      %v1497 = vpop.f32.mrb[0].mxu0
      %v1498 = vadd.f32 0.0, %v1497
      %v1499 = vpop.f32.mrb[0].mxu0
      %1500 = vmatprep.mubr.f32.mxu0 0.0
      %1501 = vmatmul.mubr.f32.gmra.mrb[0].mxu0 %v1287
      %v1502 = vpop.f32.mrb[0].mxu0
      %v1503 = vadd.f32 0.0, %v1502
      %v1504 = vpop.f32.mrb[0].mxu0
      %1505 = vmatprep.mubr.f32.mxu0 0.0
      %1506 = vmatmul.mubr.f32.gmra.mrb[0].mxu0 %v1290
      %v1507 = vpop.f32.mrb[0].mxu0
      %v1508 = vadd.f32 0.0, %v1507
      %v1509 = vpop.f32.mrb[0].mxu0
      %1510 = vmatprep.mubr.f32.mxu0 0.0
      %1511 = vmatmul.mubr.f32.gmra.mrb[0].mxu0 %v1293
      %v1512 = vpop.f32.mrb[0].mxu0
      %v1513 = vadd.f32 0.0, %v1512
      %v1514 = vpop.f32.mrb[0].mxu0
      %1515 = vmatprep.mubr.f32.mxu0 0.0
      %1516 = vmatmul.mubr.f32.gmra.mrb[0].mxu0 %v1296
      %v1517 = vpop.f32.mrb[0].mxu0
      %v1518 = vadd.f32 0.0, %v1517
      %v1519 = vpop.f32.mrb[0].mxu0
      %1520 = vmatprep.mubr.f32.mxu0 0.0
      %1521 = vmatmul.mubr.f32.gmra.mrb[0].mxu0 %v1299
      %v1522 = vpop.f32.mrb[0].mxu0
      %v1523 = vadd.f32 0.0, %v1522
      %v1524 = vpop.f32.mrb[0].mxu0
      %1525 = vdwg.mxu0
      %v1526 = vadd.f32 %v980, %v1368
      %v1527 = vadd.f32 %v985, %v1373
      %v1528 = vadd.f32 %v990, %v1378
      %v1529 = vadd.f32 %v995, %v1383
      %v1530 = vadd.f32 %v1000, %v1388
      %v1531 = vadd.f32 %v1005, %v1393
      %v1532 = vadd.f32 %v1010, %v1398
      %v1533 = vadd.f32 %v1015, %v1403
      %v1534 = vadd.f32 %v1020, %v1408
      %v1535 = vadd.f32 %v1025, %v1413
      %v1536 = vadd.f32 %v1030, %v1418
      %v1537 = vadd.f32 %v1035, %v1423
      %v1538 = vadd.f32 %v1040, %v1428
      %v1539 = vadd.f32 %v1045, %v1433
      %v1540 = vadd.f32 %v1050, %v1438
      %v1541 = vadd.f32 %v1055, %v1443
      %v1542 = vadd.f32 %v1060, %v1448
      %v1543 = vadd.f32 %v1065, %v1453
      %v1544 = vadd.f32 %v1070, %v1458
      %v1545 = vadd.f32 %v1075, %v1463
      %v1546 = vadd.f32 %v1080, %v1468
      %v1547 = vadd.f32 %v1085, %v1473
      %v1548 = vadd.f32 %v1090, %v1478
      %v1549 = vadd.f32 %v1095, %v1483
      %v1550 = vadd.f32 %v1100, %v1488
      %v1551 = vadd.f32 %v1105, %v1493
      %v1552 = vadd.f32 %v1110, %v1498
      %v1553 = vadd.f32 %v1115, %v1503
      %v1554 = vadd.f32 %v1120, %v1508
      %v1555 = vadd.f32 %v1125, %v1513
      %v1556 = vadd.f32 %v1130, %v1518
      %v1557 = vadd.f32 %v1135, %v1523
      %v1558 = vmax.f32 %v1526, %v1528
      %v1559 = vmax.f32 %v1527, %v1529
      %v1560 = vmax.f32 %v1528, %v1530
      %v1561 = vmax.f32 %v1529, %v1531
      %v1562 = vmax.f32 %v1530, %v1532
      %v1563 = vmax.f32 %v1531, %v1533
      %v1564 = vmax.f32 %v1532, %v1534
      %v1565 = vmax.f32 %v1533, %v1535
      %v1566 = vmax.f32 %v1534, %v1536
      %v1567 = vmax.f32 %v1535, %v1537
      %v1568 = vmax.f32 %v1536, %v1538
      %v1569 = vmax.f32 %v1537, %v1539
      %v1570 = vmax.f32 %v1538, %v1540
      %v1571 = vmax.f32 %v1539, %v1541
      %v1572 = vmax.f32 %v1540, %v1542
      %v1573 = vmax.f32 %v1541, %v1543
      %v1574 = vmax.f32 %v1542, %v1544
      %v1575 = vmax.f32 %v1543, %v1545
      %v1576 = vmax.f32 %v1544, %v1546
      %v1577 = vmax.f32 %v1545, %v1547
      %v1578 = vmax.f32 %v1546, %v1548
      %v1579 = vmax.f32 %v1547, %v1549
      %v1580 = vmax.f32 %v1548, %v1550
      %v1581 = vmax.f32 %v1549, %v1551
      %v1582 = vmax.f32 %v1550, %v1552
      %v1583 = vmax.f32 %v1551, %v1553
      %v1584 = vmax.f32 %v1552, %v1554
      %v1585 = vmax.f32 %v1553, %v1555
      %v1586 = vmax.f32 %v1554, %v1556
      %v1587 = vmax.f32 %v1555, %v1557
      %v1588 = vmax.f32 %v1556, %v1526
      %v1589 = vmax.f32 %v1557, %v1527
      %v1590 = vld [vmem:[%s3] sm:$0xff]
      %v1591 = vld [vmem:[%s3 + $0x8] sm:$0xff]
      %v1592 = vld [vmem:[%s3 + $0x10] sm:$0xff]
      %v1593 = vld [vmem:[%s3 + $0x18] sm:$0xff]
      %v1594 = vld [vmem:[%s3 + $0x20] sm:$0xff]
      %v1595 = vld [vmem:[%s3 + $0x28] sm:$0xff]
      %v1596 = vld [vmem:[%s3 + $0x30] sm:$0xff]
      %v1597 = vld [vmem:[%s3 + $0x38] sm:$0xff]
      %v1598 = vld [vmem:[%s3 + $0x40] sm:$0xff]
      %v1599 = vld [vmem:[%s3 + $0x48] sm:$0xff]
      %v1600 = vld [vmem:[%s3 + $0x50] sm:$0xff]
      %v1601 = vld [vmem:[%s3 + $0x58] sm:$0xff]
      %v1602 = vld [vmem:[%s3 + $0x60] sm:$0xff]
      %v1603 = vld [vmem:[%s3 + $0x68] sm:$0xff]
      %v1604 = vld [vmem:[%s3 + $0x70] sm:$0xff]
      %v1605 = vld [vmem:[%s3 + $0x78] sm:$0xff]
      %v1606 = vld [vmem:[%s3 + $0x80] sm:$0xff]
      %v1607 = vld [vmem:[%s3 + $0x88] sm:$0xff]
      %v1608 = vld [vmem:[%s3 + $0x90] sm:$0xff]
      %v1609 = vld [vmem:[%s3 + $0x98] sm:$0xff]
      %v1610 = vld [vmem:[%s3 + $0xa0] sm:$0xff]
      %v1611 = vld [vmem:[%s3 + $0xa8] sm:$0xff]
      %v1612 = vld [vmem:[%s3 + $0xb0] sm:$0xff]
      %v1613 = vld [vmem:[%s3 + $0xb8] sm:$0xff]
      %v1614 = vld [vmem:[%s3 + $0xc0] sm:$0xff]
      %v1615 = vld [vmem:[%s3 + $0xc8] sm:$0xff]
      %v1616 = vld [vmem:[%s3 + $0xd0] sm:$0xff]
      %v1617 = vld [vmem:[%s3 + $0xd8] sm:$0xff]
      %v1618 = vld [vmem:[%s3 + $0xe0] sm:$0xff]
      %v1619 = vld [vmem:[%s3 + $0xe8] sm:$0xff]
      %v1620 = vld [vmem:[%s3 + $0xf0] sm:$0xff]
      %v1621 = vld [vmem:[%s3 + $0xf8] sm:$0xff]
      %1622 = vmatprep.subr.mxu0 0.0
      %1623 = vmatpush1.msra.mxu0 %v1558
      %1624 = vmatprep.subr.mxu0 0.0
      %1625 = vmatpush1.msra.mxu0 %v1559
      %1626 = vmatprep.subr.mxu0 0.0
      %1627 = vmatpush1.msra.mxu0 %v1560
      %1628 = vmatprep.subr.mxu0 0.0
      %1629 = vmatpush1.msra.mxu0 %v1561
      %1630 = vmatprep.subr.mxu0 0.0
      %1631 = vmatpush1.msra.mxu0 %v1562
      %1632 = vmatprep.subr.mxu0 0.0
      %1633 = vmatpush1.msra.mxu0 %v1563
      %1634 = vmatprep.subr.mxu0 0.0
      %1635 = vmatpush1.msra.mxu0 %v1564
      %1636 = vmatprep.subr.mxu0 0.0
      %1637 = vmatpush1.msra.mxu0 %v1565
      %1638 = vmatprep.subr.mxu0 0.0
      %1639 = vmatpush1.msra.mxu0 %v1566
      %1640 = vmatprep.subr.mxu0 0.0
      %1641 = vmatpush1.msra.mxu0 %v1567
      %1642 = vmatprep.subr.mxu0 0.0
      %1643 = vmatpush1.msra.mxu0 %v1568
      %1644 = vmatprep.subr.mxu0 0.0
      %1645 = vmatpush1.msra.mxu0 %v1569
      %1646 = vmatprep.subr.mxu0 0.0
      %1647 = vmatpush1.msra.mxu0 %v1570
      %1648 = vmatprep.subr.mxu0 0.0
      %1649 = vmatpush1.msra.mxu0 %v1571
      %1650 = vmatprep.subr.mxu0 0.0
      %1651 = vmatpush1.msra.mxu0 %v1572
      %1652 = vmatprep.subr.mxu0 0.0
      %1653 = vmatpush1.msra.mxu0 %v1573
      %1654 = vmatprep.subr.mxu0 0.0
      %1655 = vmatpush1.msra.mxu0 %v1574
      %1656 = vmatprep.subr.mxu0 0.0
      %1657 = vmatpush1.msra.mxu0 %v1575
      %1658 = vmatprep.subr.mxu0 0.0
      %1659 = vmatpush1.msra.mxu0 %v1576
      %1660 = vmatprep.subr.mxu0 0.0
      %1661 = vmatpush1.msra.mxu0 %v1577
      %1662 = vmatprep.subr.mxu0 0.0
      %1663 = vmatpush1.msra.mxu0 %v1578
      %1664 = vmatprep.subr.mxu0 0.0
      %1665 = vmatpush1.msra.mxu0 %v1579
      %1666 = vmatprep.subr.mxu0 0.0
      %1667 = vmatpush1.msra.mxu0 %v1580
      %1668 = vmatprep.subr.mxu0 0.0
      %1669 = vmatpush1.msra.mxu0 %v1581
      %1670 = vmatprep.subr.mxu0 0.0
      %1671 = vmatpush1.msra.mxu0 %v1582
      %1672 = vmatprep.subr.mxu0 0.0
      %1673 = vmatpush1.msra.mxu0 %v1583
      %1674 = vmatprep.subr.mxu0 0.0
      %1675 = vmatpush1.msra.mxu0 %v1584
      %1676 = vmatprep.subr.mxu0 0.0
      %1677 = vmatpush1.msra.mxu0 %v1585
      %1678 = vmatprep.subr.mxu0 0.0
      %1679 = vmatpush1.msra.mxu0 %v1586
      %1680 = vmatprep.subr.mxu0 0.0
      %1681 = vmatpush1.msra.mxu0 %v1587
      %1682 = vmatprep.subr.mxu0 0.0
      %1683 = vmatpush1.msra.mxu0 %v1588
      %1684 = vmatprep.subr.mxu0 0.0
      %1685 = vmatpush1.msra.mxu0 %v1589
      %1686 = vmatprep.mubr.f32.mxu0 %v1591
      %1687 = vmatmul.mubr.f32.gmra.mrb[0].mxu0 %v1590
      %v1688 = vpop.f32.mrb[0].mxu0
      %v1689 = vadd.f32 0.0, %v1688
      %v1690 = vpop.f32.mrb[0].mxu0
      %1691 = vmatprep.mubr.f32.mxu0 %v1593
      %1692 = vmatmul.mubr.f32.gmra.mrb[0].mxu0 %v1592
      %v1693 = vpop.f32.mrb[0].mxu0
      %v1694 = vadd.f32 0.0, %v1693
      %v1695 = vpop.f32.mrb[0].mxu0
      %1696 = vmatprep.mubr.f32.mxu0 %v1595
      %1697 = vmatmul.mubr.f32.gmra.mrb[0].mxu0 %v1594
      %v1698 = vpop.f32.mrb[0].mxu0
      %v1699 = vadd.f32 0.0, %v1698
      %v1700 = vpop.f32.mrb[0].mxu0
      %1701 = vmatprep.mubr.f32.mxu0 %v1597
      %1702 = vmatmul.mubr.f32.gmra.mrb[0].mxu0 %v1596
      %v1703 = vpop.f32.mrb[0].mxu0
      %v1704 = vadd.f32 0.0, %v1703
      %v1705 = vpop.f32.mrb[0].mxu0
      %1706 = vmatprep.mubr.f32.mxu0 %v1599
      %1707 = vmatmul.mubr.f32.gmra.mrb[0].mxu0 %v1598
      %v1708 = vpop.f32.mrb[0].mxu0
      %v1709 = vadd.f32 0.0, %v1708
      %v1710 = vpop.f32.mrb[0].mxu0
      %1711 = vmatprep.mubr.f32.mxu0 %v1601
      %1712 = vmatmul.mubr.f32.gmra.mrb[0].mxu0 %v1600
      %v1713 = vpop.f32.mrb[0].mxu0
      %v1714 = vadd.f32 0.0, %v1713
      %v1715 = vpop.f32.mrb[0].mxu0
      %1716 = vmatprep.mubr.f32.mxu0 %v1603
      %1717 = vmatmul.mubr.f32.gmra.mrb[0].mxu0 %v1602
      %v1718 = vpop.f32.mrb[0].mxu0
      %v1719 = vadd.f32 0.0, %v1718
      %v1720 = vpop.f32.mrb[0].mxu0
      %1721 = vmatprep.mubr.f32.mxu0 %v1605
      %1722 = vmatmul.mubr.f32.gmra.mrb[0].mxu0 %v1604
      %v1723 = vpop.f32.mrb[0].mxu0
      %v1724 = vadd.f32 0.0, %v1723
      %v1725 = vpop.f32.mrb[0].mxu0
      %1726 = vmatprep.mubr.f32.mxu0 %v1607
      %1727 = vmatmul.mubr.f32.gmra.mrb[0].mxu0 %v1606
      %v1728 = vpop.f32.mrb[0].mxu0
      %v1729 = vadd.f32 0.0, %v1728
      %v1730 = vpop.f32.mrb[0].mxu0
      %1731 = vmatprep.mubr.f32.mxu0 %v1609
      %1732 = vmatmul.mubr.f32.gmra.mrb[0].mxu0 %v1608
      %v1733 = vpop.f32.mrb[0].mxu0
      %v1734 = vadd.f32 0.0, %v1733
      %v1735 = vpop.f32.mrb[0].mxu0
      %1736 = vmatprep.mubr.f32.mxu0 %v1611
      %1737 = vmatmul.mubr.f32.gmra.mrb[0].mxu0 %v1610
      %v1738 = vpop.f32.mrb[0].mxu0
      %v1739 = vadd.f32 0.0, %v1738
      %v1740 = vpop.f32.mrb[0].mxu0
      %1741 = vmatprep.mubr.f32.mxu0 %v1613
      %1742 = vmatmul.mubr.f32.gmra.mrb[0].mxu0 %v1612
      %v1743 = vpop.f32.mrb[0].mxu0
      %v1744 = vadd.f32 0.0, %v1743
      %v1745 = vpop.f32.mrb[0].mxu0
      %1746 = vmatprep.mubr.f32.mxu0 %v1615
      %1747 = vmatmul.mubr.f32.gmra.mrb[0].mxu0 %v1614
      %v1748 = vpop.f32.mrb[0].mxu0
      %v1749 = vadd.f32 0.0, %v1748
      %v1750 = vpop.f32.mrb[0].mxu0
      %1751 = vmatprep.mubr.f32.mxu0 %v1617
      %1752 = vmatmul.mubr.f32.gmra.mrb[0].mxu0 %v1616
      %v1753 = vpop.f32.mrb[0].mxu0
      %v1754 = vadd.f32 0.0, %v1753
      %v1755 = vpop.f32.mrb[0].mxu0
      %1756 = vmatprep.mubr.f32.mxu0 %v1619
      %1757 = vmatmul.mubr.f32.gmra.mrb[0].mxu0 %v1618
      %v1758 = vpop.f32.mrb[0].mxu0
      %v1759 = vadd.f32 0.0, %v1758
      %v1760 = vpop.f32.mrb[0].mxu0
      %1761 = vmatprep.mubr.f32.mxu0 %v1621
      %1762 = vmatmul.mubr.f32.gmra.mrb[0].mxu0 %v1620
      %v1763 = vpop.f32.mrb[0].mxu0
      %v1764 = vadd.f32 0.0, %v1763
      %v1765 = vpop.f32.mrb[0].mxu0
      %1766 = vdwg.mxu0
      %v1767 = vld [vmem:[%s4] sm:$0xff]
      %v1768 = vld [vmem:[%s4 + $0x8] sm:$0xff]
      %v1769 = vld [vmem:[%s4 + $0x10] sm:$0xff]
      %v1770 = vld [vmem:[%s4 + $0x18] sm:$0xff]
      %v1771 = vld [vmem:[%s4 + $0x20] sm:$0xff]
      %v1772 = vld [vmem:[%s4 + $0x28] sm:$0xff]
      %v1773 = vld [vmem:[%s4 + $0x30] sm:$0xff]
      %v1774 = vld [vmem:[%s4 + $0x38] sm:$0xff]
      %vm1775 = vcmask 523264
      %v1777 = vsel %vm1775, %v1689, 0
      %v1780 = vsel %vm1775, %v1694, 0
      %v1783 = vsel %vm1775, %v1699, 0
      %v1786 = vsel %vm1775, %v1704, 0
      %v1789 = vsel %vm1775, %v1709, 0
      %v1792 = vsel %vm1775, %v1714, 0
      %v1795 = vsel %vm1775, %v1719, 0
      %v1798 = vsel %vm1775, %v1724, 0
      %v1801 = vsel %vm1775, %v1729, 0
      %v1804 = vsel %vm1775, %v1734, 0
      %v1807 = vsel %vm1775, %v1739, 0
      %v1810 = vsel %vm1775, %v1744, 0
      %v1813 = vsel %vm1775, %v1749, 0
      %v1816 = vsel %vm1775, %v1754, 0
      %v1819 = vsel %vm1775, %v1759, 0
      %v1822 = vsel %vm1775, %v1764, 0
      %1824 = vmatprep.subr.mxu0 0.0
      %1825 = vmatpush1.msra.mxu0 %v1767
      %1826 = vmatprep.subr.mxu0 0.0
      %1827 = vmatpush1.msra.mxu0 %v1768
      %1828 = vmatprep.subr.mxu0 0.0
      %1829 = vmatpush1.msra.mxu0 %v1769
      %1830 = vmatprep.subr.mxu0 0.0
      %1831 = vmatpush1.msra.mxu0 %v1770
      %1832 = vmatprep.subr.mxu0 0.0
      %1833 = vmatpush1.msra.mxu0 %v1771
      %1834 = vmatprep.subr.mxu0 0.0
      %1835 = vmatpush1.msra.mxu0 %v1772
      %1836 = vmatprep.subr.mxu0 0.0
      %1837 = vmatpush1.msra.mxu0 %v1773
      %1838 = vmatprep.subr.mxu0 0.0
      %1839 = vmatpush1.msra.mxu0 %v1774
      %1840 = vmatprep.subr.mxu0 0.0
      %1841 = vmatpush1.msra.mxu0 0.0
      %1842 = vmatprep.subr.mxu0 0.0
      %1843 = vmatpush1.msra.mxu0 0.0
      %1844 = vmatprep.subr.mxu0 0.0
      %1845 = vmatpush1.msra.mxu0 0.0
      %1846 = vmatprep.subr.mxu0 0.0
      %1847 = vmatpush1.msra.mxu0 0.0
      %1848 = vmatprep.subr.mxu0 0.0
      %1849 = vmatpush1.msra.mxu0 0.0
      %1850 = vmatprep.subr.mxu0 0.0
      %1851 = vmatpush1.msra.mxu0 0.0
      %1852 = vmatprep.subr.mxu0 0.0
      %1853 = vmatpush1.msra.mxu0 0.0
      %1854 = vmatprep.subr.mxu0 0.0
      %1855 = vmatpush1.msra.mxu0 0.0
      %1856 = vmatprep.subr.mxu0 0.0
      %1857 = vmatpush1.msra.mxu0 0.0
      %1858 = vmatprep.subr.mxu0 0.0
      %1859 = vmatpush1.msra.mxu0 0.0
      %1860 = vmatprep.subr.mxu0 0.0
      %1861 = vmatpush1.msra.mxu0 0.0
      %1862 = vmatprep.subr.mxu0 0.0
      %1863 = vmatpush1.msra.mxu0 0.0
      %1864 = vmatprep.subr.mxu0 0.0
      %1865 = vmatpush1.msra.mxu0 0.0
      %1866 = vmatprep.subr.mxu0 0.0
      %1867 = vmatpush1.msra.mxu0 0.0
      %1868 = vmatprep.subr.mxu0 0.0
      %1869 = vmatpush1.msra.mxu0 0.0
      %1870 = vmatprep.subr.mxu0 0.0
      %1871 = vmatpush1.msra.mxu0 0.0
      %1872 = vmatprep.subr.mxu0 0.0
      %1873 = vmatpush1.msra.mxu0 0.0
      %1874 = vmatprep.subr.mxu0 0.0
      %1875 = vmatpush1.msra.mxu0 0.0
      %1876 = vmatprep.subr.mxu0 0.0
      %1877 = vmatpush1.msra.mxu0 0.0
      %1878 = vmatprep.subr.mxu0 0.0
      %1879 = vmatpush1.msra.mxu0 0.0
      %1880 = vmatprep.subr.mxu0 0.0
      %1881 = vmatpush1.msra.mxu0 0.0
      %1882 = vmatprep.subr.mxu0 0.0
      %1883 = vmatpush1.msra.mxu0 0.0
      %1884 = vmatprep.subr.mxu0 0.0
      %1885 = vmatpush1.msra.mxu0 0.0
      %1886 = vmatprep.subr.mxu0 0.0
      %1887 = vmatpush1.msra.mxu0 0.0
      %1888 = vmatprep.mubr.f32.mxu0 0.0
      %1889 = vmatmul.mubr.f32.gmra.mrb[0].mxu0 %v1777
      %v1890 = vpop.f32.mrb[0].mxu0
      %v1891 = vadd.f32 0.0, %v1890
      %v1892 = vpop.f32.mrb[0].mxu0
      %1893 = vmatprep.mubr.f32.mxu0 0.0
      %1894 = vmatmul.mubr.f32.gmra.mrb[0].mxu0 %v1780
      %v1895 = vpop.f32.mrb[0].mxu0
      %v1896 = vadd.f32 0.0, %v1895
      %v1897 = vpop.f32.mrb[0].mxu0
      %1898 = vmatprep.mubr.f32.mxu0 0.0
      %1899 = vmatmul.mubr.f32.gmra.mrb[0].mxu0 %v1783
      %v1900 = vpop.f32.mrb[0].mxu0
      %v1901 = vadd.f32 0.0, %v1900
      %v1902 = vpop.f32.mrb[0].mxu0
      %1903 = vmatprep.mubr.f32.mxu0 0.0
      %1904 = vmatmul.mubr.f32.gmra.mrb[0].mxu0 %v1786
      %v1905 = vpop.f32.mrb[0].mxu0
      %v1906 = vadd.f32 0.0, %v1905
      %v1907 = vpop.f32.mrb[0].mxu0
      %1908 = vmatprep.mubr.f32.mxu0 0.0
      %1909 = vmatmul.mubr.f32.gmra.mrb[0].mxu0 %v1789
      %v1910 = vpop.f32.mrb[0].mxu0
      %v1911 = vadd.f32 0.0, %v1910
      %v1912 = vpop.f32.mrb[0].mxu0
      %1913 = vmatprep.mubr.f32.mxu0 0.0
      %1914 = vmatmul.mubr.f32.gmra.mrb[0].mxu0 %v1792
      %v1915 = vpop.f32.mrb[0].mxu0
      %v1916 = vadd.f32 0.0, %v1915
      %v1917 = vpop.f32.mrb[0].mxu0
      %1918 = vmatprep.mubr.f32.mxu0 0.0
      %1919 = vmatmul.mubr.f32.gmra.mrb[0].mxu0 %v1795
      %v1920 = vpop.f32.mrb[0].mxu0
      %v1921 = vadd.f32 0.0, %v1920
      %v1922 = vpop.f32.mrb[0].mxu0
      %1923 = vmatprep.mubr.f32.mxu0 0.0
      %1924 = vmatmul.mubr.f32.gmra.mrb[0].mxu0 %v1798
      %v1925 = vpop.f32.mrb[0].mxu0
      %v1926 = vadd.f32 0.0, %v1925
      %v1927 = vpop.f32.mrb[0].mxu0
      %1928 = vmatprep.mubr.f32.mxu0 0.0
      %1929 = vmatmul.mubr.f32.gmra.mrb[0].mxu0 %v1801
      %v1930 = vpop.f32.mrb[0].mxu0
      %v1931 = vadd.f32 0.0, %v1930
      %v1932 = vpop.f32.mrb[0].mxu0
      %1933 = vmatprep.mubr.f32.mxu0 0.0
      %1934 = vmatmul.mubr.f32.gmra.mrb[0].mxu0 %v1804
      %v1935 = vpop.f32.mrb[0].mxu0
      %v1936 = vadd.f32 0.0, %v1935
      %v1937 = vpop.f32.mrb[0].mxu0
      %1938 = vmatprep.mubr.f32.mxu0 0.0
      %1939 = vmatmul.mubr.f32.gmra.mrb[0].mxu0 %v1807
      %v1940 = vpop.f32.mrb[0].mxu0
      %v1941 = vadd.f32 0.0, %v1940
      %v1942 = vpop.f32.mrb[0].mxu0
      %1943 = vmatprep.mubr.f32.mxu0 0.0
      %1944 = vmatmul.mubr.f32.gmra.mrb[0].mxu0 %v1810
      %v1945 = vpop.f32.mrb[0].mxu0
      %v1946 = vadd.f32 0.0, %v1945
      %v1947 = vpop.f32.mrb[0].mxu0
      %1948 = vmatprep.mubr.f32.mxu0 0.0
      %1949 = vmatmul.mubr.f32.gmra.mrb[0].mxu0 %v1813
      %v1950 = vpop.f32.mrb[0].mxu0
      %v1951 = vadd.f32 0.0, %v1950
      %v1952 = vpop.f32.mrb[0].mxu0
      %1953 = vmatprep.mubr.f32.mxu0 0.0
      %1954 = vmatmul.mubr.f32.gmra.mrb[0].mxu0 %v1816
      %v1955 = vpop.f32.mrb[0].mxu0
      %v1956 = vadd.f32 0.0, %v1955
      %v1957 = vpop.f32.mrb[0].mxu0
      %1958 = vmatprep.mubr.f32.mxu0 0.0
      %1959 = vmatmul.mubr.f32.gmra.mrb[0].mxu0 %v1819
      %v1960 = vpop.f32.mrb[0].mxu0
      %v1961 = vadd.f32 0.0, %v1960
      %v1962 = vpop.f32.mrb[0].mxu0
      %1963 = vmatprep.mubr.f32.mxu0 0.0
      %1964 = vmatmul.mubr.f32.gmra.mrb[0].mxu0 %v1822
      %v1965 = vpop.f32.mrb[0].mxu0
      %v1966 = vadd.f32 0.0, %v1965
      %v1967 = vpop.f32.mrb[0].mxu0
      %1968 = vdwg.mxu0
      %s1969 = scalar_lea.vmem %s4, 64
      %v1970 = vld [vmem:[%s1969] sm:$0xff]
      %v1971 = vld [vmem:[%s1969 + $0x8] sm:$0xff]
      %v1972 = vld [vmem:[%s1969 + $0x10] sm:$0xff]
      %v1973 = vld [vmem:[%s1969 + $0x18] sm:$0xff]
      %v1974 = vld [vmem:[%s1969 + $0x20] sm:$0xff]
      %v1975 = vld [vmem:[%s1969 + $0x28] sm:$0xff]
      %v1976 = vld [vmem:[%s1969 + $0x30] sm:$0xff]
      %v1977 = vld [vmem:[%s1969 + $0x38] sm:$0xff]
      %1978 = vmatprep.subr.mxu0 0.0
      %1979 = vmatpush1.msra.mxu0 %v1970
      %1980 = vmatprep.subr.mxu0 0.0
      %1981 = vmatpush1.msra.mxu0 %v1971
      %1982 = vmatprep.subr.mxu0 0.0
      %1983 = vmatpush1.msra.mxu0 %v1972
      %1984 = vmatprep.subr.mxu0 0.0
      %1985 = vmatpush1.msra.mxu0 %v1973
      %1986 = vmatprep.subr.mxu0 0.0
      %1987 = vmatpush1.msra.mxu0 %v1974
      %1988 = vmatprep.subr.mxu0 0.0
      %1989 = vmatpush1.msra.mxu0 %v1975
      %1990 = vmatprep.subr.mxu0 0.0
      %1991 = vmatpush1.msra.mxu0 %v1976
      %1992 = vmatprep.subr.mxu0 0.0
      %1993 = vmatpush1.msra.mxu0 %v1977
      %1994 = vmatprep.subr.mxu0 0.0
      %1995 = vmatpush1.msra.mxu0 0.0
      %1996 = vmatprep.subr.mxu0 0.0
      %1997 = vmatpush1.msra.mxu0 0.0
      %1998 = vmatprep.subr.mxu0 0.0
      %1999 = vmatpush1.msra.mxu0 0.0
      %2000 = vmatprep.subr.mxu0 0.0
      %2001 = vmatpush1.msra.mxu0 0.0
      %2002 = vmatprep.subr.mxu0 0.0
      %2003 = vmatpush1.msra.mxu0 0.0
      %2004 = vmatprep.subr.mxu0 0.0
      %2005 = vmatpush1.msra.mxu0 0.0
      %2006 = vmatprep.subr.mxu0 0.0
      %2007 = vmatpush1.msra.mxu0 0.0
      %2008 = vmatprep.subr.mxu0 0.0
      %2009 = vmatpush1.msra.mxu0 0.0
      %2010 = vmatprep.subr.mxu0 0.0
      %2011 = vmatpush1.msra.mxu0 0.0
      %2012 = vmatprep.subr.mxu0 0.0
      %2013 = vmatpush1.msra.mxu0 0.0
      %2014 = vmatprep.subr.mxu0 0.0
      %2015 = vmatpush1.msra.mxu0 0.0
      %2016 = vmatprep.subr.mxu0 0.0
      %2017 = vmatpush1.msra.mxu0 0.0
      %2018 = vmatprep.subr.mxu0 0.0
      %2019 = vmatpush1.msra.mxu0 0.0
      %2020 = vmatprep.subr.mxu0 0.0
      %2021 = vmatpush1.msra.mxu0 0.0
      %2022 = vmatprep.subr.mxu0 0.0
      %2023 = vmatpush1.msra.mxu0 0.0
      %2024 = vmatprep.subr.mxu0 0.0
      %2025 = vmatpush1.msra.mxu0 0.0
      %2026 = vmatprep.subr.mxu0 0.0
      %2027 = vmatpush1.msra.mxu0 0.0
      %2028 = vmatprep.subr.mxu0 0.0
      %2029 = vmatpush1.msra.mxu0 0.0
      %2030 = vmatprep.subr.mxu0 0.0
      %2031 = vmatpush1.msra.mxu0 0.0
      %2032 = vmatprep.subr.mxu0 0.0
      %2033 = vmatpush1.msra.mxu0 0.0
      %2034 = vmatprep.subr.mxu0 0.0
      %2035 = vmatpush1.msra.mxu0 0.0
      %2036 = vmatprep.subr.mxu0 0.0
      %2037 = vmatpush1.msra.mxu0 0.0
      %2038 = vmatprep.subr.mxu0 0.0
      %2039 = vmatpush1.msra.mxu0 0.0
      %2040 = vmatprep.subr.mxu0 0.0
      %2041 = vmatpush1.msra.mxu0 0.0
      %2042 = vmatprep.mubr.f32.mxu0 0.0
      %2043 = vmatmul.mubr.f32.gmra.mrb[0].mxu0 %v1777
      %v2044 = vpop.f32.mrb[0].mxu0
      %v2045 = vadd.f32 0.0, %v2044
      %v2046 = vpop.f32.mrb[0].mxu0
      %2047 = vmatprep.mubr.f32.mxu0 0.0
      %2048 = vmatmul.mubr.f32.gmra.mrb[0].mxu0 %v1780
      %v2049 = vpop.f32.mrb[0].mxu0
      %v2050 = vadd.f32 0.0, %v2049
      %v2051 = vpop.f32.mrb[0].mxu0
      %2052 = vmatprep.mubr.f32.mxu0 0.0
      %2053 = vmatmul.mubr.f32.gmra.mrb[0].mxu0 %v1783
      %v2054 = vpop.f32.mrb[0].mxu0
      %v2055 = vadd.f32 0.0, %v2054
      %v2056 = vpop.f32.mrb[0].mxu0
      %2057 = vmatprep.mubr.f32.mxu0 0.0
      %2058 = vmatmul.mubr.f32.gmra.mrb[0].mxu0 %v1786
      %v2059 = vpop.f32.mrb[0].mxu0
      %v2060 = vadd.f32 0.0, %v2059
      %v2061 = vpop.f32.mrb[0].mxu0
      %2062 = vmatprep.mubr.f32.mxu0 0.0
      %2063 = vmatmul.mubr.f32.gmra.mrb[0].mxu0 %v1789
      %v2064 = vpop.f32.mrb[0].mxu0
      %v2065 = vadd.f32 0.0, %v2064
      %v2066 = vpop.f32.mrb[0].mxu0
      %2067 = vmatprep.mubr.f32.mxu0 0.0
      %2068 = vmatmul.mubr.f32.gmra.mrb[0].mxu0 %v1792
      %v2069 = vpop.f32.mrb[0].mxu0
      %v2070 = vadd.f32 0.0, %v2069
      %v2071 = vpop.f32.mrb[0].mxu0
      %2072 = vmatprep.mubr.f32.mxu0 0.0
      %2073 = vmatmul.mubr.f32.gmra.mrb[0].mxu0 %v1795
      %v2074 = vpop.f32.mrb[0].mxu0
      %v2075 = vadd.f32 0.0, %v2074
      %v2076 = vpop.f32.mrb[0].mxu0
      %2077 = vmatprep.mubr.f32.mxu0 0.0
      %2078 = vmatmul.mubr.f32.gmra.mrb[0].mxu0 %v1798
      %v2079 = vpop.f32.mrb[0].mxu0
      %v2080 = vadd.f32 0.0, %v2079
      %v2081 = vpop.f32.mrb[0].mxu0
      %2082 = vmatprep.mubr.f32.mxu0 0.0
      %2083 = vmatmul.mubr.f32.gmra.mrb[0].mxu0 %v1801
      %v2084 = vpop.f32.mrb[0].mxu0
      %v2085 = vadd.f32 0.0, %v2084
      %v2086 = vpop.f32.mrb[0].mxu0
      %2087 = vmatprep.mubr.f32.mxu0 0.0
      %2088 = vmatmul.mubr.f32.gmra.mrb[0].mxu0 %v1804
      %v2089 = vpop.f32.mrb[0].mxu0
      %v2090 = vadd.f32 0.0, %v2089
      %v2091 = vpop.f32.mrb[0].mxu0
      %2092 = vmatprep.mubr.f32.mxu0 0.0
      %2093 = vmatmul.mubr.f32.gmra.mrb[0].mxu0 %v1807
      %v2094 = vpop.f32.mrb[0].mxu0
      %v2095 = vadd.f32 0.0, %v2094
      %v2096 = vpop.f32.mrb[0].mxu0
      %2097 = vmatprep.mubr.f32.mxu0 0.0
      %2098 = vmatmul.mubr.f32.gmra.mrb[0].mxu0 %v1810
      %v2099 = vpop.f32.mrb[0].mxu0
      %v2100 = vadd.f32 0.0, %v2099
      %v2101 = vpop.f32.mrb[0].mxu0
      %2102 = vmatprep.mubr.f32.mxu0 0.0
      %2103 = vmatmul.mubr.f32.gmra.mrb[0].mxu0 %v1813
      %v2104 = vpop.f32.mrb[0].mxu0
      %v2105 = vadd.f32 0.0, %v2104
      %v2106 = vpop.f32.mrb[0].mxu0
      %2107 = vmatprep.mubr.f32.mxu0 0.0
      %2108 = vmatmul.mubr.f32.gmra.mrb[0].mxu0 %v1816
      %v2109 = vpop.f32.mrb[0].mxu0
      %v2110 = vadd.f32 0.0, %v2109
      %v2111 = vpop.f32.mrb[0].mxu0
      %2112 = vmatprep.mubr.f32.mxu0 0.0
      %2113 = vmatmul.mubr.f32.gmra.mrb[0].mxu0 %v1819
      %v2114 = vpop.f32.mrb[0].mxu0
      %v2115 = vadd.f32 0.0, %v2114
      %v2116 = vpop.f32.mrb[0].mxu0
      %2117 = vmatprep.mubr.f32.mxu0 0.0
      %2118 = vmatmul.mubr.f32.gmra.mrb[0].mxu0 %v1822
      %v2119 = vpop.f32.mrb[0].mxu0
      %v2120 = vadd.f32 0.0, %v2119
      %v2121 = vpop.f32.mrb[0].mxu0
      %2122 = vdwg.mxu0
      %v2123 = vmax.f32 %v1891, %v2045
      %v2124 = vmax.f32 %v1896, %v2050
      %v2125 = vmax.f32 %v1901, %v2055
      %v2126 = vmax.f32 %v1906, %v2060
      %v2127 = vmax.f32 %v1911, %v2065
      %v2128 = vmax.f32 %v1916, %v2070
      %v2129 = vmax.f32 %v1921, %v2075
      %v2130 = vmax.f32 %v1926, %v2080
      %v2131 = vmax.f32 %v1931, %v2085
      %v2132 = vmax.f32 %v1936, %v2090
      %v2133 = vmax.f32 %v1941, %v2095
      %v2134 = vmax.f32 %v1946, %v2100
      %v2135 = vmax.f32 %v1951, %v2105
      %v2136 = vmax.f32 %v1956, %v2110
      %v2137 = vmax.f32 %v1961, %v2115
      %v2138 = vmax.f32 %v1966, %v2120
      %v2139 = vld [vmem:[%s1] sm:$0x1]
      %v2140 = vlaneseq
      %v2141 = vshrl.u32 %v2140, 7
      %v2142 = vsub.s32 0, %v2141
      %v2143 = vrot.slane %v2139, %v2142
      %v2144 = vadd.f32 %v2123, %v2143
      %v2145 = vadd.f32 %v2124, %v2143
      %v2146 = vadd.f32 %v2125, %v2143
      %v2147 = vadd.f32 %v2126, %v2143
      %v2148 = vadd.f32 %v2127, %v2143
      %v2149 = vadd.f32 %v2128, %v2143
      %v2150 = vadd.f32 %v2129, %v2143
      %v2151 = vadd.f32 %v2130, %v2143
      %v2152 = vadd.f32 %v2131, %v2143
      %v2153 = vadd.f32 %v2132, %v2143
      %v2154 = vadd.f32 %v2133, %v2143
      %v2155 = vadd.f32 %v2134, %v2143
      %v2156 = vadd.f32 %v2135, %v2143
      %v2157 = vadd.f32 %v2136, %v2143
      %v2158 = vadd.f32 %v2137, %v2143
      %v2159 = vadd.f32 %v2138, %v2143
      %v2160 = vmax.f32 %v2144, 0.0
      %v2161 = vmax.f32 %v2145, 0.0
      %v2162 = vmax.f32 %v2146, 0.0
      %v2163 = vmax.f32 %v2147, 0.0
      %v2164 = vmax.f32 %v2148, 0.0
      %v2165 = vmax.f32 %v2149, 0.0
      %v2166 = vmax.f32 %v2150, 0.0
      %v2167 = vmax.f32 %v2151, 0.0
      %v2168 = vmax.f32 %v2152, 0.0
      %v2169 = vmax.f32 %v2153, 0.0
      %v2170 = vmax.f32 %v2154, 0.0
      %v2171 = vmax.f32 %v2155, 0.0
      %v2172 = vmax.f32 %v2156, 0.0
      %v2173 = vmax.f32 %v2157, 0.0
      %v2174 = vmax.f32 %v2158, 0.0
      %v2175 = vmax.f32 %v2159, 0.0
      %v2176 = vsel %vm426, %v2174, 0.0
      %v2177 = vsel %vm427, %v2175, 0.0
      %v2178 = vsel %vm428, %v2160, 0.0
      %v2179 = vsel %vm429, %v2161, 0.0
      %v2180 = vsel %vm430, %v2162, 0.0
      %v2181 = vsel %vm431, %v2163, 0.0
      %v2182 = vsel %vm432, %v2164, 0.0
      %v2183 = vsel %vm433, %v2165, 0.0
      %v2184 = vsel %vm434, %v2166, 0.0
      %v2185 = vsel %vm435, %v2167, 0.0
      %v2186 = vsel %vm436, %v2168, 0.0
      %v2187 = vsel %vm437, %v2169, 0.0
      %v2188 = vsel %vm438, %v2170, 0.0
      %v2189 = vsel %vm439, %v2171, 0.0
      %v2190 = vsel %vm440, %v2172, 0.0
      %v2191 = vsel %vm441, %v2173, 0.0
      %v2192 = vld [vmem:[%s5] sm:$0xff]
      %v2193 = vld [vmem:[%s5 + $0x8] sm:$0xff]
      %v2194 = vld [vmem:[%s5 + $0x10] sm:$0xff]
      %v2195 = vld [vmem:[%s5 + $0x18] sm:$0xff]
      %s2196 = scalar_lea.vmem %s5, 32
      %v2197 = vld [vmem:[%s2196] sm:$0xff]
      %v2198 = vld [vmem:[%s2196 + $0x8] sm:$0xff]
      %v2199 = vld [vmem:[%s2196 + $0x10] sm:$0xff]
      %v2200 = vld [vmem:[%s2196 + $0x18] sm:$0xff]
      %vm2201 = vcmask 261120
      %v2203 = vsel %vm2201, %v2160, 0
      %v2206 = vsel %vm2201, %v2161, 0
      %v2209 = vsel %vm2201, %v2162, 0
      %v2212 = vsel %vm2201, %v2163, 0
      %v2215 = vsel %vm2201, %v2164, 0
      %v2218 = vsel %vm2201, %v2165, 0
      %v2221 = vsel %vm2201, %v2166, 0
      %v2224 = vsel %vm2201, %v2167, 0
      %v2227 = vsel %vm2201, %v2168, 0
      %v2230 = vsel %vm2201, %v2169, 0
      %v2233 = vsel %vm2201, %v2170, 0
      %v2236 = vsel %vm2201, %v2171, 0
      %v2239 = vsel %vm2201, %v2172, 0
      %v2242 = vsel %vm2201, %v2173, 0
      %v2245 = vsel %vm2201, %v2174, 0
      %v2248 = vsel %vm2201, %v2175, 0
      %2250 = vmatprep.subr.mxu0 0.0
      %2251 = vmatpush1.msra.mxu0 %v2197
      %2252 = vmatprep.subr.mxu0 0.0
      %2253 = vmatpush1.msra.mxu0 %v2198
      %2254 = vmatprep.subr.mxu0 0.0
      %2255 = vmatpush1.msra.mxu0 %v2199
      %2256 = vmatprep.subr.mxu0 0.0
      %2257 = vmatpush1.msra.mxu0 %v2200
      %2258 = vmatprep.subr.mxu0 0.0
      %2259 = vmatpush1.msra.mxu0 0.0
      %2260 = vmatprep.subr.mxu0 0.0
      %2261 = vmatpush1.msra.mxu0 0.0
      %2262 = vmatprep.subr.mxu0 0.0
      %2263 = vmatpush1.msra.mxu0 0.0
      %2264 = vmatprep.subr.mxu0 0.0
      %2265 = vmatpush1.msra.mxu0 0.0
      %2266 = vmatprep.subr.mxu0 0.0
      %2267 = vmatpush1.msra.mxu0 0.0
      %2268 = vmatprep.subr.mxu0 0.0
      %2269 = vmatpush1.msra.mxu0 0.0
      %2270 = vmatprep.subr.mxu0 0.0
      %2271 = vmatpush1.msra.mxu0 0.0
      %2272 = vmatprep.subr.mxu0 0.0
      %2273 = vmatpush1.msra.mxu0 0.0
      %2274 = vmatprep.subr.mxu0 0.0
      %2275 = vmatpush1.msra.mxu0 0.0
      %2276 = vmatprep.subr.mxu0 0.0
      %2277 = vmatpush1.msra.mxu0 0.0
      %2278 = vmatprep.subr.mxu0 0.0
      %2279 = vmatpush1.msra.mxu0 0.0
      %2280 = vmatprep.subr.mxu0 0.0
      %2281 = vmatpush1.msra.mxu0 0.0
      %2282 = vmatprep.subr.mxu0 0.0
      %2283 = vmatpush1.msra.mxu0 0.0
      %2284 = vmatprep.subr.mxu0 0.0
      %2285 = vmatpush1.msra.mxu0 0.0
      %2286 = vmatprep.subr.mxu0 0.0
      %2287 = vmatpush1.msra.mxu0 0.0
      %2288 = vmatprep.subr.mxu0 0.0
      %2289 = vmatpush1.msra.mxu0 0.0
      %2290 = vmatprep.subr.mxu0 0.0
      %2291 = vmatpush1.msra.mxu0 0.0
      %2292 = vmatprep.subr.mxu0 0.0
      %2293 = vmatpush1.msra.mxu0 0.0
      %2294 = vmatprep.subr.mxu0 0.0
      %2295 = vmatpush1.msra.mxu0 0.0
      %2296 = vmatprep.subr.mxu0 0.0
      %2297 = vmatpush1.msra.mxu0 0.0
      %2298 = vmatprep.subr.mxu0 0.0
      %2299 = vmatpush1.msra.mxu0 0.0
      %2300 = vmatprep.subr.mxu0 0.0
      %2301 = vmatpush1.msra.mxu0 0.0
      %2302 = vmatprep.subr.mxu0 0.0
      %2303 = vmatpush1.msra.mxu0 0.0
      %2304 = vmatprep.subr.mxu0 0.0
      %2305 = vmatpush1.msra.mxu0 0.0
      %2306 = vmatprep.subr.mxu0 0.0
      %2307 = vmatpush1.msra.mxu0 0.0
      %2308 = vmatprep.subr.mxu0 0.0
      %2309 = vmatpush1.msra.mxu0 0.0
      %2310 = vmatprep.subr.mxu0 0.0
      %2311 = vmatpush1.msra.mxu0 0.0
      %2312 = vmatprep.subr.mxu0 0.0
      %2313 = vmatpush1.msra.mxu0 0.0
      %2314 = vmatprep.mubr.f32.mxu0 0.0
      %2315 = vmatmul.mubr.f32.gmra.mrb[0].mxu0 %v2203
      %v2316 = vpop.f32.mrb[0].mxu0
      %v2317 = vadd.f32 0.0, %v2316
      %v2318 = vpop.f32.mrb[0].mxu0
      %2319 = vmatprep.mubr.f32.mxu0 0.0
      %2320 = vmatmul.mubr.f32.gmra.mrb[0].mxu0 %v2206
      %v2321 = vpop.f32.mrb[0].mxu0
      %v2322 = vadd.f32 0.0, %v2321
      %v2323 = vpop.f32.mrb[0].mxu0
      %2324 = vmatprep.mubr.f32.mxu0 0.0
      %2325 = vmatmul.mubr.f32.gmra.mrb[0].mxu0 %v2209
      %v2326 = vpop.f32.mrb[0].mxu0
      %v2327 = vadd.f32 0.0, %v2326
      %v2328 = vpop.f32.mrb[0].mxu0
      %2329 = vmatprep.mubr.f32.mxu0 0.0
      %2330 = vmatmul.mubr.f32.gmra.mrb[0].mxu0 %v2212
      %v2331 = vpop.f32.mrb[0].mxu0
      %v2332 = vadd.f32 0.0, %v2331
      %v2333 = vpop.f32.mrb[0].mxu0
      %2334 = vmatprep.mubr.f32.mxu0 0.0
      %2335 = vmatmul.mubr.f32.gmra.mrb[0].mxu0 %v2215
      %v2336 = vpop.f32.mrb[0].mxu0
      %v2337 = vadd.f32 0.0, %v2336
      %v2338 = vpop.f32.mrb[0].mxu0
      %2339 = vmatprep.mubr.f32.mxu0 0.0
      %2340 = vmatmul.mubr.f32.gmra.mrb[0].mxu0 %v2218
      %v2341 = vpop.f32.mrb[0].mxu0
      %v2342 = vadd.f32 0.0, %v2341
      %v2343 = vpop.f32.mrb[0].mxu0
      %2344 = vmatprep.mubr.f32.mxu0 0.0
      %2345 = vmatmul.mubr.f32.gmra.mrb[0].mxu0 %v2221
      %v2346 = vpop.f32.mrb[0].mxu0
      %v2347 = vadd.f32 0.0, %v2346
      %v2348 = vpop.f32.mrb[0].mxu0
      %2349 = vmatprep.mubr.f32.mxu0 0.0
      %2350 = vmatmul.mubr.f32.gmra.mrb[0].mxu0 %v2224
      %v2351 = vpop.f32.mrb[0].mxu0
      %v2352 = vadd.f32 0.0, %v2351
      %v2353 = vpop.f32.mrb[0].mxu0
      %2354 = vmatprep.mubr.f32.mxu0 0.0
      %2355 = vmatmul.mubr.f32.gmra.mrb[0].mxu0 %v2227
      %v2356 = vpop.f32.mrb[0].mxu0
      %v2357 = vadd.f32 0.0, %v2356
      %v2358 = vpop.f32.mrb[0].mxu0
      %2359 = vmatprep.mubr.f32.mxu0 0.0
      %2360 = vmatmul.mubr.f32.gmra.mrb[0].mxu0 %v2230
      %v2361 = vpop.f32.mrb[0].mxu0
      %v2362 = vadd.f32 0.0, %v2361
      %v2363 = vpop.f32.mrb[0].mxu0
      %2364 = vmatprep.mubr.f32.mxu0 0.0
      %2365 = vmatmul.mubr.f32.gmra.mrb[0].mxu0 %v2233
      %v2366 = vpop.f32.mrb[0].mxu0
      %v2367 = vadd.f32 0.0, %v2366
      %v2368 = vpop.f32.mrb[0].mxu0
      %2369 = vmatprep.mubr.f32.mxu0 0.0
      %2370 = vmatmul.mubr.f32.gmra.mrb[0].mxu0 %v2236
      %v2371 = vpop.f32.mrb[0].mxu0
      %v2372 = vadd.f32 0.0, %v2371
      %v2373 = vpop.f32.mrb[0].mxu0
      %2374 = vmatprep.mubr.f32.mxu0 0.0
      %2375 = vmatmul.mubr.f32.gmra.mrb[0].mxu0 %v2239
      %v2376 = vpop.f32.mrb[0].mxu0
      %v2377 = vadd.f32 0.0, %v2376
      %v2378 = vpop.f32.mrb[0].mxu0
      %2379 = vmatprep.mubr.f32.mxu0 0.0
      %2380 = vmatmul.mubr.f32.gmra.mrb[0].mxu0 %v2242
      %v2381 = vpop.f32.mrb[0].mxu0
      %v2382 = vadd.f32 0.0, %v2381
      %v2383 = vpop.f32.mrb[0].mxu0
      %2384 = vmatprep.mubr.f32.mxu0 0.0
      %2385 = vmatmul.mubr.f32.gmra.mrb[0].mxu0 %v2245
      %v2386 = vpop.f32.mrb[0].mxu0
      %v2387 = vadd.f32 0.0, %v2386
      %v2388 = vpop.f32.mrb[0].mxu0
      %2389 = vmatprep.mubr.f32.mxu0 0.0
      %2390 = vmatmul.mubr.f32.gmra.mrb[0].mxu0 %v2248
      %v2391 = vpop.f32.mrb[0].mxu0
      %v2392 = vadd.f32 0.0, %v2391
      %v2393 = vpop.f32.mrb[0].mxu0
      %2394 = vdwg.mxu0
      %v2396 = vsel %vm2201, %v2176, 0
      %v2399 = vsel %vm2201, %v2177, 0
      %v2402 = vsel %vm2201, %v2178, 0
      %v2405 = vsel %vm2201, %v2179, 0
      %v2408 = vsel %vm2201, %v2180, 0
      %v2411 = vsel %vm2201, %v2181, 0
      %v2414 = vsel %vm2201, %v2182, 0
      %v2417 = vsel %vm2201, %v2183, 0
      %v2420 = vsel %vm2201, %v2184, 0
      %v2423 = vsel %vm2201, %v2185, 0
      %v2426 = vsel %vm2201, %v2186, 0
      %v2429 = vsel %vm2201, %v2187, 0
      %v2432 = vsel %vm2201, %v2188, 0
      %v2435 = vsel %vm2201, %v2189, 0
      %v2438 = vsel %vm2201, %v2190, 0
      %v2441 = vsel %vm2201, %v2191, 0
      %2443 = vmatprep.subr.mxu0 0.0
      %2444 = vmatpush1.msra.mxu0 %v2192
      %2445 = vmatprep.subr.mxu0 0.0
      %2446 = vmatpush1.msra.mxu0 %v2193
      %2447 = vmatprep.subr.mxu0 0.0
      %2448 = vmatpush1.msra.mxu0 %v2194
      %2449 = vmatprep.subr.mxu0 0.0
      %2450 = vmatpush1.msra.mxu0 %v2195
      %2451 = vmatprep.subr.mxu0 0.0
      %2452 = vmatpush1.msra.mxu0 0.0
      %2453 = vmatprep.subr.mxu0 0.0
      %2454 = vmatpush1.msra.mxu0 0.0
      %2455 = vmatprep.subr.mxu0 0.0
      %2456 = vmatpush1.msra.mxu0 0.0
      %2457 = vmatprep.subr.mxu0 0.0
      %2458 = vmatpush1.msra.mxu0 0.0
      %2459 = vmatprep.subr.mxu0 0.0
      %2460 = vmatpush1.msra.mxu0 0.0
      %2461 = vmatprep.subr.mxu0 0.0
      %2462 = vmatpush1.msra.mxu0 0.0
      %2463 = vmatprep.subr.mxu0 0.0
      %2464 = vmatpush1.msra.mxu0 0.0
      %2465 = vmatprep.subr.mxu0 0.0
      %2466 = vmatpush1.msra.mxu0 0.0
      %2467 = vmatprep.subr.mxu0 0.0
      %2468 = vmatpush1.msra.mxu0 0.0
      %2469 = vmatprep.subr.mxu0 0.0
      %2470 = vmatpush1.msra.mxu0 0.0
      %2471 = vmatprep.subr.mxu0 0.0
      %2472 = vmatpush1.msra.mxu0 0.0
      %2473 = vmatprep.subr.mxu0 0.0
      %2474 = vmatpush1.msra.mxu0 0.0
      %2475 = vmatprep.subr.mxu0 0.0
      %2476 = vmatpush1.msra.mxu0 0.0
      %2477 = vmatprep.subr.mxu0 0.0
      %2478 = vmatpush1.msra.mxu0 0.0
      %2479 = vmatprep.subr.mxu0 0.0
      %2480 = vmatpush1.msra.mxu0 0.0
      %2481 = vmatprep.subr.mxu0 0.0
      %2482 = vmatpush1.msra.mxu0 0.0
      %2483 = vmatprep.subr.mxu0 0.0
      %2484 = vmatpush1.msra.mxu0 0.0
      %2485 = vmatprep.subr.mxu0 0.0
      %2486 = vmatpush1.msra.mxu0 0.0
      %2487 = vmatprep.subr.mxu0 0.0
      %2488 = vmatpush1.msra.mxu0 0.0
      %2489 = vmatprep.subr.mxu0 0.0
      %2490 = vmatpush1.msra.mxu0 0.0
      %2491 = vmatprep.subr.mxu0 0.0
      %2492 = vmatpush1.msra.mxu0 0.0
      %2493 = vmatprep.subr.mxu0 0.0
      %2494 = vmatpush1.msra.mxu0 0.0
      %2495 = vmatprep.subr.mxu0 0.0
      %2496 = vmatpush1.msra.mxu0 0.0
      %2497 = vmatprep.subr.mxu0 0.0
      %2498 = vmatpush1.msra.mxu0 0.0
      %2499 = vmatprep.subr.mxu0 0.0
      %2500 = vmatpush1.msra.mxu0 0.0
      %2501 = vmatprep.subr.mxu0 0.0
      %2502 = vmatpush1.msra.mxu0 0.0
      %2503 = vmatprep.subr.mxu0 0.0
      %2504 = vmatpush1.msra.mxu0 0.0
      %2505 = vmatprep.subr.mxu0 0.0
      %2506 = vmatpush1.msra.mxu0 0.0
      %2507 = vmatprep.mubr.f32.mxu0 0.0
      %2508 = vmatmul.mubr.f32.gmra.mrb[0].mxu0 %v2396
      %v2509 = vpop.f32.mrb[0].mxu0
      %v2510 = vadd.f32 %v2317, %v2509
      %v2511 = vpop.f32.mrb[0].mxu0
      %2512 = vmatprep.mubr.f32.mxu0 0.0
      %2513 = vmatmul.mubr.f32.gmra.mrb[0].mxu0 %v2399
      %v2514 = vpop.f32.mrb[0].mxu0
      %v2515 = vadd.f32 %v2322, %v2514
      %v2516 = vpop.f32.mrb[0].mxu0
      %2517 = vmatprep.mubr.f32.mxu0 0.0
      %2518 = vmatmul.mubr.f32.gmra.mrb[0].mxu0 %v2402
      %v2519 = vpop.f32.mrb[0].mxu0
      %v2520 = vadd.f32 %v2327, %v2519
      %v2521 = vpop.f32.mrb[0].mxu0
      %2522 = vmatprep.mubr.f32.mxu0 0.0
      %2523 = vmatmul.mubr.f32.gmra.mrb[0].mxu0 %v2405
      %v2524 = vpop.f32.mrb[0].mxu0
      %v2525 = vadd.f32 %v2332, %v2524
      %v2526 = vpop.f32.mrb[0].mxu0
      %2527 = vmatprep.mubr.f32.mxu0 0.0
      %2528 = vmatmul.mubr.f32.gmra.mrb[0].mxu0 %v2408
      %v2529 = vpop.f32.mrb[0].mxu0
      %v2530 = vadd.f32 %v2337, %v2529
      %v2531 = vpop.f32.mrb[0].mxu0
      %2532 = vmatprep.mubr.f32.mxu0 0.0
      %2533 = vmatmul.mubr.f32.gmra.mrb[0].mxu0 %v2411
      %v2534 = vpop.f32.mrb[0].mxu0
      %v2535 = vadd.f32 %v2342, %v2534
      %v2536 = vpop.f32.mrb[0].mxu0
      %2537 = vmatprep.mubr.f32.mxu0 0.0
      %2538 = vmatmul.mubr.f32.gmra.mrb[0].mxu0 %v2414
      %v2539 = vpop.f32.mrb[0].mxu0
      %v2540 = vadd.f32 %v2347, %v2539
      %v2541 = vpop.f32.mrb[0].mxu0
      %2542 = vmatprep.mubr.f32.mxu0 0.0
      %2543 = vmatmul.mubr.f32.gmra.mrb[0].mxu0 %v2417
      %v2544 = vpop.f32.mrb[0].mxu0
      %v2545 = vadd.f32 %v2352, %v2544
      %v2546 = vpop.f32.mrb[0].mxu0
      %2547 = vmatprep.mubr.f32.mxu0 0.0
      %2548 = vmatmul.mubr.f32.gmra.mrb[0].mxu0 %v2420
      %v2549 = vpop.f32.mrb[0].mxu0
      %v2550 = vadd.f32 %v2357, %v2549
      %v2551 = vpop.f32.mrb[0].mxu0
      %2552 = vmatprep.mubr.f32.mxu0 0.0
      %2553 = vmatmul.mubr.f32.gmra.mrb[0].mxu0 %v2423
      %v2554 = vpop.f32.mrb[0].mxu0
      %v2555 = vadd.f32 %v2362, %v2554
      %v2556 = vpop.f32.mrb[0].mxu0
      %2557 = vmatprep.mubr.f32.mxu0 0.0
      %2558 = vmatmul.mubr.f32.gmra.mrb[0].mxu0 %v2426
      %v2559 = vpop.f32.mrb[0].mxu0
      %v2560 = vadd.f32 %v2367, %v2559
      %v2561 = vpop.f32.mrb[0].mxu0
      %2562 = vmatprep.mubr.f32.mxu0 0.0
      %2563 = vmatmul.mubr.f32.gmra.mrb[0].mxu0 %v2429
      %v2564 = vpop.f32.mrb[0].mxu0
      %v2565 = vadd.f32 %v2372, %v2564
      %v2566 = vpop.f32.mrb[0].mxu0
      %2567 = vmatprep.mubr.f32.mxu0 0.0
      %2568 = vmatmul.mubr.f32.gmra.mrb[0].mxu0 %v2432
      %v2569 = vpop.f32.mrb[0].mxu0
      %v2570 = vadd.f32 %v2377, %v2569
      %v2571 = vpop.f32.mrb[0].mxu0
      %2572 = vmatprep.mubr.f32.mxu0 0.0
      %2573 = vmatmul.mubr.f32.gmra.mrb[0].mxu0 %v2435
      %v2574 = vpop.f32.mrb[0].mxu0
      %v2575 = vadd.f32 %v2382, %v2574
      %v2576 = vpop.f32.mrb[0].mxu0
      %2577 = vmatprep.mubr.f32.mxu0 0.0
      %2578 = vmatmul.mubr.f32.gmra.mrb[0].mxu0 %v2438
      %v2579 = vpop.f32.mrb[0].mxu0
      %v2580 = vadd.f32 %v2387, %v2579
      %v2581 = vpop.f32.mrb[0].mxu0
      %2582 = vmatprep.mubr.f32.mxu0 0.0
      %2583 = vmatmul.mubr.f32.gmra.mrb[0].mxu0 %v2441
      %v2584 = vpop.f32.mrb[0].mxu0
      %v2585 = vadd.f32 %v2392, %v2584
      %v2586 = vpop.f32.mrb[0].mxu0
      %2587 = vdwg.mxu0
      %vm2588 = vcmp.lt.s32.totalorder %v394, 112
      %vm2589 = vcmp.lt.s32.totalorder %v395, 112
      %vm2590 = vcmp.lt.s32.totalorder %v396, 112
      %vm2591 = vcmp.lt.s32.totalorder %v397, 112
      %vm2592 = vcmp.lt.s32.totalorder %v398, 112
      %vm2593 = vcmp.lt.s32.totalorder %v399, 112
      %vm2594 = vcmp.lt.s32.totalorder %v400, 112
      %vm2595 = vcmp.lt.s32.totalorder %v401, 112
      %vm2596 = vcmp.lt.s32.totalorder %v402, 112
      %vm2597 = vcmp.lt.s32.totalorder %v403, 112
      %vm2598 = vcmp.lt.s32.totalorder %v404, 112
      %vm2599 = vcmp.lt.s32.totalorder %v405, 112
      %vm2600 = vcmp.lt.s32.totalorder %v406, 112
      %vm2601 = vcmp.lt.s32.totalorder %v407, 112
      %vm2602 = vcmp.lt.s32.totalorder %v408, 112
      %vm2603 = vcmp.lt.s32.totalorder %v409, 112
      %v2604 = vsel %vm2588, %v2162, 0.0
      %v2605 = vsel %vm2589, %v2163, 0.0
      %v2606 = vsel %vm2590, %v2164, 0.0
      %v2607 = vsel %vm2591, %v2165, 0.0
      %v2608 = vsel %vm2592, %v2166, 0.0
      %v2609 = vsel %vm2593, %v2167, 0.0
      %v2610 = vsel %vm2594, %v2168, 0.0
      %v2611 = vsel %vm2595, %v2169, 0.0
      %v2612 = vsel %vm2596, %v2170, 0.0
      %v2613 = vsel %vm2597, %v2171, 0.0
      %v2614 = vsel %vm2598, %v2172, 0.0
      %v2615 = vsel %vm2599, %v2173, 0.0
      %v2616 = vsel %vm2600, %v2174, 0.0
      %v2617 = vsel %vm2601, %v2175, 0.0
      %v2618 = vsel %vm2602, %v2160, 0.0
      %v2619 = vsel %vm2603, %v2161, 0.0
      %s2620 = scalar_lea.vmem %s5, 64
      %v2621 = vld [vmem:[%s2620] sm:$0xff]
      %v2622 = vld [vmem:[%s2620 + $0x8] sm:$0xff]
      %v2623 = vld [vmem:[%s2620 + $0x10] sm:$0xff]
      %v2624 = vld [vmem:[%s2620 + $0x18] sm:$0xff]
      %v2626 = vsel %vm2201, %v2604, 0
      %v2629 = vsel %vm2201, %v2605, 0
      %v2632 = vsel %vm2201, %v2606, 0
      %v2635 = vsel %vm2201, %v2607, 0
      %v2638 = vsel %vm2201, %v2608, 0
      %v2641 = vsel %vm2201, %v2609, 0
      %v2644 = vsel %vm2201, %v2610, 0
      %v2647 = vsel %vm2201, %v2611, 0
      %v2650 = vsel %vm2201, %v2612, 0
      %v2653 = vsel %vm2201, %v2613, 0
      %v2656 = vsel %vm2201, %v2614, 0
      %v2659 = vsel %vm2201, %v2615, 0
      %v2662 = vsel %vm2201, %v2616, 0
      %v2665 = vsel %vm2201, %v2617, 0
      %v2668 = vsel %vm2201, %v2618, 0
      %v2671 = vsel %vm2201, %v2619, 0
      %2673 = vmatprep.subr.mxu0 0.0
      %2674 = vmatpush1.msra.mxu0 %v2621
      %2675 = vmatprep.subr.mxu0 0.0
      %2676 = vmatpush1.msra.mxu0 %v2622
      %2677 = vmatprep.subr.mxu0 0.0
      %2678 = vmatpush1.msra.mxu0 %v2623
      %2679 = vmatprep.subr.mxu0 0.0
      %2680 = vmatpush1.msra.mxu0 %v2624
      %2681 = vmatprep.subr.mxu0 0.0
      %2682 = vmatpush1.msra.mxu0 0.0
      %2683 = vmatprep.subr.mxu0 0.0
      %2684 = vmatpush1.msra.mxu0 0.0
      %2685 = vmatprep.subr.mxu0 0.0
      %2686 = vmatpush1.msra.mxu0 0.0
      %2687 = vmatprep.subr.mxu0 0.0
      %2688 = vmatpush1.msra.mxu0 0.0
      %2689 = vmatprep.subr.mxu0 0.0
      %2690 = vmatpush1.msra.mxu0 0.0
      %2691 = vmatprep.subr.mxu0 0.0
      %2692 = vmatpush1.msra.mxu0 0.0
      %2693 = vmatprep.subr.mxu0 0.0
      %2694 = vmatpush1.msra.mxu0 0.0
      %2695 = vmatprep.subr.mxu0 0.0
      %2696 = vmatpush1.msra.mxu0 0.0
      %2697 = vmatprep.subr.mxu0 0.0
      %2698 = vmatpush1.msra.mxu0 0.0
      %2699 = vmatprep.subr.mxu0 0.0
      %2700 = vmatpush1.msra.mxu0 0.0
      %2701 = vmatprep.subr.mxu0 0.0
      %2702 = vmatpush1.msra.mxu0 0.0
      %2703 = vmatprep.subr.mxu0 0.0
      %2704 = vmatpush1.msra.mxu0 0.0
      %2705 = vmatprep.subr.mxu0 0.0
      %2706 = vmatpush1.msra.mxu0 0.0
      %2707 = vmatprep.subr.mxu0 0.0
      %2708 = vmatpush1.msra.mxu0 0.0
      %2709 = vmatprep.subr.mxu0 0.0
      %2710 = vmatpush1.msra.mxu0 0.0
      %2711 = vmatprep.subr.mxu0 0.0
      %2712 = vmatpush1.msra.mxu0 0.0
      %2713 = vmatprep.subr.mxu0 0.0
      %2714 = vmatpush1.msra.mxu0 0.0
      %2715 = vmatprep.subr.mxu0 0.0
      %2716 = vmatpush1.msra.mxu0 0.0
      %2717 = vmatprep.subr.mxu0 0.0
      %2718 = vmatpush1.msra.mxu0 0.0
      %2719 = vmatprep.subr.mxu0 0.0
      %2720 = vmatpush1.msra.mxu0 0.0
      %2721 = vmatprep.subr.mxu0 0.0
      %2722 = vmatpush1.msra.mxu0 0.0
      %2723 = vmatprep.subr.mxu0 0.0
      %2724 = vmatpush1.msra.mxu0 0.0
      %2725 = vmatprep.subr.mxu0 0.0
      %2726 = vmatpush1.msra.mxu0 0.0
      %2727 = vmatprep.subr.mxu0 0.0
      %2728 = vmatpush1.msra.mxu0 0.0
      %2729 = vmatprep.subr.mxu0 0.0
      %2730 = vmatpush1.msra.mxu0 0.0
      %2731 = vmatprep.subr.mxu0 0.0
      %2732 = vmatpush1.msra.mxu0 0.0
      %2733 = vmatprep.subr.mxu0 0.0
      %2734 = vmatpush1.msra.mxu0 0.0
      %2735 = vmatprep.subr.mxu0 0.0
      %2736 = vmatpush1.msra.mxu0 0.0
      %2737 = vmatprep.mubr.f32.mxu0 0.0
      %2738 = vmatmul.mubr.f32.gmra.mrb[0].mxu0 %v2626
      %v2739 = vpop.f32.mrb[0].mxu0
      %v2740 = vadd.f32 0.0, %v2739
      %v2741 = vpop.f32.mrb[0].mxu0
      %2742 = vmatprep.mubr.f32.mxu0 0.0
      %2743 = vmatmul.mubr.f32.gmra.mrb[0].mxu0 %v2629
      %v2744 = vpop.f32.mrb[0].mxu0
      %v2745 = vadd.f32 0.0, %v2744
      %v2746 = vpop.f32.mrb[0].mxu0
      %2747 = vmatprep.mubr.f32.mxu0 0.0
      %2748 = vmatmul.mubr.f32.gmra.mrb[0].mxu0 %v2632
      %v2749 = vpop.f32.mrb[0].mxu0
      %v2750 = vadd.f32 0.0, %v2749
      %v2751 = vpop.f32.mrb[0].mxu0
      %2752 = vmatprep.mubr.f32.mxu0 0.0
      %2753 = vmatmul.mubr.f32.gmra.mrb[0].mxu0 %v2635
      %v2754 = vpop.f32.mrb[0].mxu0
      %v2755 = vadd.f32 0.0, %v2754
      %v2756 = vpop.f32.mrb[0].mxu0
      %2757 = vmatprep.mubr.f32.mxu0 0.0
      %2758 = vmatmul.mubr.f32.gmra.mrb[0].mxu0 %v2638
      %v2759 = vpop.f32.mrb[0].mxu0
      %v2760 = vadd.f32 0.0, %v2759
      %v2761 = vpop.f32.mrb[0].mxu0
      %2762 = vmatprep.mubr.f32.mxu0 0.0
      %2763 = vmatmul.mubr.f32.gmra.mrb[0].mxu0 %v2641
      %v2764 = vpop.f32.mrb[0].mxu0
      %v2765 = vadd.f32 0.0, %v2764
      %v2766 = vpop.f32.mrb[0].mxu0
      %2767 = vmatprep.mubr.f32.mxu0 0.0
      %2768 = vmatmul.mubr.f32.gmra.mrb[0].mxu0 %v2644
      %v2769 = vpop.f32.mrb[0].mxu0
      %v2770 = vadd.f32 0.0, %v2769
      %v2771 = vpop.f32.mrb[0].mxu0
      %2772 = vmatprep.mubr.f32.mxu0 0.0
      %2773 = vmatmul.mubr.f32.gmra.mrb[0].mxu0 %v2647
      %v2774 = vpop.f32.mrb[0].mxu0
      %v2775 = vadd.f32 0.0, %v2774
      %v2776 = vpop.f32.mrb[0].mxu0
      %2777 = vmatprep.mubr.f32.mxu0 0.0
      %2778 = vmatmul.mubr.f32.gmra.mrb[0].mxu0 %v2650
      %v2779 = vpop.f32.mrb[0].mxu0
      %v2780 = vadd.f32 0.0, %v2779
      %v2781 = vpop.f32.mrb[0].mxu0
      %2782 = vmatprep.mubr.f32.mxu0 0.0
      %2783 = vmatmul.mubr.f32.gmra.mrb[0].mxu0 %v2653
      %v2784 = vpop.f32.mrb[0].mxu0
      %v2785 = vadd.f32 0.0, %v2784
      %v2786 = vpop.f32.mrb[0].mxu0
      %2787 = vmatprep.mubr.f32.mxu0 0.0
      %2788 = vmatmul.mubr.f32.gmra.mrb[0].mxu0 %v2656
      %v2789 = vpop.f32.mrb[0].mxu0
      %v2790 = vadd.f32 0.0, %v2789
      %v2791 = vpop.f32.mrb[0].mxu0
      %2792 = vmatprep.mubr.f32.mxu0 0.0
      %2793 = vmatmul.mubr.f32.gmra.mrb[0].mxu0 %v2659
      %v2794 = vpop.f32.mrb[0].mxu0
      %v2795 = vadd.f32 0.0, %v2794
      %v2796 = vpop.f32.mrb[0].mxu0
      %2797 = vmatprep.mubr.f32.mxu0 0.0
      %2798 = vmatmul.mubr.f32.gmra.mrb[0].mxu0 %v2662
      %v2799 = vpop.f32.mrb[0].mxu0
      %v2800 = vadd.f32 0.0, %v2799
      %v2801 = vpop.f32.mrb[0].mxu0
      %2802 = vmatprep.mubr.f32.mxu0 0.0
      %2803 = vmatmul.mubr.f32.gmra.mrb[0].mxu0 %v2665
      %v2804 = vpop.f32.mrb[0].mxu0
      %v2805 = vadd.f32 0.0, %v2804
      %v2806 = vpop.f32.mrb[0].mxu0
      %2807 = vmatprep.mubr.f32.mxu0 0.0
      %2808 = vmatmul.mubr.f32.gmra.mrb[0].mxu0 %v2668
      %v2809 = vpop.f32.mrb[0].mxu0
      %v2810 = vadd.f32 0.0, %v2809
      %v2811 = vpop.f32.mrb[0].mxu0
      %2812 = vmatprep.mubr.f32.mxu0 0.0
      %2813 = vmatmul.mubr.f32.gmra.mrb[0].mxu0 %v2671
      %v2814 = vpop.f32.mrb[0].mxu0
      %v2815 = vadd.f32 0.0, %v2814
      %v2816 = vpop.f32.mrb[0].mxu0
      %2817 = vdwg.mxu0
      %v2818 = vadd.f32 %v2510, %v2740
      %v2819 = vadd.f32 %v2515, %v2745
      %v2820 = vadd.f32 %v2520, %v2750
      %v2821 = vadd.f32 %v2525, %v2755
      %v2822 = vadd.f32 %v2530, %v2760
      %v2823 = vadd.f32 %v2535, %v2765
      %v2824 = vadd.f32 %v2540, %v2770
      %v2825 = vadd.f32 %v2545, %v2775
      %v2826 = vadd.f32 %v2550, %v2780
      %v2827 = vadd.f32 %v2555, %v2785
      %v2828 = vadd.f32 %v2560, %v2790
      %v2829 = vadd.f32 %v2565, %v2795
      %v2830 = vadd.f32 %v2570, %v2800
      %v2831 = vadd.f32 %v2575, %v2805
      %v2832 = vadd.f32 %v2580, %v2810
      %v2833 = vadd.f32 %v2585, %v2815
      %v2834 = vmax.f32 %v2818, %v2820
      %v2835 = vmax.f32 %v2819, %v2821
      %v2836 = vmax.f32 %v2820, %v2822
      %v2837 = vmax.f32 %v2821, %v2823
      %v2838 = vmax.f32 %v2822, %v2824
      %v2839 = vmax.f32 %v2823, %v2825
      %v2840 = vmax.f32 %v2824, %v2826
      %v2841 = vmax.f32 %v2825, %v2827
      %v2842 = vmax.f32 %v2826, %v2828
      %v2843 = vmax.f32 %v2827, %v2829
      %v2844 = vmax.f32 %v2828, %v2830
      %v2845 = vmax.f32 %v2829, %v2831
      %v2846 = vmax.f32 %v2830, %v2832
      %v2847 = vmax.f32 %v2831, %v2833
      %v2848 = vmax.f32 %v2832, %v2818
      %v2849 = vmax.f32 %v2833, %v2819
      %v2850 = vld [vmem:[%s6] sm:$0xff]
      %v2851 = vld [vmem:[%s6 + $0x8] sm:$0xff]
      %v2852 = vld [vmem:[%s6 + $0x10] sm:$0xff]
      %v2853 = vld [vmem:[%s6 + $0x18] sm:$0xff]
      %v2854 = vld [vmem:[%s6 + $0x20] sm:$0xff]
      %v2855 = vld [vmem:[%s6 + $0x28] sm:$0xff]
      %v2856 = vld [vmem:[%s6 + $0x30] sm:$0xff]
      %v2857 = vld [vmem:[%s6 + $0x38] sm:$0xff]
      %2858 = vmatprep.subr.mxu0 0.0
      %2859 = vmatpush1.msra.mxu0 %v2834
      %2860 = vmatprep.subr.mxu0 0.0
      %2861 = vmatpush1.msra.mxu0 %v2835
      %2862 = vmatprep.subr.mxu0 0.0
      %2863 = vmatpush1.msra.mxu0 %v2836
      %2864 = vmatprep.subr.mxu0 0.0
      %2865 = vmatpush1.msra.mxu0 %v2837
      %2866 = vmatprep.subr.mxu0 0.0
      %2867 = vmatpush1.msra.mxu0 %v2838
      %2868 = vmatprep.subr.mxu0 0.0
      %2869 = vmatpush1.msra.mxu0 %v2839
      %2870 = vmatprep.subr.mxu0 0.0
      %2871 = vmatpush1.msra.mxu0 %v2840
      %2872 = vmatprep.subr.mxu0 0.0
      %2873 = vmatpush1.msra.mxu0 %v2841
      %2874 = vmatprep.subr.mxu0 0.0
      %2875 = vmatpush1.msra.mxu0 %v2842
      %2876 = vmatprep.subr.mxu0 0.0
      %2877 = vmatpush1.msra.mxu0 %v2843
      %2878 = vmatprep.subr.mxu0 0.0
      %2879 = vmatpush1.msra.mxu0 %v2844
      %2880 = vmatprep.subr.mxu0 0.0
      %2881 = vmatpush1.msra.mxu0 %v2845
      %2882 = vmatprep.subr.mxu0 0.0
      %2883 = vmatpush1.msra.mxu0 %v2846
      %2884 = vmatprep.subr.mxu0 0.0
      %2885 = vmatpush1.msra.mxu0 %v2847
      %2886 = vmatprep.subr.mxu0 0.0
      %2887 = vmatpush1.msra.mxu0 %v2848
      %2888 = vmatprep.subr.mxu0 0.0
      %2889 = vmatpush1.msra.mxu0 %v2849
      %2890 = vmatprep.subr.mxu0 0.0
      %2891 = vmatpush1.msra.mxu0 0.0
      %2892 = vmatprep.subr.mxu0 0.0
      %2893 = vmatpush1.msra.mxu0 0.0
      %2894 = vmatprep.subr.mxu0 0.0
      %2895 = vmatpush1.msra.mxu0 0.0
      %2896 = vmatprep.subr.mxu0 0.0
      %2897 = vmatpush1.msra.mxu0 0.0
      %2898 = vmatprep.subr.mxu0 0.0
      %2899 = vmatpush1.msra.mxu0 0.0
      %2900 = vmatprep.subr.mxu0 0.0
      %2901 = vmatpush1.msra.mxu0 0.0
      %2902 = vmatprep.subr.mxu0 0.0
      %2903 = vmatpush1.msra.mxu0 0.0
      %2904 = vmatprep.subr.mxu0 0.0
      %2905 = vmatpush1.msra.mxu0 0.0
      %2906 = vmatprep.subr.mxu0 0.0
      %2907 = vmatpush1.msra.mxu0 0.0
      %2908 = vmatprep.subr.mxu0 0.0
      %2909 = vmatpush1.msra.mxu0 0.0
      %2910 = vmatprep.subr.mxu0 0.0
      %2911 = vmatpush1.msra.mxu0 0.0
      %2912 = vmatprep.subr.mxu0 0.0
      %2913 = vmatpush1.msra.mxu0 0.0
      %2914 = vmatprep.subr.mxu0 0.0
      %2915 = vmatpush1.msra.mxu0 0.0
      %2916 = vmatprep.subr.mxu0 0.0
      %2917 = vmatpush1.msra.mxu0 0.0
      %2918 = vmatprep.subr.mxu0 0.0
      %2919 = vmatpush1.msra.mxu0 0.0
      %2920 = vmatprep.subr.mxu0 0.0
      %2921 = vmatpush1.msra.mxu0 0.0
      %2922 = vmatprep.mubr.f32.mxu0 0.0
      %2923 = vmatmul.mubr.f32.gmra.mrb[0].mxu0 %v2850
      %v2924 = vpop.f32.mrb[0].mxu0
      %v2925 = vadd.f32 0.0, %v2924
      %v2926 = vpop.f32.mrb[0].mxu0
      %2927 = vmatprep.mubr.f32.mxu0 0.0
      %2928 = vmatmul.mubr.f32.gmra.mrb[0].mxu0 %v2851
      %v2929 = vpop.f32.mrb[0].mxu0
      %v2930 = vadd.f32 0.0, %v2929
      %v2931 = vpop.f32.mrb[0].mxu0
      %2932 = vmatprep.mubr.f32.mxu0 0.0
      %2933 = vmatmul.mubr.f32.gmra.mrb[0].mxu0 %v2852
      %v2934 = vpop.f32.mrb[0].mxu0
      %v2935 = vadd.f32 0.0, %v2934
      %v2936 = vpop.f32.mrb[0].mxu0
      %2937 = vmatprep.mubr.f32.mxu0 0.0
      %2938 = vmatmul.mubr.f32.gmra.mrb[0].mxu0 %v2853
      %v2939 = vpop.f32.mrb[0].mxu0
      %v2940 = vadd.f32 0.0, %v2939
      %v2941 = vpop.f32.mrb[0].mxu0
      %2942 = vmatprep.mubr.f32.mxu0 0.0
      %2943 = vmatmul.mubr.f32.gmra.mrb[0].mxu0 %v2854
      %v2944 = vpop.f32.mrb[0].mxu0
      %v2945 = vadd.f32 0.0, %v2944
      %v2946 = vpop.f32.mrb[0].mxu0
      %2947 = vmatprep.mubr.f32.mxu0 0.0
      %2948 = vmatmul.mubr.f32.gmra.mrb[0].mxu0 %v2855
      %v2949 = vpop.f32.mrb[0].mxu0
      %v2950 = vadd.f32 0.0, %v2949
      %v2951 = vpop.f32.mrb[0].mxu0
      %2952 = vmatprep.mubr.f32.mxu0 0.0
      %2953 = vmatmul.mubr.f32.gmra.mrb[0].mxu0 %v2856
      %v2954 = vpop.f32.mrb[0].mxu0
      %v2955 = vadd.f32 0.0, %v2954
      %v2956 = vpop.f32.mrb[0].mxu0
      %2957 = vmatprep.mubr.f32.mxu0 0.0
      %2958 = vmatmul.mubr.f32.gmra.mrb[0].mxu0 %v2857
      %v2959 = vpop.f32.mrb[0].mxu0
      %v2960 = vadd.f32 0.0, %v2959
      %v2961 = vpop.f32.mrb[0].mxu0
      %2962 = vdwg.mxu0
      %v2963 = vld [vmem:[%s7] sm:$0xff]
      %v2964 = vld [vmem:[%s7 + $0x8] sm:$0xff]
      %v2965 = vld [vmem:[%s7 + $0x10] sm:$0xff]
      %v2966 = vld [vmem:[%s7 + $0x18] sm:$0xff]
      %v2967 = vld [vmem:[%s7 + $0x20] sm:$0xff]
      %v2968 = vld [vmem:[%s7 + $0x28] sm:$0xff]
      %v2969 = vld [vmem:[%s7 + $0x30] sm:$0xff]
      %v2970 = vld [vmem:[%s7 + $0x38] sm:$0xff]
      %v2972 = vsel %vm1775, %v2925, 0
      %v2975 = vsel %vm1775, %v2930, 0
      %v2978 = vsel %vm1775, %v2935, 0
      %v2981 = vsel %vm1775, %v2940, 0
      %v2984 = vsel %vm1775, %v2945, 0
      %v2987 = vsel %vm1775, %v2950, 0
      %v2990 = vsel %vm1775, %v2955, 0
      %v2993 = vsel %vm1775, %v2960, 0
      %2995 = vmatprep.subr.mxu0 0.0
      %2996 = vmatpush1.msra.mxu0 %v2963
      %2997 = vmatprep.subr.mxu0 0.0
      %2998 = vmatpush1.msra.mxu0 %v2964
      %2999 = vmatprep.subr.mxu0 0.0
      %3000 = vmatpush1.msra.mxu0 %v2965
      %3001 = vmatprep.subr.mxu0 0.0
      %3002 = vmatpush1.msra.mxu0 %v2966
      %3003 = vmatprep.subr.mxu0 0.0
      %3004 = vmatpush1.msra.mxu0 %v2967
      %3005 = vmatprep.subr.mxu0 0.0
      %3006 = vmatpush1.msra.mxu0 %v2968
      %3007 = vmatprep.subr.mxu0 0.0
      %3008 = vmatpush1.msra.mxu0 %v2969
      %3009 = vmatprep.subr.mxu0 0.0
      %3010 = vmatpush1.msra.mxu0 %v2970
      %3011 = vmatprep.subr.mxu0 0.0
      %3012 = vmatpush1.msra.mxu0 0.0
      %3013 = vmatprep.subr.mxu0 0.0
      %3014 = vmatpush1.msra.mxu0 0.0
      %3015 = vmatprep.subr.mxu0 0.0
      %3016 = vmatpush1.msra.mxu0 0.0
      %3017 = vmatprep.subr.mxu0 0.0
      %3018 = vmatpush1.msra.mxu0 0.0
      %3019 = vmatprep.subr.mxu0 0.0
      %3020 = vmatpush1.msra.mxu0 0.0
      %3021 = vmatprep.subr.mxu0 0.0
      %3022 = vmatpush1.msra.mxu0 0.0
      %3023 = vmatprep.subr.mxu0 0.0
      %3024 = vmatpush1.msra.mxu0 0.0
      %3025 = vmatprep.subr.mxu0 0.0
      %3026 = vmatpush1.msra.mxu0 0.0
      %3027 = vmatprep.subr.mxu0 0.0
      %3028 = vmatpush1.msra.mxu0 0.0
      %3029 = vmatprep.subr.mxu0 0.0
      %3030 = vmatpush1.msra.mxu0 0.0
      %3031 = vmatprep.subr.mxu0 0.0
      %3032 = vmatpush1.msra.mxu0 0.0
      %3033 = vmatprep.subr.mxu0 0.0
      %3034 = vmatpush1.msra.mxu0 0.0
      %3035 = vmatprep.subr.mxu0 0.0
      %3036 = vmatpush1.msra.mxu0 0.0
      %3037 = vmatprep.subr.mxu0 0.0
      %3038 = vmatpush1.msra.mxu0 0.0
      %3039 = vmatprep.subr.mxu0 0.0
      %3040 = vmatpush1.msra.mxu0 0.0
      %3041 = vmatprep.subr.mxu0 0.0
      %3042 = vmatpush1.msra.mxu0 0.0
      %3043 = vmatprep.subr.mxu0 0.0
      %3044 = vmatpush1.msra.mxu0 0.0
      %3045 = vmatprep.subr.mxu0 0.0
      %3046 = vmatpush1.msra.mxu0 0.0
      %3047 = vmatprep.subr.mxu0 0.0
      %3048 = vmatpush1.msra.mxu0 0.0
      %3049 = vmatprep.subr.mxu0 0.0
      %3050 = vmatpush1.msra.mxu0 0.0
      %3051 = vmatprep.subr.mxu0 0.0
      %3052 = vmatpush1.msra.mxu0 0.0
      %3053 = vmatprep.subr.mxu0 0.0
      %3054 = vmatpush1.msra.mxu0 0.0
      %3055 = vmatprep.subr.mxu0 0.0
      %3056 = vmatpush1.msra.mxu0 0.0
      %3057 = vmatprep.subr.mxu0 0.0
      %3058 = vmatpush1.msra.mxu0 0.0
      %3059 = vmatprep.mubr.f32.mxu0 0.0
      %3060 = vmatmul.mubr.f32.gmra.mrb[0].mxu0 %v2972
      %v3061 = vpop.f32.mrb[0].mxu0
      %v3062 = vadd.f32 0.0, %v3061
      %v3063 = vpop.f32.mrb[0].mxu0
      %3064 = vmatprep.mubr.f32.mxu0 0.0
      %3065 = vmatmul.mubr.f32.gmra.mrb[0].mxu0 %v2975
      %v3066 = vpop.f32.mrb[0].mxu0
      %v3067 = vadd.f32 0.0, %v3066
      %v3068 = vpop.f32.mrb[0].mxu0
      %3069 = vmatprep.mubr.f32.mxu0 0.0
      %3070 = vmatmul.mubr.f32.gmra.mrb[0].mxu0 %v2978
      %v3071 = vpop.f32.mrb[0].mxu0
      %v3072 = vadd.f32 0.0, %v3071
      %v3073 = vpop.f32.mrb[0].mxu0
      %3074 = vmatprep.mubr.f32.mxu0 0.0
      %3075 = vmatmul.mubr.f32.gmra.mrb[0].mxu0 %v2981
      %v3076 = vpop.f32.mrb[0].mxu0
      %v3077 = vadd.f32 0.0, %v3076
      %v3078 = vpop.f32.mrb[0].mxu0
      %3079 = vmatprep.mubr.f32.mxu0 0.0
      %3080 = vmatmul.mubr.f32.gmra.mrb[0].mxu0 %v2984
      %v3081 = vpop.f32.mrb[0].mxu0
      %v3082 = vadd.f32 0.0, %v3081
      %v3083 = vpop.f32.mrb[0].mxu0
      %3084 = vmatprep.mubr.f32.mxu0 0.0
      %3085 = vmatmul.mubr.f32.gmra.mrb[0].mxu0 %v2987
      %v3086 = vpop.f32.mrb[0].mxu0
      %v3087 = vadd.f32 0.0, %v3086
      %v3088 = vpop.f32.mrb[0].mxu0
      %3089 = vmatprep.mubr.f32.mxu0 0.0
      %3090 = vmatmul.mubr.f32.gmra.mrb[0].mxu0 %v2990
      %v3091 = vpop.f32.mrb[0].mxu0
      %v3092 = vadd.f32 0.0, %v3091
      %v3093 = vpop.f32.mrb[0].mxu0
      %3094 = vmatprep.mubr.f32.mxu0 0.0
      %3095 = vmatmul.mubr.f32.gmra.mrb[0].mxu0 %v2993
      %v3096 = vpop.f32.mrb[0].mxu0
      %v3097 = vadd.f32 0.0, %v3096
      %v3098 = vpop.f32.mrb[0].mxu0
      %3099 = vdwg.mxu0
      %s3100 = scalar_lea.vmem %s7, 64
      %v3101 = vld [vmem:[%s3100] sm:$0xff]
      %v3102 = vld [vmem:[%s3100 + $0x8] sm:$0xff]
      %v3103 = vld [vmem:[%s3100 + $0x10] sm:$0xff]
      %v3104 = vld [vmem:[%s3100 + $0x18] sm:$0xff]
      %v3105 = vld [vmem:[%s3100 + $0x20] sm:$0xff]
      %v3106 = vld [vmem:[%s3100 + $0x28] sm:$0xff]
      %v3107 = vld [vmem:[%s3100 + $0x30] sm:$0xff]
      %v3108 = vld [vmem:[%s3100 + $0x38] sm:$0xff]
      %3109 = vmatprep.subr.mxu0 0.0
      %3110 = vmatpush1.msra.mxu0 %v3101
      %3111 = vmatprep.subr.mxu0 0.0
      %3112 = vmatpush1.msra.mxu0 %v3102
      %3113 = vmatprep.subr.mxu0 0.0
      %3114 = vmatpush1.msra.mxu0 %v3103
      %3115 = vmatprep.subr.mxu0 0.0
      %3116 = vmatpush1.msra.mxu0 %v3104
      %3117 = vmatprep.subr.mxu0 0.0
      %3118 = vmatpush1.msra.mxu0 %v3105
      %3119 = vmatprep.subr.mxu0 0.0
      %3120 = vmatpush1.msra.mxu0 %v3106
      %3121 = vmatprep.subr.mxu0 0.0
      %3122 = vmatpush1.msra.mxu0 %v3107
      %3123 = vmatprep.subr.mxu0 0.0
      %3124 = vmatpush1.msra.mxu0 %v3108
      %3125 = vmatprep.subr.mxu0 0.0
      %3126 = vmatpush1.msra.mxu0 0.0
      %3127 = vmatprep.subr.mxu0 0.0
      %3128 = vmatpush1.msra.mxu0 0.0
      %3129 = vmatprep.subr.mxu0 0.0
      %3130 = vmatpush1.msra.mxu0 0.0
      %3131 = vmatprep.subr.mxu0 0.0
      %3132 = vmatpush1.msra.mxu0 0.0
      %3133 = vmatprep.subr.mxu0 0.0
      %3134 = vmatpush1.msra.mxu0 0.0
      %3135 = vmatprep.subr.mxu0 0.0
      %3136 = vmatpush1.msra.mxu0 0.0
      %3137 = vmatprep.subr.mxu0 0.0
      %3138 = vmatpush1.msra.mxu0 0.0
      %3139 = vmatprep.subr.mxu0 0.0
      %3140 = vmatpush1.msra.mxu0 0.0
      %3141 = vmatprep.subr.mxu0 0.0
      %3142 = vmatpush1.msra.mxu0 0.0
      %3143 = vmatprep.subr.mxu0 0.0
      %3144 = vmatpush1.msra.mxu0 0.0
      %3145 = vmatprep.subr.mxu0 0.0
      %3146 = vmatpush1.msra.mxu0 0.0
      %3147 = vmatprep.subr.mxu0 0.0
      %3148 = vmatpush1.msra.mxu0 0.0
      %3149 = vmatprep.subr.mxu0 0.0
      %3150 = vmatpush1.msra.mxu0 0.0
      %3151 = vmatprep.subr.mxu0 0.0
      %3152 = vmatpush1.msra.mxu0 0.0
      %3153 = vmatprep.subr.mxu0 0.0
      %3154 = vmatpush1.msra.mxu0 0.0
      %3155 = vmatprep.subr.mxu0 0.0
      %3156 = vmatpush1.msra.mxu0 0.0
      %3157 = vmatprep.subr.mxu0 0.0
      %3158 = vmatpush1.msra.mxu0 0.0
      %3159 = vmatprep.subr.mxu0 0.0
      %3160 = vmatpush1.msra.mxu0 0.0
      %3161 = vmatprep.subr.mxu0 0.0
      %3162 = vmatpush1.msra.mxu0 0.0
      %3163 = vmatprep.subr.mxu0 0.0
      %3164 = vmatpush1.msra.mxu0 0.0
      %3165 = vmatprep.subr.mxu0 0.0
      %3166 = vmatpush1.msra.mxu0 0.0
      %3167 = vmatprep.subr.mxu0 0.0
      %3168 = vmatpush1.msra.mxu0 0.0
      %3169 = vmatprep.subr.mxu0 0.0
      %3170 = vmatpush1.msra.mxu0 0.0
      %3171 = vmatprep.subr.mxu0 0.0
      %3172 = vmatpush1.msra.mxu0 0.0
      %3173 = vmatprep.mubr.f32.mxu0 0.0
      %3174 = vmatmul.mubr.f32.gmra.mrb[0].mxu0 %v2972
      %v3175 = vpop.f32.mrb[0].mxu0
      %v3176 = vadd.f32 0.0, %v3175
      %v3177 = vpop.f32.mrb[0].mxu0
      %3178 = vmatprep.mubr.f32.mxu0 0.0
      %3179 = vmatmul.mubr.f32.gmra.mrb[0].mxu0 %v2975
      %v3180 = vpop.f32.mrb[0].mxu0
      %v3181 = vadd.f32 0.0, %v3180
      %v3182 = vpop.f32.mrb[0].mxu0
      %3183 = vmatprep.mubr.f32.mxu0 0.0
      %3184 = vmatmul.mubr.f32.gmra.mrb[0].mxu0 %v2978
      %v3185 = vpop.f32.mrb[0].mxu0
      %v3186 = vadd.f32 0.0, %v3185
      %v3187 = vpop.f32.mrb[0].mxu0
      %3188 = vmatprep.mubr.f32.mxu0 0.0
      %3189 = vmatmul.mubr.f32.gmra.mrb[0].mxu0 %v2981
      %v3190 = vpop.f32.mrb[0].mxu0
      %v3191 = vadd.f32 0.0, %v3190
      %v3192 = vpop.f32.mrb[0].mxu0
      %3193 = vmatprep.mubr.f32.mxu0 0.0
      %3194 = vmatmul.mubr.f32.gmra.mrb[0].mxu0 %v2984
      %v3195 = vpop.f32.mrb[0].mxu0
      %v3196 = vadd.f32 0.0, %v3195
      %v3197 = vpop.f32.mrb[0].mxu0
      %3198 = vmatprep.mubr.f32.mxu0 0.0
      %3199 = vmatmul.mubr.f32.gmra.mrb[0].mxu0 %v2987
      %v3200 = vpop.f32.mrb[0].mxu0
      %v3201 = vadd.f32 0.0, %v3200
      %v3202 = vpop.f32.mrb[0].mxu0
      %3203 = vmatprep.mubr.f32.mxu0 0.0
      %3204 = vmatmul.mubr.f32.gmra.mrb[0].mxu0 %v2990
      %v3205 = vpop.f32.mrb[0].mxu0
      %v3206 = vadd.f32 0.0, %v3205
      %v3207 = vpop.f32.mrb[0].mxu0
      %3208 = vmatprep.mubr.f32.mxu0 0.0
      %3209 = vmatmul.mubr.f32.gmra.mrb[0].mxu0 %v2993
      %v3210 = vpop.f32.mrb[0].mxu0
      %v3211 = vadd.f32 0.0, %v3210
      %v3212 = vpop.f32.mrb[0].mxu0
      %3213 = vdwg.mxu0
      %v3214 = vmax.f32 %v3062, %v3176
      %v3215 = vmax.f32 %v3067, %v3181
      %v3216 = vmax.f32 %v3072, %v3186
      %v3217 = vmax.f32 %v3077, %v3191
      %v3218 = vmax.f32 %v3082, %v3196
      %v3219 = vmax.f32 %v3087, %v3201
      %v3220 = vmax.f32 %v3092, %v3206
      %v3221 = vmax.f32 %v3097, %v3211
      %v3222 = vld [vmem:[%s1 + $0x1] sm:$0x1]
      %v3223 = vlaneseq
      %v3224 = vshrl.u32 %v3223, 7
      %v3225 = vsub.s32 0, %v3224
      %v3226 = vrot.slane %v3222, %v3225
      %v3227 = vadd.f32 %v3214, %v3226
      %v3228 = vadd.f32 %v3215, %v3226
      %v3229 = vadd.f32 %v3216, %v3226
      %v3230 = vadd.f32 %v3217, %v3226
      %v3231 = vadd.f32 %v3218, %v3226
      %v3232 = vadd.f32 %v3219, %v3226
      %v3233 = vadd.f32 %v3220, %v3226
      %v3234 = vadd.f32 %v3221, %v3226
      %v3235 = vmax.f32 %v3227, 0.0
      %v3236 = vmax.f32 %v3228, 0.0
      %v3237 = vmax.f32 %v3229, 0.0
      %v3238 = vmax.f32 %v3230, 0.0
      %v3239 = vmax.f32 %v3231, 0.0
      %v3240 = vmax.f32 %v3232, 0.0
      %v3241 = vmax.f32 %v3233, 0.0
      %v3242 = vmax.f32 %v3234, 0.0
      %v3243 = vld [vmem:[%s8] sm:$0xff]
      %v3244 = vld [vmem:[%s8 + $0x8] sm:$0xff]
      %v3245 = vld [vmem:[%s8 + $0x10] sm:$0xff]
      %v3246 = vld [vmem:[%s8 + $0x18] sm:$0xff]
      %s3247 = scalar_lea.vmem %s8, 32
      %v3248 = vld [vmem:[%s3247] sm:$0xff]
      %v3249 = vld [vmem:[%s3247 + $0x8] sm:$0xff]
      %v3250 = vld [vmem:[%s3247 + $0x10] sm:$0xff]
      %v3251 = vld [vmem:[%s3247 + $0x18] sm:$0xff]
      %v3253 = vsel %vm2201, %v3237, 0
      %v3256 = vsel %vm2201, %v3238, 0
      %3258 = vmatprep.subr.mxu0 0.0
      %3259 = vmatpush1.msra.mxu0 %v3248
      %3260 = vmatprep.subr.mxu0 0.0
      %3261 = vmatpush1.msra.mxu0 %v3249
      %3262 = vmatprep.subr.mxu0 0.0
      %3263 = vmatpush1.msra.mxu0 %v3250
      %3264 = vmatprep.subr.mxu0 0.0
      %3265 = vmatpush1.msra.mxu0 %v3251
      %3266 = vmatprep.subr.mxu0 0.0
      %3267 = vmatpush1.msra.mxu0 0.0
      %3268 = vmatprep.subr.mxu0 0.0
      %3269 = vmatpush1.msra.mxu0 0.0
      %3270 = vmatprep.subr.mxu0 0.0
      %3271 = vmatpush1.msra.mxu0 0.0
      %3272 = vmatprep.subr.mxu0 0.0
      %3273 = vmatpush1.msra.mxu0 0.0
      %3274 = vmatprep.subr.mxu0 0.0
      %3275 = vmatpush1.msra.mxu0 0.0
      %3276 = vmatprep.subr.mxu0 0.0
      %3277 = vmatpush1.msra.mxu0 0.0
      %3278 = vmatprep.subr.mxu0 0.0
      %3279 = vmatpush1.msra.mxu0 0.0
      %3280 = vmatprep.subr.mxu0 0.0
      %3281 = vmatpush1.msra.mxu0 0.0
      %3282 = vmatprep.subr.mxu0 0.0
      %3283 = vmatpush1.msra.mxu0 0.0
      %3284 = vmatprep.subr.mxu0 0.0
      %3285 = vmatpush1.msra.mxu0 0.0
      %3286 = vmatprep.subr.mxu0 0.0
      %3287 = vmatpush1.msra.mxu0 0.0
      %3288 = vmatprep.subr.mxu0 0.0
      %3289 = vmatpush1.msra.mxu0 0.0
      %3290 = vmatprep.subr.mxu0 0.0
      %3291 = vmatpush1.msra.mxu0 0.0
      %3292 = vmatprep.subr.mxu0 0.0
      %3293 = vmatpush1.msra.mxu0 0.0
      %3294 = vmatprep.subr.mxu0 0.0
      %3295 = vmatpush1.msra.mxu0 0.0
      %3296 = vmatprep.subr.mxu0 0.0
      %3297 = vmatpush1.msra.mxu0 0.0
      %3298 = vmatprep.subr.mxu0 0.0
      %3299 = vmatpush1.msra.mxu0 0.0
      %3300 = vmatprep.subr.mxu0 0.0
      %3301 = vmatpush1.msra.mxu0 0.0
      %3302 = vmatprep.subr.mxu0 0.0
      %3303 = vmatpush1.msra.mxu0 0.0
      %3304 = vmatprep.subr.mxu0 0.0
      %3305 = vmatpush1.msra.mxu0 0.0
      %3306 = vmatprep.subr.mxu0 0.0
      %3307 = vmatpush1.msra.mxu0 0.0
      %3308 = vmatprep.subr.mxu0 0.0
      %3309 = vmatpush1.msra.mxu0 0.0
      %3310 = vmatprep.subr.mxu0 0.0
      %3311 = vmatpush1.msra.mxu0 0.0
      %3312 = vmatprep.subr.mxu0 0.0
      %3313 = vmatpush1.msra.mxu0 0.0
      %3314 = vmatprep.subr.mxu0 0.0
      %3315 = vmatpush1.msra.mxu0 0.0
      %3316 = vmatprep.subr.mxu0 0.0
      %3317 = vmatpush1.msra.mxu0 0.0
      %3318 = vmatprep.subr.mxu0 0.0
      %3319 = vmatpush1.msra.mxu0 0.0
      %3320 = vmatprep.subr.mxu0 0.0
      %3321 = vmatpush1.msra.mxu0 0.0
      %3322 = vmatprep.mubr.f32.mxu0 0.0
      %3323 = vmatmul.mubr.f32.gmra.mrb[0].mxu0 %v3253
      %v3324 = vpop.f32.mrb[0].mxu0
      %v3325 = vadd.f32 0.0, %v3324
      %v3326 = vpop.f32.mrb[0].mxu0
      %3327 = vmatprep.mubr.f32.mxu0 0.0
      %3328 = vmatmul.mubr.f32.gmra.mrb[0].mxu0 %v3256
      %v3329 = vpop.f32.mrb[0].mxu0
      %v3330 = vadd.f32 0.0, %v3329
      %v3331 = vpop.f32.mrb[0].mxu0
      %3332 = vdwg.mxu0
      %s3333 = scalar_lea.vmem %s8, 64
      %v3334 = vld [vmem:[%s3333] sm:$0xff]
      %v3335 = vld [vmem:[%s3333 + $0x8] sm:$0xff]
      %v3336 = vld [vmem:[%s3333 + $0x10] sm:$0xff]
      %v3337 = vld [vmem:[%s3333 + $0x18] sm:$0xff]
      %s3338 = scalar_lea.vmem %s8, 96
      %v3339 = vld [vmem:[%s3338] sm:$0xff]
      %v3340 = vld [vmem:[%s3338 + $0x8] sm:$0xff]
      %v3341 = vld [vmem:[%s3338 + $0x10] sm:$0xff]
      %v3342 = vld [vmem:[%s3338 + $0x18] sm:$0xff]
      %v3344 = vsel %vm2201, %v3241, 0
      %v3347 = vsel %vm2201, %v3242, 0
      %3349 = vmatprep.subr.mxu0 0.0
      %3350 = vmatpush1.msra.mxu0 %v3339
      %3351 = vmatprep.subr.mxu0 0.0
      %3352 = vmatpush1.msra.mxu0 %v3340
      %3353 = vmatprep.subr.mxu0 0.0
      %3354 = vmatpush1.msra.mxu0 %v3341
      %3355 = vmatprep.subr.mxu0 0.0
      %3356 = vmatpush1.msra.mxu0 %v3342
      %3357 = vmatprep.subr.mxu0 0.0
      %3358 = vmatpush1.msra.mxu0 0.0
      %3359 = vmatprep.subr.mxu0 0.0
      %3360 = vmatpush1.msra.mxu0 0.0
      %3361 = vmatprep.subr.mxu0 0.0
      %3362 = vmatpush1.msra.mxu0 0.0
      %3363 = vmatprep.subr.mxu0 0.0
      %3364 = vmatpush1.msra.mxu0 0.0
      %3365 = vmatprep.subr.mxu0 0.0
      %3366 = vmatpush1.msra.mxu0 0.0
      %3367 = vmatprep.subr.mxu0 0.0
      %3368 = vmatpush1.msra.mxu0 0.0
      %3369 = vmatprep.subr.mxu0 0.0
      %3370 = vmatpush1.msra.mxu0 0.0
      %3371 = vmatprep.subr.mxu0 0.0
      %3372 = vmatpush1.msra.mxu0 0.0
      %3373 = vmatprep.subr.mxu0 0.0
      %3374 = vmatpush1.msra.mxu0 0.0
      %3375 = vmatprep.subr.mxu0 0.0
      %3376 = vmatpush1.msra.mxu0 0.0
      %3377 = vmatprep.subr.mxu0 0.0
      %3378 = vmatpush1.msra.mxu0 0.0
      %3379 = vmatprep.subr.mxu0 0.0
      %3380 = vmatpush1.msra.mxu0 0.0
      %3381 = vmatprep.subr.mxu0 0.0
      %3382 = vmatpush1.msra.mxu0 0.0
      %3383 = vmatprep.subr.mxu0 0.0
      %3384 = vmatpush1.msra.mxu0 0.0
      %3385 = vmatprep.subr.mxu0 0.0
      %3386 = vmatpush1.msra.mxu0 0.0
      %3387 = vmatprep.subr.mxu0 0.0
      %3388 = vmatpush1.msra.mxu0 0.0
      %3389 = vmatprep.subr.mxu0 0.0
      %3390 = vmatpush1.msra.mxu0 0.0
      %3391 = vmatprep.subr.mxu0 0.0
      %3392 = vmatpush1.msra.mxu0 0.0
      %3393 = vmatprep.subr.mxu0 0.0
      %3394 = vmatpush1.msra.mxu0 0.0
      %3395 = vmatprep.subr.mxu0 0.0
      %3396 = vmatpush1.msra.mxu0 0.0
      %3397 = vmatprep.subr.mxu0 0.0
      %3398 = vmatpush1.msra.mxu0 0.0
      %3399 = vmatprep.subr.mxu0 0.0
      %3400 = vmatpush1.msra.mxu0 0.0
      %3401 = vmatprep.subr.mxu0 0.0
      %3402 = vmatpush1.msra.mxu0 0.0
      %3403 = vmatprep.subr.mxu0 0.0
      %3404 = vmatpush1.msra.mxu0 0.0
      %3405 = vmatprep.subr.mxu0 0.0
      %3406 = vmatpush1.msra.mxu0 0.0
      %3407 = vmatprep.subr.mxu0 0.0
      %3408 = vmatpush1.msra.mxu0 0.0
      %3409 = vmatprep.subr.mxu0 0.0
      %3410 = vmatpush1.msra.mxu0 0.0
      %3411 = vmatprep.subr.mxu0 0.0
      %3412 = vmatpush1.msra.mxu0 0.0
      %3413 = vmatprep.mubr.f32.mxu0 0.0
      %3414 = vmatmul.mubr.f32.gmra.mrb[0].mxu0 %v3344
      %v3415 = vpop.f32.mrb[0].mxu0
      %v3416 = vadd.f32 0.0, %v3415
      %v3417 = vpop.f32.mrb[0].mxu0
      %3418 = vmatprep.mubr.f32.mxu0 0.0
      %3419 = vmatmul.mubr.f32.gmra.mrb[0].mxu0 %v3347
      %v3420 = vpop.f32.mrb[0].mxu0
      %v3421 = vadd.f32 0.0, %v3420
      %v3422 = vpop.f32.mrb[0].mxu0
      %3423 = vdwg.mxu0
      %v3425 = vsel %vm2201, %v3235, 0
      %v3428 = vsel %vm2201, %v3236, 0
      %3430 = vmatprep.subr.mxu0 0.0
      %3431 = vmatpush1.msra.mxu0 %v3243
      %3432 = vmatprep.subr.mxu0 0.0
      %3433 = vmatpush1.msra.mxu0 %v3244
      %3434 = vmatprep.subr.mxu0 0.0
      %3435 = vmatpush1.msra.mxu0 %v3245
      %3436 = vmatprep.subr.mxu0 0.0
      %3437 = vmatpush1.msra.mxu0 %v3246
      %3438 = vmatprep.subr.mxu0 0.0
      %3439 = vmatpush1.msra.mxu0 0.0
      %3440 = vmatprep.subr.mxu0 0.0
      %3441 = vmatpush1.msra.mxu0 0.0
      %3442 = vmatprep.subr.mxu0 0.0
      %3443 = vmatpush1.msra.mxu0 0.0
      %3444 = vmatprep.subr.mxu0 0.0
      %3445 = vmatpush1.msra.mxu0 0.0
      %3446 = vmatprep.subr.mxu0 0.0
      %3447 = vmatpush1.msra.mxu0 0.0
      %3448 = vmatprep.subr.mxu0 0.0
      %3449 = vmatpush1.msra.mxu0 0.0
      %3450 = vmatprep.subr.mxu0 0.0
      %3451 = vmatpush1.msra.mxu0 0.0
      %3452 = vmatprep.subr.mxu0 0.0
      %3453 = vmatpush1.msra.mxu0 0.0
      %3454 = vmatprep.subr.mxu0 0.0
      %3455 = vmatpush1.msra.mxu0 0.0
      %3456 = vmatprep.subr.mxu0 0.0
      %3457 = vmatpush1.msra.mxu0 0.0
      %3458 = vmatprep.subr.mxu0 0.0
      %3459 = vmatpush1.msra.mxu0 0.0
      %3460 = vmatprep.subr.mxu0 0.0
      %3461 = vmatpush1.msra.mxu0 0.0
      %3462 = vmatprep.subr.mxu0 0.0
      %3463 = vmatpush1.msra.mxu0 0.0
      %3464 = vmatprep.subr.mxu0 0.0
      %3465 = vmatpush1.msra.mxu0 0.0
      %3466 = vmatprep.subr.mxu0 0.0
      %3467 = vmatpush1.msra.mxu0 0.0
      %3468 = vmatprep.subr.mxu0 0.0
      %3469 = vmatpush1.msra.mxu0 0.0
      %3470 = vmatprep.subr.mxu0 0.0
      %3471 = vmatpush1.msra.mxu0 0.0
      %3472 = vmatprep.subr.mxu0 0.0
      %3473 = vmatpush1.msra.mxu0 0.0
      %3474 = vmatprep.subr.mxu0 0.0
      %3475 = vmatpush1.msra.mxu0 0.0
      %3476 = vmatprep.subr.mxu0 0.0
      %3477 = vmatpush1.msra.mxu0 0.0
      %3478 = vmatprep.subr.mxu0 0.0
      %3479 = vmatpush1.msra.mxu0 0.0
      %3480 = vmatprep.subr.mxu0 0.0
      %3481 = vmatpush1.msra.mxu0 0.0
      %3482 = vmatprep.subr.mxu0 0.0
      %3483 = vmatpush1.msra.mxu0 0.0
      %3484 = vmatprep.subr.mxu0 0.0
      %3485 = vmatpush1.msra.mxu0 0.0
      %3486 = vmatprep.subr.mxu0 0.0
      %3487 = vmatpush1.msra.mxu0 0.0
      %3488 = vmatprep.subr.mxu0 0.0
      %3489 = vmatpush1.msra.mxu0 0.0
      %3490 = vmatprep.subr.mxu0 0.0
      %3491 = vmatpush1.msra.mxu0 0.0
      %3492 = vmatprep.subr.mxu0 0.0
      %3493 = vmatpush1.msra.mxu0 0.0
      %3494 = vmatprep.mubr.f32.mxu0 0.0
      %3495 = vmatmul.mubr.f32.gmra.mrb[0].mxu0 %v3425
      %v3496 = vpop.f32.mrb[0].mxu0
      %v3497 = vadd.f32 %v3325, %v3496
      %v3498 = vpop.f32.mrb[0].mxu0
      %3499 = vmatprep.mubr.f32.mxu0 0.0
      %3500 = vmatmul.mubr.f32.gmra.mrb[0].mxu0 %v3428
      %v3501 = vpop.f32.mrb[0].mxu0
      %v3502 = vadd.f32 %v3330, %v3501
      %v3503 = vpop.f32.mrb[0].mxu0
      %3504 = vdwg.mxu0
      %v3506 = vsel %vm2201, %v3239, 0
      %v3509 = vsel %vm2201, %v3240, 0
      %3511 = vmatprep.subr.mxu0 0.0
      %3512 = vmatpush1.msra.mxu0 %v3334
      %3513 = vmatprep.subr.mxu0 0.0
      %3514 = vmatpush1.msra.mxu0 %v3335
      %3515 = vmatprep.subr.mxu0 0.0
      %3516 = vmatpush1.msra.mxu0 %v3336
      %3517 = vmatprep.subr.mxu0 0.0
      %3518 = vmatpush1.msra.mxu0 %v3337
      %3519 = vmatprep.subr.mxu0 0.0
      %3520 = vmatpush1.msra.mxu0 0.0
      %3521 = vmatprep.subr.mxu0 0.0
      %3522 = vmatpush1.msra.mxu0 0.0
      %3523 = vmatprep.subr.mxu0 0.0
      %3524 = vmatpush1.msra.mxu0 0.0
      %3525 = vmatprep.subr.mxu0 0.0
      %3526 = vmatpush1.msra.mxu0 0.0
      %3527 = vmatprep.subr.mxu0 0.0
      %3528 = vmatpush1.msra.mxu0 0.0
      %3529 = vmatprep.subr.mxu0 0.0
      %3530 = vmatpush1.msra.mxu0 0.0
      %3531 = vmatprep.subr.mxu0 0.0
      %3532 = vmatpush1.msra.mxu0 0.0
      %3533 = vmatprep.subr.mxu0 0.0
      %3534 = vmatpush1.msra.mxu0 0.0
      %3535 = vmatprep.subr.mxu0 0.0
      %3536 = vmatpush1.msra.mxu0 0.0
      %3537 = vmatprep.subr.mxu0 0.0
      %3538 = vmatpush1.msra.mxu0 0.0
      %3539 = vmatprep.subr.mxu0 0.0
      %3540 = vmatpush1.msra.mxu0 0.0
      %3541 = vmatprep.subr.mxu0 0.0
      %3542 = vmatpush1.msra.mxu0 0.0
      %3543 = vmatprep.subr.mxu0 0.0
      %3544 = vmatpush1.msra.mxu0 0.0
      %3545 = vmatprep.subr.mxu0 0.0
      %3546 = vmatpush1.msra.mxu0 0.0
      %3547 = vmatprep.subr.mxu0 0.0
      %3548 = vmatpush1.msra.mxu0 0.0
      %3549 = vmatprep.subr.mxu0 0.0
      %3550 = vmatpush1.msra.mxu0 0.0
      %3551 = vmatprep.subr.mxu0 0.0
      %3552 = vmatpush1.msra.mxu0 0.0
      %3553 = vmatprep.subr.mxu0 0.0
      %3554 = vmatpush1.msra.mxu0 0.0
      %3555 = vmatprep.subr.mxu0 0.0
      %3556 = vmatpush1.msra.mxu0 0.0
      %3557 = vmatprep.subr.mxu0 0.0
      %3558 = vmatpush1.msra.mxu0 0.0
      %3559 = vmatprep.subr.mxu0 0.0
      %3560 = vmatpush1.msra.mxu0 0.0
      %3561 = vmatprep.subr.mxu0 0.0
      %3562 = vmatpush1.msra.mxu0 0.0
      %3563 = vmatprep.subr.mxu0 0.0
      %3564 = vmatpush1.msra.mxu0 0.0
      %3565 = vmatprep.subr.mxu0 0.0
      %3566 = vmatpush1.msra.mxu0 0.0
      %3567 = vmatprep.subr.mxu0 0.0
      %3568 = vmatpush1.msra.mxu0 0.0
      %3569 = vmatprep.subr.mxu0 0.0
      %3570 = vmatpush1.msra.mxu0 0.0
      %3571 = vmatprep.subr.mxu0 0.0
      %3572 = vmatpush1.msra.mxu0 0.0
      %3573 = vmatprep.subr.mxu0 0.0
      %3574 = vmatpush1.msra.mxu0 0.0
      %3575 = vmatprep.mubr.f32.mxu0 0.0
      %3576 = vmatmul.mubr.f32.gmra.mrb[0].mxu0 %v3506
      %v3577 = vpop.f32.mrb[0].mxu0
      %v3578 = vadd.f32 %v3416, %v3577
      %v3579 = vpop.f32.mrb[0].mxu0
      %3580 = vmatprep.mubr.f32.mxu0 0.0
      %3581 = vmatmul.mubr.f32.gmra.mrb[0].mxu0 %v3509
      %v3582 = vpop.f32.mrb[0].mxu0
      %v3583 = vadd.f32 %v3421, %v3582
      %v3584 = vpop.f32.mrb[0].mxu0
      %3585 = vdwg.mxu0
      %v3586 = vadd.f32 %v3497, %v3578
      %v3587 = vadd.f32 %v3502, %v3583
      %v3588 = vld [vmem:[%s1 + $0x2] sm:$0x1]
      %v3589 = vlaneseq
      %v3590 = vshrl.u32 %v3589, 7
      %v3591 = vsub.s32 0, %v3590
      %v3592 = vrot.slane %v3588, %v3591
      %v3593 = vadd.f32 %v3586, %v3592
      %v3594 = vadd.f32 %v3587, %v3592
      %v3595 = vmax.f32 %v3593, 0.0
      %v3596 = vmax.f32 %v3594, 0.0
      %v3597 = vld [vmem:[%s9] sm:$0xff]
      %v3598 = vld [vmem:[%s9 + $0x8] sm:$0xff]
      %v3599 = vld [vmem:[%s9 + $0x10] sm:$0xff]
      %v3600 = vld [vmem:[%s9 + $0x18] sm:$0xff]
      %v3601 = vld [vmem:[%s1 + $0x3] sm:$0x1]
      %v3602 = vlaneseq
      %v3603 = vshrl.u32 %v3602, 7
      %v3604 = vsub.s32 0, %v3603
      %v3605 = vrot.slane %v3601, %v3604
      %v3607 = vsel %vm2201, %v3595, 0
      %v3610 = vsel %vm2201, %v3596, 0
      %3612 = vmatprep.subr.mxu0 0.0
      %3613 = vmatpush1.msra.mxu0 %v3597
      %3614 = vmatprep.subr.mxu0 0.0
      %3615 = vmatpush1.msra.mxu0 %v3598
      %3616 = vmatprep.subr.mxu0 0.0
      %3617 = vmatpush1.msra.mxu0 %v3599
      %3618 = vmatprep.subr.mxu0 0.0
      %3619 = vmatpush1.msra.mxu0 %v3600
      %3620 = vmatprep.subr.mxu0 0.0
      %3621 = vmatpush1.msra.mxu0 0.0
      %3622 = vmatprep.subr.mxu0 0.0
      %3623 = vmatpush1.msra.mxu0 0.0
      %3624 = vmatprep.subr.mxu0 0.0
      %3625 = vmatpush1.msra.mxu0 0.0
      %3626 = vmatprep.subr.mxu0 0.0
      %3627 = vmatpush1.msra.mxu0 0.0
      %3628 = vmatprep.subr.mxu0 0.0
      %3629 = vmatpush1.msra.mxu0 0.0
      %3630 = vmatprep.subr.mxu0 0.0
      %3631 = vmatpush1.msra.mxu0 0.0
      %3632 = vmatprep.subr.mxu0 0.0
      %3633 = vmatpush1.msra.mxu0 0.0
      %3634 = vmatprep.subr.mxu0 0.0
      %3635 = vmatpush1.msra.mxu0 0.0
      %3636 = vmatprep.subr.mxu0 0.0
      %3637 = vmatpush1.msra.mxu0 0.0
      %3638 = vmatprep.subr.mxu0 0.0
      %3639 = vmatpush1.msra.mxu0 0.0
      %3640 = vmatprep.subr.mxu0 0.0
      %3641 = vmatpush1.msra.mxu0 0.0
      %3642 = vmatprep.subr.mxu0 0.0
      %3643 = vmatpush1.msra.mxu0 0.0
      %3644 = vmatprep.subr.mxu0 0.0
      %3645 = vmatpush1.msra.mxu0 0.0
      %3646 = vmatprep.subr.mxu0 0.0
      %3647 = vmatpush1.msra.mxu0 0.0
      %3648 = vmatprep.subr.mxu0 0.0
      %3649 = vmatpush1.msra.mxu0 0.0
      %3650 = vmatprep.subr.mxu0 0.0
      %3651 = vmatpush1.msra.mxu0 0.0
      %3652 = vmatprep.subr.mxu0 0.0
      %3653 = vmatpush1.msra.mxu0 0.0
      %3654 = vmatprep.subr.mxu0 0.0
      %3655 = vmatpush1.msra.mxu0 0.0
      %3656 = vmatprep.subr.mxu0 0.0
      %3657 = vmatpush1.msra.mxu0 0.0
      %3658 = vmatprep.subr.mxu0 0.0
      %3659 = vmatpush1.msra.mxu0 0.0
      %3660 = vmatprep.subr.mxu0 0.0
      %3661 = vmatpush1.msra.mxu0 0.0
      %3662 = vmatprep.subr.mxu0 0.0
      %3663 = vmatpush1.msra.mxu0 0.0
      %3664 = vmatprep.subr.mxu0 0.0
      %3665 = vmatpush1.msra.mxu0 0.0
      %3666 = vmatprep.subr.mxu0 0.0
      %3667 = vmatpush1.msra.mxu0 0.0
      %3668 = vmatprep.subr.mxu0 0.0
      %3669 = vmatpush1.msra.mxu0 0.0
      %3670 = vmatprep.subr.mxu0 0.0
      %3671 = vmatpush1.msra.mxu0 0.0
      %3672 = vmatprep.subr.mxu0 0.0
      %3673 = vmatpush1.msra.mxu0 0.0
      %3674 = vmatprep.subr.mxu0 0.0
      %3675 = vmatpush1.msra.mxu0 0.0
      %3676 = vmatprep.mubr.f32.mxu0 0.0
      %3677 = vmatmul.mubr.f32.gmra.mrb[0].mxu0 %v3607
      %v3678 = vpop.f32.mrb[0].mxu0
      %v3679 = vadd.f32 %v3605, %v3678
      %v3680 = vpop.f32.mrb[0].mxu0
      %3681 = vmatprep.mubr.f32.mxu0 0.0
      %3682 = vmatmul.mubr.f32.gmra.mrb[0].mxu0 %v3610
      %v3683 = vpop.f32.mrb[0].mxu0
      %v3684 = vadd.f32 %v3605, %v3683
      %v3685 = vpop.f32.mrb[0].mxu0
      %3686 = vdwg.mxu0
      %3687 = vst [vmem:[%s359] sm:$0xff] %v3679
      %3688 = vst [vmem:[%s359 + $0x8] sm:$0xff] %v3684
      %s3689 = smul.u32 2, %s21
      %p3690 = scmp.lt.s32.totalorder %s3689, 3
      %s3691 = scalar_select %p3690, %s3689, 3
      %s3692 = smul.addr %s3691, 8
      %s3693 = scalar_lea.vmem %s10, %s3692
      // Predicated region
      $region61: #{cnn_forward.1} parent=59 // pred_check
        %p3694 = pneg %p254
      $region62: #{cnn_forward.1} parent=59 // pred_check_branch
        %3696 = sbr.rel (%p3694) target = $region64
      $region63: #{cnn_forward.1} parent=59 // pred_region
        %s3697 = smul.u32 2, %s21
      $region64: #{cnn_forward.1} parent=59 // pred_fallthru
        _
    $region60: #{cnn_forward.1} parent=5 // pred_fallthru
      _
    %p3698 = scmp.le.s32.totalorder 2, %s16
    // Predicated region
    $region65: #{cnn_forward.1} parent=5 // pred_check
      %p3699 = pneg %p3698
    $region66: #{cnn_forward.1} parent=5 // pred_check_branch
      %3701 = sbr.rel (%p3699) target = $region68
    $region67: #{cnn_forward.1} parent=5 // pred_region
      %s3702 = ssub.s32 %s16, 2
      // Predicated region
      $region69: #{cnn_forward.1} parent=67 // pred_check
        %p3703 = pneg %p260
      $region70: #{cnn_forward.1} parent=67 // pred_check_branch
        %3705 = sbr.rel (%p3703) target = $region72
      $region71: #{cnn_forward.1} parent=67 // pred_region
        %s3706 = smul.u32 2, %s22
        %p3707 = scmp.lt.s32.totalorder %s3706, 3
        %s3708 = scalar_select %p3707, %s3706, 3
        %s3709 = smul.addr %s3708, 8
        %s3710 = scalar_lea.vmem %s10, %s3709
      $region72: #{cnn_forward.1} parent=67 // pred_fallthru
        _
    $region68: #{cnn_forward.1} parent=5 // pred_fallthru
      _
  $region6: #{cnn_forward.1} parent=0 // loop_footer
    %s20 = sadd.s32 1, %s16
  $region7: #{cnn_forward.1} parent=0 // loop_footer_branch
    %15 = sbr.rel target = $region3
  $region8: #{cnn_forward.1} parent=0 // loop_exit
    _

</llo_original>
